<compile_context>
chip_gen: v7x
topology: tpu7x:2x2x1
jax: 0.10.0
libtpu: 0.0.40
codegen_flags: <defaults>
</compile_context>

<pallas_src>
import math

import jax
import jax.numpy as jnp
from jax import lax
from jax.experimental import pallas as pl
from jax.experimental.pallas import tpu as pltpu

# ----------------------------- configuration ------------------------------
B = 2              # batch
N = 8              # number of queries
CONTENT_DIM = 32   # content_dim (== featmap channels C_map here)
G = 4              # G_sub_q
P = 2              # in_points
S = 9              # subbox_poolsize
C_MAP = CONTENT_DIM
CG = C_MAP // G
GP = G * P
PS = P * S
GPS = GP * S                              # 72: all (g, p, s) point columns per query
NPTS = N * P * S                          # 144 points per (batch, group), order (n, p, s)
LEVELS = ((16, 16, 8.0), (8, 8, 16.0))    # (H, W, stride) per FPN level
L = len(LEVELS)
TAU = 2.0
LN2 = math.log(2.0)
AUGW = 4 + CONTENT_DIM + 1                # input slab: [xyzr(4) | qc(32) | ones(1)]
BLK = 128                                 # lane-aligned stride between expanded blocks
NBLK = 6                                  # dx0, dy0, dz0, dx1, dy1, dz1
FOLDROWS = N + PS                         # rows of the constant fold-matrix input


# ------------------------------ fused kernel --------------------------------
def _fused_kernel(aug_ref, wexp_ref, fold_ref, *rest):
    """One batch per grid step: fused linears + point gen + level softmax +
    separable bilinear sampling.

    aug_ref  : (1, N, AUGW)         [xyzr | query_content | 1]
    wexp_ref : (AUGW, NBLK*BLK)     expanded fused linear weight (bias folded in)
    fold_ref : (FOLDROWS, NPTS)     rows 0..N-1: M[n,t]=1 iff t//PS==n
                                    rows N..   : E[u,t]=1 iff t% PS==u
    fm refs  : (1, C_MAP, H*W) per level (channel-major)
    out_ref  : (1, G, CG, NPTS)     lane-dense output (NPTS on lanes)
    """
    fm_refs = rest[:L]
    out_ref = rest[L]

    # ---- fused linears: one MXU matmul, outputs pre-expanded to (N, GPS) ----
    aug = aug_ref[0]                                              # (N, AUGW)
    d = jnp.dot(aug, wexp_ref[...], preferred_element_type=jnp.float32)  # (N, 768)
    DX0 = d[:, 0 * BLK:0 * BLK + GPS]          # dx0[n, gp(j)]
    DY0 = d[:, 1 * BLK:1 * BLK + GPS]
    DZ0 = d[:, 2 * BLK:2 * BLK + GPS]
    DX1 = d[:, 3 * BLK:3 * BLK + GPS]          # dx1[n, s(j)]
    DY1 = d[:, 4 * BLK:4 * BLK + GPS]
    DZ1 = d[:, 5 * BLK:5 * BLK + GPS]

    orix = aug[:, 0:1]                         # (N, 1)
    oriy = aug[:, 1:2]
    oriz = aug[:, 2:3]
    orir = aug[:, 3:4]
    sx = jnp.exp(LN2 * (oriz - 0.5 * orir))    # 2 ** (z - r/2)   (EUP)
    sy = jnp.exp(LN2 * (oriz + 0.5 * orir))
    e0 = jnp.exp(LN2 * DZ0)                    # 2 ** dz0          (N, GPS)

    # keep only the SMALL deltas on the MXU fold path; origins are added after
    dx = sx * (DX0 + e0 * DX1)                 # (N, GPS)
    dy = sy * (DY0 + e0 * DY1)
    newz = oriz + DZ0 + DZ1

    # regress_z: softmax over levels of -((z - 3 - l)^2 / tau)
    zm = newz - 3.0
    logits = [-((zm - float(l)) ** 2) * (1.0 / TAU) for l in range(L)]
    m = logits[0]
    for l in range(1, L):
        m = jnp.maximum(m, logits[l])
    exps = [jnp.exp(lg - m) for lg in logits]
    den = exps[0]
    for l in range(1, L):
        den = den + exps[l]
    inv = 1.0 / den
    wz = [e * inv for e in exps]               # each (N, GPS), in [0, 1]

    # ---- query-rows -> point-lanes fold (constant 0/1 matrices) -------------
    Mrow = fold_ref[0:N, :]                    # (N, NPTS)
    Esel = fold_ref[N:N + PS, :]               # (PS, NPTS)

    def fold(q):                               # (N, PS) -> (1, NPTS), t = n*PS + p*S + s
        qe = jnp.dot(q, Esel, preferred_element_type=jnp.float32)   # (N, NPTS)
        return jnp.sum(qe * Mrow, axis=0, keepdims=True)

    # per-point origins: exact mask-sum (large values never enter a matmul)
    orix_l = jnp.sum(orix * Mrow, axis=0, keepdims=True)            # (1, NPTS)
    oriy_l = jnp.sum(oriy * Mrow, axis=0, keepdims=True)

    # level-constant coordinate grids, hoisted out of the g loop
    grids = []
    for (H, W, _) in LEVELS:
        wcol = lax.broadcasted_iota(jnp.int32, (W, NPTS), 0).astype(jnp.float32)
        hrow = lax.broadcasted_iota(jnp.int32, (H, NPTS), 0).astype(jnp.float32)
        grids.append((wcol, hrow))

    # ---- per-group separable bilinear sampling (static unrolled, G=4) -------
    for g in range(G):
        j0 = g * PS
        x_l = fold(dx[:, j0:j0 + PS]) + orix_l           # (1, NPTS) image-space x
        y_l = fold(dy[:, j0:j0 + PS]) + oriy_l
        wz_l = [fold(w[:, j0:j0 + PS]) for w in wz]       # level weights, (1, NPTS)

        acc = None
        for l, (H, W, stride) in enumerate(LEVELS):
            wcol, hrow = grids[l]
            # grid_sample(align_corners=False): pixel coords = x/stride - 0.5
            ix = x_l * (1.0 / stride) - 0.5
            iy = y_l * (1.0 / stride) - 0.5
            # bilinear "hat" weights; out-of-range columns/rows give 0 => zeros padding
            fx = jnp.maximum(1.0 - jnp.abs(wcol - ix), 0.0)               # (W, NPTS)
            fy = jnp.maximum(1.0 - jnp.abs(hrow - iy), 0.0) * wz_l[l]     # (H, NPTS)
            # wpT[(h,w), t] = fy[h,t] * fx[w,t]; W multiple of 8 -> layout-free collapse
            wpT = (fy[:, None, :] * fx[None, :, :]).reshape(H * W, NPTS)
            fm_g = fm_refs[l][0, g * CG:(g + 1) * CG, :]                  # (CG, HW)
            part = jnp.dot(fm_g, wpT, preferred_element_type=jnp.float32)
            acc = part if acc is None else acc + part                     # init from lvl 0
        out_ref[0, g] = acc                     # (CG, NPTS): lane-dense store


# ------------------------------- host glue ----------------------------------
def _build_expanded_weight(params):
    """Fuse gen_one_d / gen_double_d weights+biases into one lane-aligned
    (AUGW, 6*128) matrix whose matmul output is already per-point expanded."""
    w1, b1, w2, b2 = params["w1"], params["b1"], params["w2"], params["b2"]
    gp_j = jnp.arange(GPS) // S                # group*P + p  of point-column j
    s_j = jnp.arange(GPS) % S                  # s            of point-column j
    zeros4 = jnp.zeros((4, GPS), jnp.float32)  # xyzr rows contribute nothing
    blocks = []
    for c in range(3):                         # dx0 / dy0 / dz0 (depend on gp only)
        cols = w1[:, gp_j * 3 + c]             # (C, GPS)
        bias = b1[gp_j * 3 + c][None, :]       # (1, GPS)
        blocks.append(jnp.concatenate([zeros4, cols, bias], axis=0))
    for c in range(3):                         # dx1 / dy1 / dz1 (depend on s only)
        cols = w2[:, s_j * 3 + c]
        bias = b2[s_j * 3 + c][None, :]
        blocks.append(jnp.concatenate([zeros4, cols, bias], axis=0))
    blocks = [jnp.pad(blk, ((0, 0), (0, BLK - GPS))) for blk in blocks]
    return jnp.concatenate(blocks, axis=1)     # (AUGW, NBLK*BLK)


def _build_fold_mats():
    """Constant 0/1 fold matrices: M (N,NPTS), E (PS,NPTS), stacked on sublanes."""
    t = jnp.arange(NPTS)
    m = (t[None, :] // PS == jnp.arange(N)[:, None]).astype(jnp.float32)
    e = (t[None, :] % PS == jnp.arange(PS)[:, None]).astype(jnp.float32)
    return jnp.concatenate([m, e], axis=0)     # (FOLDROWS, NPTS)


@jax.jit
def subquery_feature_sampler_forward(featmaps, strides, query_content, query_box, params):
    """Pallas implementation of SubqueryFeatureSampler.forward.

    Returns (subbox_feat, query_content) like the PyTorch module, with
    subbox_feat of shape (B, N, G, P*S, C_map // G)."""
    del strides  # carried statically via LEVELS
    wexp = _build_expanded_weight(params)
    fold_mats = _build_fold_mats()
    ones = jnp.ones((B, N, 1), jnp.float32)
    aug = jnp.concatenate([query_box, query_content, ones], axis=-1)   # (B, N, AUGW)
    # Featmaps stay channel-major: (B, C_map, H*W) is a free reshape of NCHW.
    fms = [fm.reshape(B, C_MAP, H * W) for fm, (H, W, _) in zip(featmaps, LEVELS)]

    in_specs = ([pl.BlockSpec((1, N, AUGW), lambda b: (b, 0, 0)),
                 pl.BlockSpec((AUGW, NBLK * BLK), lambda b: (0, 0)),
                 pl.BlockSpec((FOLDROWS, NPTS), lambda b: (0, 0))]
                + [pl.BlockSpec((1, C_MAP, H * W), lambda b: (b, 0, 0))
                   for (H, W, _) in LEVELS])

    sampled = pl.pallas_call(
        _fused_kernel,
        out_shape=jax.ShapeDtypeStruct((B, G, CG, NPTS), jnp.float32),
        grid_spec=pltpu.PrefetchScalarGridSpec(
            num_scalar_prefetch=0,
            grid=(B,),
            in_specs=in_specs,
            out_specs=pl.BlockSpec((1, G, CG, NPTS), lambda b: (b, 0, 0, 0))),
        compiler_params=pltpu.CompilerParams(dimension_semantics=("parallel",)),
    )(aug, wexp, fold_mats, *fms)

    # final shaping to the PyTorch layout (output glue only)
    subbox_feat = (sampled.reshape(B, G, CG, N, PS)
                          .transpose(0, 3, 1, 4, 2))   # (B, N, G, P*S, Cg)
    return subbox_feat, query_content


# ---------------------------- parameter init --------------------------------
def init_params(key):
    # Module shapes: gen_one_d = Linear(C, 3*G*P), gen_double_d = Linear(C, 3*S).
    # Deterministic synthetic init: small random weights (so the matmul path is
    # exercised) + the structured bias scheme from init_weights().
    k1, k2, k3, k4 = jax.random.split(key, 4)
    w1 = 0.01 * jax.random.normal(k1, (CONTENT_DIM, 3 * GP), jnp.float32)
    w2 = 0.01 * jax.random.normal(k2, (CONTENT_DIM, 3 * S), jnp.float32)
    b1 = jnp.zeros((GP, 3), jnp.float32)
    b1 = b1.at[:, :2].set(jax.random.uniform(k3, (GP, 2), jnp.float32, -0.5, 0.5))
    b1 = b1.reshape(3 * GP)
    bw = 0.5 / math.sqrt(2.0)
    b2 = jnp.zeros((S, 3), jnp.float32)
    b2 = b2.at[1:, :2].set(jax.random.uniform(k4, (S - 1, 2), jnp.float32, -bw, bw))
    b2 = b2.reshape(3 * S)
    return dict(w1=w1, b1=b1, w2=w2, b2=b2)


# ------------------------- pure-JAX reference -------------------------------
def reference_forward(featmaps, qc, qb, params):
    w1, b1, w2, b2 = params["w1"], params["b1"], params["w2"], params["b2"]
    d00 = (qc @ w1 + b1).reshape(B, N, GP, 1, 3)
    d01 = (qc @ w2 + b2).reshape(B, N, 1, S, 3)
    ori = qb.reshape(B, N, 1, 1, 4)
    orix, oriy, oriz, orir = (ori[..., i:i + 1] for i in range(4))
    dx0, dy0, dz0 = (d00[..., i:i + 1] for i in range(3))
    dx1, dy1, dz1 = (d01[..., i:i + 1] for i in range(3))
    newx = orix + 2.0 ** (oriz - 0.5 * orir) * (dx0 + 2.0 ** dz0 * dx1)
    newy = oriy + 2.0 ** (oriz + 0.5 * orir) * (dy0 + 2.0 ** dz0 * dy1)
    newz = oriz + dz0 + dz1
    grid = jnp.concatenate([newx, newy], -1)
    grid = grid.reshape(B, N, G, PS, 2).transpose(0, 2, 1, 3, 4).reshape(B * G, NPTS, 2)
    z = newz.reshape(B, N, G, PS).transpose(0, 2, 1, 3).reshape(B * G, NPTS)
    lv = jnp.arange(L, dtype=jnp.float32)
    wz = jax.nn.softmax(-((z[..., None] - 3.0 - lv) ** 2) / TAU, axis=-1)
    acc = jnp.zeros((B * G, NPTS, CG), jnp.float32)
    for i, (fm, (H, W, stride)) in enumerate(zip(featmaps, LEVELS)):
        fmf = fm.reshape(B * G, CG, H * W)
        ix = grid[..., 0] / stride - 0.5
        iy = grid[..., 1] / stride - 0.5
        x0 = jnp.floor(ix)
        y0 = jnp.floor(iy)
        wx1, wy1 = ix - x0, iy - y0
        wx0, wy0 = 1.0 - wx1, 1.0 - wy1

        def corner(xf, yf, w):
            xi = xf.astype(jnp.int32)
            yi = yf.astype(jnp.int32)
            valid = ((xi >= 0) & (xi < W) & (yi >= 0) & (yi < H)).astype(jnp.float32)
            idx = jnp.clip(yi, 0, H - 1) * W + jnp.clip(xi, 0, W - 1)
            vals = jax.vmap(lambda f, ind: f[:, ind])(fmf, idx)   # (BG, CG, NPTS)
            return vals * (valid * w)[:, None, :]

        v = (corner(x0, y0, wx0 * wy0) + corner(x0 + 1, y0, wx1 * wy0)
             + corner(x0, y0 + 1, wx0 * wy1) + corner(x0 + 1, y0 + 1, wx1 * wy1))
        acc = acc + (v * wz[:, None, :, i]).transpose(0, 2, 1)
    return acc.reshape(B, G, N, PS, CG).transpose(0, 2, 1, 3, 4)


# --------------------------------- main --------------------------------------
if __name__ == "__main__":
    key = jax.random.PRNGKey(0)
    kf0, kf1, kqc, kbx, kby, kbz, kbr, kp = jax.random.split(key, 8)
    featmaps = [
        jax.random.normal(kf0, (B, C_MAP, LEVELS[0][0], LEVELS[0][1]), jnp.float32),
        jax.random.normal(kf1, (B, C_MAP, LEVELS[1][0], LEVELS[1][1]), jnp.float32),
    ]
    featmap_strides = [lvl[2] for lvl in LEVELS]
    query_content = jax.random.normal(kqc, (B, N, CONTENT_DIM), jnp.float32)
    bx = jax.random.uniform(kbx, (B, N), jnp.float32, 20.0, 100.0)
    by = jax.random.uniform(kby, (B, N), jnp.float32, 20.0, 100.0)
    bz = jax.random.uniform(kbz, (B, N), jnp.float32, 2.5, 4.5)
    br = jax.random.uniform(kbr, (B, N), jnp.float32, -0.5, 0.5)
    query_box = jnp.stack([bx, by, bz, br], axis=-1)   # xyzr boxes
    params = init_params(kp)

    subbox_feat, qc_out = subquery_feature_sampler_forward(
        featmaps, featmap_strides, query_content, query_box, params)
    subbox_feat = jax.block_until_ready(subbox_feat)

    # sanity check against a pure-JAX reference
    ref = reference_forward(featmaps, query_content, query_box, params)
    assert subbox_feat.shape == (B, N, G, PS, CG), subbox_feat.shape
    assert bool(jnp.all(jnp.isfinite(subbox_feat)))
    err = float(jnp.max(jnp.abs(subbox_feat - ref)))
    assert err < 2e-2, f"max abs error vs reference = {err}"
    print("KERNEL_OK")
</pallas_src>

<mosaic_0001>
module attributes {stable_mosaic.version = 11 : i64} {
  func.func @_fused_kernel(%arg0: i32, %arg1: memref<1x8x37xf32, #tpu.memory_space<vmem>>, %arg2: memref<37x768xf32, #tpu.memory_space<vmem>>, %arg3: memref<26x144xf32, #tpu.memory_space<vmem>>, %arg4: memref<1x32x256xf32, #tpu.memory_space<vmem>>, %arg5: memref<1x32x64xf32, #tpu.memory_space<vmem>>, %arg6: memref<1x4x8x144xf32, #tpu.memory_space<vmem>>) attributes {dimension_semantics = [#tpu.dimension_semantics<parallel>], iteration_bounds = array<i64: 2>, scalar_prefetch = 0 : i64, scratch_operands = 0 : i64, tpu.core_type = #tpu.core_type<tc>, window_params = [{transform_indices = @transform_0, window_bounds = array<i64: 1, 8, 37>}, {pipeline_mode = #tpu.pipeline_mode<synchronous>, transform_indices = @transform_1, window_bounds = array<i64: 37, 768>}, {pipeline_mode = #tpu.pipeline_mode<synchronous>, transform_indices = @transform_2, window_bounds = array<i64: 26, 144>}, {transform_indices = @transform_3, window_bounds = array<i64: 1, 32, 256>}, {transform_indices = @transform_4, window_bounds = array<i64: 1, 32, 64>}, {transform_indices = @transform_5, window_bounds = array<i64: 1, 4, 8, 144>}]} {
    %c0 = arith.constant 0 : index
    %c0_0 = arith.constant 0 : index
    %c0_1 = arith.constant 0 : index
    %0 = vector.load %arg1[%c0, %c0_0, %c0_1] : memref<1x8x37xf32, #tpu.memory_space<vmem>>, vector<1x8x37xf32>
    %1 = vector.shape_cast %0 : vector<1x8x37xf32> to vector<8x37xf32>
    %c0_2 = arith.constant 0 : index
    %c0_3 = arith.constant 0 : index
    %2 = vector.load %arg2[%c0_2, %c0_3] : memref<37x768xf32, #tpu.memory_space<vmem>>, vector<37x768xf32>
    %cst = arith.constant dense<0.000000e+00> : vector<8x768xf32>
    %3 = tpu.matmul %1, %2, %cst {dimension_numbers = #tpu.dot_dimension_numbers<[1], [0], [0], [1], [0, 0, 1, 1], [], []>} : vector<8x37xf32>, vector<37x768xf32>, vector<8x768xf32> -> vector<8x768xf32>
    %4 = vector.extract_strided_slice %3 {offsets = [0, 0], sizes = [8, 72], strides = [1, 1]} : vector<8x768xf32> to vector<8x72xf32>
    %5 = vector.extract_strided_slice %3 {offsets = [0, 128], sizes = [8, 72], strides = [1, 1]} : vector<8x768xf32> to vector<8x72xf32>
    %6 = vector.extract_strided_slice %3 {offsets = [0, 256], sizes = [8, 72], strides = [1, 1]} : vector<8x768xf32> to vector<8x72xf32>
    %7 = vector.extract_strided_slice %3 {offsets = [0, 384], sizes = [8, 72], strides = [1, 1]} : vector<8x768xf32> to vector<8x72xf32>
    %8 = vector.extract_strided_slice %3 {offsets = [0, 512], sizes = [8, 72], strides = [1, 1]} : vector<8x768xf32> to vector<8x72xf32>
    %9 = vector.extract_strided_slice %3 {offsets = [0, 640], sizes = [8, 72], strides = [1, 1]} : vector<8x768xf32> to vector<8x72xf32>
    %10 = vector.extract_strided_slice %1 {offsets = [0, 0], sizes = [8, 1], strides = [1, 1]} : vector<8x37xf32> to vector<8x1xf32>
    %11 = vector.extract_strided_slice %1 {offsets = [0, 1], sizes = [8, 1], strides = [1, 1]} : vector<8x37xf32> to vector<8x1xf32>
    %12 = vector.extract_strided_slice %1 {offsets = [0, 2], sizes = [8, 1], strides = [1, 1]} : vector<8x37xf32> to vector<8x1xf32>
    %13 = vector.extract_strided_slice %1 {offsets = [0, 3], sizes = [8, 1], strides = [1, 1]} : vector<8x37xf32> to vector<8x1xf32>
    %cst_4 = arith.constant 5.000000e-01 : f32
    %14 = vector.broadcast %cst_4 : f32 to vector<8x1xf32>
    %15 = arith.mulf %14, %13 : vector<8x1xf32>
    %16 = arith.subf %12, %15 : vector<8x1xf32>
    %cst_5 = arith.constant 0.693147182 : f32
    %17 = vector.broadcast %cst_5 : f32 to vector<8x1xf32>
    %18 = arith.mulf %17, %16 : vector<8x1xf32>
    %19 = math.exp %18 : vector<8x1xf32>
    %cst_6 = arith.constant 5.000000e-01 : f32
    %20 = vector.broadcast %cst_6 : f32 to vector<8x1xf32>
    %21 = arith.mulf %20, %13 : vector<8x1xf32>
    %22 = arith.addf %12, %21 : vector<8x1xf32>
    %cst_7 = arith.constant 0.693147182 : f32
    %23 = vector.broadcast %cst_7 : f32 to vector<8x1xf32>
    %24 = arith.mulf %23, %22 : vector<8x1xf32>
    %25 = math.exp %24 : vector<8x1xf32>
    %cst_8 = arith.constant 0.693147182 : f32
    %26 = vector.broadcast %cst_8 : f32 to vector<8x72xf32>
    %27 = arith.mulf %26, %6 : vector<8x72xf32>
    %28 = math.exp %27 : vector<8x72xf32>
    %29 = arith.mulf %28, %7 : vector<8x72xf32>
    %30 = arith.addf %4, %29 : vector<8x72xf32>
    %31 = vector.broadcast %19 : vector<8x1xf32> to vector<8x72xf32>
    %32 = arith.mulf %31, %30 : vector<8x72xf32>
    %33 = arith.mulf %28, %8 : vector<8x72xf32>
    %34 = arith.addf %5, %33 : vector<8x72xf32>
    %35 = vector.broadcast %25 : vector<8x1xf32> to vector<8x72xf32>
    %36 = arith.mulf %35, %34 : vector<8x72xf32>
    %37 = vector.broadcast %12 : vector<8x1xf32> to vector<8x72xf32>
    %38 = arith.addf %37, %6 : vector<8x72xf32>
    %39 = arith.addf %38, %9 : vector<8x72xf32>
    %cst_9 = arith.constant 3.000000e+00 : f32
    %40 = vector.broadcast %cst_9 : f32 to vector<8x72xf32>
    %41 = arith.subf %39, %40 : vector<8x72xf32>
    %cst_10 = arith.constant 0.000000e+00 : f32
    %42 = vector.broadcast %cst_10 : f32 to vector<8x72xf32>
    %43 = arith.subf %41, %42 : vector<8x72xf32>
    %44 = arith.mulf %43, %43 : vector<8x72xf32>
    %cst_11 = arith.constant 0.000000e+00 : f32
    %45 = vector.broadcast %cst_11 : f32 to vector<8x72xf32>
    %46 = arith.subf %45, %44 : vector<8x72xf32>
    %cst_12 = arith.constant 5.000000e-01 : f32
    %47 = vector.broadcast %cst_12 : f32 to vector<8x72xf32>
    %48 = arith.mulf %46, %47 : vector<8x72xf32>
    %cst_13 = arith.constant 1.000000e+00 : f32
    %49 = vector.broadcast %cst_13 : f32 to vector<8x72xf32>
    %50 = arith.subf %41, %49 : vector<8x72xf32>
    %51 = arith.mulf %50, %50 : vector<8x72xf32>
    %cst_14 = arith.constant 0.000000e+00 : f32
    %52 = vector.broadcast %cst_14 : f32 to vector<8x72xf32>
    %53 = arith.subf %52, %51 : vector<8x72xf32>
    %cst_15 = arith.constant 5.000000e-01 : f32
    %54 = vector.broadcast %cst_15 : f32 to vector<8x72xf32>
    %55 = arith.mulf %53, %54 : vector<8x72xf32>
    %56 = arith.maximumf %48, %55 : vector<8x72xf32>
    %57 = arith.subf %48, %56 : vector<8x72xf32>
    %58 = math.exp %57 : vector<8x72xf32>
    %59 = arith.subf %55, %56 : vector<8x72xf32>
    %60 = math.exp %59 : vector<8x72xf32>
    %61 = arith.addf %58, %60 : vector<8x72xf32>
    %cst_16 = arith.constant 1.000000e+00 : f32
    %62 = vector.broadcast %cst_16 : f32 to vector<8x72xf32>
    %63 = arith.divf %62, %61 : vector<8x72xf32>
    %64 = arith.mulf %58, %63 : vector<8x72xf32>
    %65 = arith.mulf %60, %63 : vector<8x72xf32>
    %c0_17 = arith.constant 0 : index
    %c0_18 = arith.constant 0 : index
    %66 = vector.load %arg3[%c0_17, %c0_18] : memref<26x144xf32, #tpu.memory_space<vmem>>, vector<8x144xf32>
    %c8 = arith.constant 8 : index
    %c0_19 = arith.constant 0 : index
    %67 = vector.load %arg3[%c8, %c0_19] : memref<26x144xf32, #tpu.memory_space<vmem>>, vector<18x144xf32>
    %68 = vector.broadcast %10 : vector<8x1xf32> to vector<8x144xf32>
    %69 = arith.mulf %68, %66 : vector<8x144xf32>
    %cst_20 = arith.constant dense<0.000000e+00> : vector<144xf32>
    %70 = vector.multi_reduction <add>, %69, %cst_20 [0] : vector<8x144xf32> to vector<144xf32>
    %71 = vector.shape_cast %70 : vector<144xf32> to vector<1x144xf32>
    %72 = vector.broadcast %11 : vector<8x1xf32> to vector<8x144xf32>
    %73 = arith.mulf %72, %66 : vector<8x144xf32>
    %cst_21 = arith.constant dense<0.000000e+00> : vector<144xf32>
    %74 = vector.multi_reduction <add>, %73, %cst_21 [0] : vector<8x144xf32> to vector<144xf32>
    %75 = vector.shape_cast %74 : vector<144xf32> to vector<1x144xf32>
    %76 = tpu.iota {dimensions = array<i32: 0>} : vector<16x144xi32>
    %77 = arith.sitofp %76 : vector<16x144xi32> to vector<16x144xf32>
    %78 = tpu.iota {dimensions = array<i32: 0>} : vector<16x144xi32>
    %79 = arith.sitofp %78 : vector<16x144xi32> to vector<16x144xf32>
    %80 = tpu.iota {dimensions = array<i32: 0>} : vector<8x144xi32>
    %81 = arith.sitofp %80 : vector<8x144xi32> to vector<8x144xf32>
    %82 = tpu.iota {dimensions = array<i32: 0>} : vector<8x144xi32>
    %83 = arith.sitofp %82 : vector<8x144xi32> to vector<8x144xf32>
    %84 = vector.extract_strided_slice %32 {offsets = [0, 0], sizes = [8, 18], strides = [1, 1]} : vector<8x72xf32> to vector<8x18xf32>
    %cst_22 = arith.constant dense<0.000000e+00> : vector<8x144xf32>
    %85 = tpu.matmul %84, %67, %cst_22 {dimension_numbers = #tpu.dot_dimension_numbers<[1], [0], [0], [1], [0, 0, 1, 1], [], []>} : vector<8x18xf32>, vector<18x144xf32>, vector<8x144xf32> -> vector<8x144xf32>
    %86 = arith.mulf %85, %66 : vector<8x144xf32>
    %cst_23 = arith.constant dense<0.000000e+00> : vector<144xf32>
    %87 = vector.multi_reduction <add>, %86, %cst_23 [0] : vector<8x144xf32> to vector<144xf32>
    %88 = vector.shape_cast %87 : vector<144xf32> to vector<1x144xf32>
    %89 = arith.addf %88, %71 : vector<1x144xf32>
    %90 = vector.extract_strided_slice %36 {offsets = [0, 0], sizes = [8, 18], strides = [1, 1]} : vector<8x72xf32> to vector<8x18xf32>
    %cst_24 = arith.constant dense<0.000000e+00> : vector<8x144xf32>
    %91 = tpu.matmul %90, %67, %cst_24 {dimension_numbers = #tpu.dot_dimension_numbers<[1], [0], [0], [1], [0, 0, 1, 1], [], []>} : vector<8x18xf32>, vector<18x144xf32>, vector<8x144xf32> -> vector<8x144xf32>
    %92 = arith.mulf %91, %66 : vector<8x144xf32>
    %cst_25 = arith.constant dense<0.000000e+00> : vector<144xf32>
    %93 = vector.multi_reduction <add>, %92, %cst_25 [0] : vector<8x144xf32> to vector<144xf32>
    %94 = vector.shape_cast %93 : vector<144xf32> to vector<1x144xf32>
    %95 = arith.addf %94, %75 : vector<1x144xf32>
    %96 = vector.extract_strided_slice %64 {offsets = [0, 0], sizes = [8, 18], strides = [1, 1]} : vector<8x72xf32> to vector<8x18xf32>
    %cst_26 = arith.constant dense<0.000000e+00> : vector<8x144xf32>
    %97 = tpu.matmul %96, %67, %cst_26 {dimension_numbers = #tpu.dot_dimension_numbers<[1], [0], [0], [1], [0, 0, 1, 1], [], []>} : vector<8x18xf32>, vector<18x144xf32>, vector<8x144xf32> -> vector<8x144xf32>
    %98 = arith.mulf %97, %66 : vector<8x144xf32>
    %cst_27 = arith.constant dense<0.000000e+00> : vector<144xf32>
    %99 = vector.multi_reduction <add>, %98, %cst_27 [0] : vector<8x144xf32> to vector<144xf32>
    %100 = vector.shape_cast %99 : vector<144xf32> to vector<1x144xf32>
    %101 = vector.extract_strided_slice %65 {offsets = [0, 0], sizes = [8, 18], strides = [1, 1]} : vector<8x72xf32> to vector<8x18xf32>
    %cst_28 = arith.constant dense<0.000000e+00> : vector<8x144xf32>
    %102 = tpu.matmul %101, %67, %cst_28 {dimension_numbers = #tpu.dot_dimension_numbers<[1], [0], [0], [1], [0, 0, 1, 1], [], []>} : vector<8x18xf32>, vector<18x144xf32>, vector<8x144xf32> -> vector<8x144xf32>
    %103 = arith.mulf %102, %66 : vector<8x144xf32>
    %cst_29 = arith.constant dense<0.000000e+00> : vector<144xf32>
    %104 = vector.multi_reduction <add>, %103, %cst_29 [0] : vector<8x144xf32> to vector<144xf32>
    %105 = vector.shape_cast %104 : vector<144xf32> to vector<1x144xf32>
    %cst_30 = arith.constant 1.250000e-01 : f32
    %106 = vector.broadcast %cst_30 : f32 to vector<1x144xf32>
    %107 = arith.mulf %89, %106 : vector<1x144xf32>
    %cst_31 = arith.constant 5.000000e-01 : f32
    %108 = vector.broadcast %cst_31 : f32 to vector<1x144xf32>
    %109 = arith.subf %107, %108 : vector<1x144xf32>
    %cst_32 = arith.constant 1.250000e-01 : f32
    %110 = vector.broadcast %cst_32 : f32 to vector<1x144xf32>
    %111 = arith.mulf %95, %110 : vector<1x144xf32>
    %cst_33 = arith.constant 5.000000e-01 : f32
    %112 = vector.broadcast %cst_33 : f32 to vector<1x144xf32>
    %113 = arith.subf %111, %112 : vector<1x144xf32>
    %114 = vector.broadcast %109 : vector<1x144xf32> to vector<16x144xf32>
    %115 = arith.subf %77, %114 : vector<16x144xf32>
    %116 = math.absf %115 : vector<16x144xf32>
    %cst_34 = arith.constant 1.000000e+00 : f32
    %117 = vector.broadcast %cst_34 : f32 to vector<16x144xf32>
    %118 = arith.subf %117, %116 : vector<16x144xf32>
    %cst_35 = arith.constant 0.000000e+00 : f32
    %119 = vector.broadcast %cst_35 : f32 to vector<16x144xf32>
    %120 = arith.maximumf %118, %119 : vector<16x144xf32>
    %121 = vector.broadcast %113 : vector<1x144xf32> to vector<16x144xf32>
    %122 = arith.subf %79, %121 : vector<16x144xf32>
    %123 = math.absf %122 : vector<16x144xf32>
    %cst_36 = arith.constant 1.000000e+00 : f32
    %124 = vector.broadcast %cst_36 : f32 to vector<16x144xf32>
    %125 = arith.subf %124, %123 : vector<16x144xf32>
    %cst_37 = arith.constant 0.000000e+00 : f32
    %126 = vector.broadcast %cst_37 : f32 to vector<16x144xf32>
    %127 = arith.maximumf %125, %126 : vector<16x144xf32>
    %128 = vector.broadcast %100 : vector<1x144xf32> to vector<16x144xf32>
    %129 = arith.mulf %127, %128 : vector<16x144xf32>
    %130 = vector.shape_cast %129 : vector<16x144xf32> to vector<16x1x144xf32>
    %131 = vector.shape_cast %120 : vector<16x144xf32> to vector<1x16x144xf32>
    %132 = vector.broadcast %130 : vector<16x1x144xf32> to vector<16x16x144xf32>
    %133 = vector.broadcast %131 : vector<1x16x144xf32> to vector<16x16x144xf32>
    %134 = arith.mulf %132, %133 : vector<16x16x144xf32>
    %135 = vector.shape_cast %134 : vector<16x16x144xf32> to vector<256x144xf32>
    %c0_38 = arith.constant 0 : index
    %c0_39 = arith.constant 0 : index
    %c0_40 = arith.constant 0 : index
    %136 = vector.load %arg4[%c0_38, %c0_39, %c0_40] : memref<1x32x256xf32, #tpu.memory_space<vmem>>, vector<1x8x256xf32>
    %137 = vector.shape_cast %136 : vector<1x8x256xf32> to vector<8x256xf32>
    %cst_41 = arith.constant dense<0.000000e+00> : vector<8x144xf32>
    %138 = tpu.matmul %137, %135, %cst_41 {dimension_numbers = #tpu.dot_dimension_numbers<[1], [0], [0], [1], [0, 0, 1, 1], [], []>} : vector<8x256xf32>, vector<256x144xf32>, vector<8x144xf32> -> vector<8x144xf32>
    %cst_42 = arith.constant 6.250000e-02 : f32
    %139 = vector.broadcast %cst_42 : f32 to vector<1x144xf32>
    %140 = arith.mulf %89, %139 : vector<1x144xf32>
    %cst_43 = arith.constant 5.000000e-01 : f32
    %141 = vector.broadcast %cst_43 : f32 to vector<1x144xf32>
    %142 = arith.subf %140, %141 : vector<1x144xf32>
    %cst_44 = arith.constant 6.250000e-02 : f32
    %143 = vector.broadcast %cst_44 : f32 to vector<1x144xf32>
    %144 = arith.mulf %95, %143 : vector<1x144xf32>
    %cst_45 = arith.constant 5.000000e-01 : f32
    %145 = vector.broadcast %cst_45 : f32 to vector<1x144xf32>
    %146 = arith.subf %144, %145 : vector<1x144xf32>
    %147 = vector.broadcast %142 : vector<1x144xf32> to vector<8x144xf32>
    %148 = arith.subf %81, %147 : vector<8x144xf32>
    %149 = math.absf %148 : vector<8x144xf32>
    %cst_46 = arith.constant 1.000000e+00 : f32
    %150 = vector.broadcast %cst_46 : f32 to vector<8x144xf32>
    %151 = arith.subf %150, %149 : vector<8x144xf32>
    %cst_47 = arith.constant 0.000000e+00 : f32
    %152 = vector.broadcast %cst_47 : f32 to vector<8x144xf32>
    %153 = arith.maximumf %151, %152 : vector<8x144xf32>
    %154 = vector.broadcast %146 : vector<1x144xf32> to vector<8x144xf32>
    %155 = arith.subf %83, %154 : vector<8x144xf32>
    %156 = math.absf %155 : vector<8x144xf32>
    %cst_48 = arith.constant 1.000000e+00 : f32
    %157 = vector.broadcast %cst_48 : f32 to vector<8x144xf32>
    %158 = arith.subf %157, %156 : vector<8x144xf32>
    %cst_49 = arith.constant 0.000000e+00 : f32
    %159 = vector.broadcast %cst_49 : f32 to vector<8x144xf32>
    %160 = arith.maximumf %158, %159 : vector<8x144xf32>
    %161 = vector.broadcast %105 : vector<1x144xf32> to vector<8x144xf32>
    %162 = arith.mulf %160, %161 : vector<8x144xf32>
    %163 = vector.shape_cast %162 : vector<8x144xf32> to vector<8x1x144xf32>
    %164 = vector.shape_cast %153 : vector<8x144xf32> to vector<1x8x144xf32>
    %165 = vector.broadcast %163 : vector<8x1x144xf32> to vector<8x8x144xf32>
    %166 = vector.broadcast %164 : vector<1x8x144xf32> to vector<8x8x144xf32>
    %167 = arith.mulf %165, %166 : vector<8x8x144xf32>
    %168 = vector.shape_cast %167 : vector<8x8x144xf32> to vector<64x144xf32>
    %c0_50 = arith.constant 0 : index
    %c0_51 = arith.constant 0 : index
    %c0_52 = arith.constant 0 : index
    %169 = vector.load %arg5[%c0_50, %c0_51, %c0_52] : memref<1x32x64xf32, #tpu.memory_space<vmem>>, vector<1x8x64xf32>
    %170 = vector.shape_cast %169 : vector<1x8x64xf32> to vector<8x64xf32>
    %cst_53 = arith.constant dense<0.000000e+00> : vector<8x144xf32>
    %171 = tpu.matmul %170, %168, %cst_53 {dimension_numbers = #tpu.dot_dimension_numbers<[1], [0], [0], [1], [0, 0, 1, 1], [], []>} : vector<8x64xf32>, vector<64x144xf32>, vector<8x144xf32> -> vector<8x144xf32>
    %172 = arith.addf %138, %171 : vector<8x144xf32>
    %c0_54 = arith.constant 0 : index
    %c0_55 = arith.constant 0 : index
    %c0_56 = arith.constant 0 : index
    %c0_57 = arith.constant 0 : index
    %173 = vector.load %arg6[%c0_54, %c0_55, %c0_56, %c0_57] : memref<1x4x8x144xf32, #tpu.memory_space<vmem>>, vector<1x1x8x144xf32>
    %174 = vector.shape_cast %173 : vector<1x1x8x144xf32> to vector<8x144xf32>
    %175 = vector.shape_cast %172 : vector<8x144xf32> to vector<1x1x8x144xf32>
    tpu.vector_store %arg6[%c0_54, %c0_55, %c0_56, %c0_57], %175 {strides = array<i32>} : memref<1x4x8x144xf32, #tpu.memory_space<vmem>>, vector<1x1x8x144xf32>,
    %176 = vector.extract_strided_slice %32 {offsets = [0, 18], sizes = [8, 18], strides = [1, 1]} : vector<8x72xf32> to vector<8x18xf32>
    %cst_58 = arith.constant dense<0.000000e+00> : vector<8x144xf32>
    %177 = tpu.matmul %176, %67, %cst_58 {dimension_numbers = #tpu.dot_dimension_numbers<[1], [0], [0], [1], [0, 0, 1, 1], [], []>} : vector<8x18xf32>, vector<18x144xf32>, vector<8x144xf32> -> vector<8x144xf32>
    %178 = arith.mulf %177, %66 : vector<8x144xf32>
    %cst_59 = arith.constant dense<0.000000e+00> : vector<144xf32>
    %179 = vector.multi_reduction <add>, %178, %cst_59 [0] : vector<8x144xf32> to vector<144xf32>
    %180 = vector.shape_cast %179 : vector<144xf32> to vector<1x144xf32>
    %181 = arith.addf %180, %71 : vector<1x144xf32>
    %182 = vector.extract_strided_slice %36 {offsets = [0, 18], sizes = [8, 18], strides = [1, 1]} : vector<8x72xf32> to vector<8x18xf32>
    %cst_60 = arith.constant dense<0.000000e+00> : vector<8x144xf32>
    %183 = tpu.matmul %182, %67, %cst_60 {dimension_numbers = #tpu.dot_dimension_numbers<[1], [0], [0], [1], [0, 0, 1, 1], [], []>} : vector<8x18xf32>, vector<18x144xf32>, vector<8x144xf32> -> vector<8x144xf32>
    %184 = arith.mulf %183, %66 : vector<8x144xf32>
    %cst_61 = arith.constant dense<0.000000e+00> : vector<144xf32>
    %185 = vector.multi_reduction <add>, %184, %cst_61 [0] : vector<8x144xf32> to vector<144xf32>
    %186 = vector.shape_cast %185 : vector<144xf32> to vector<1x144xf32>
    %187 = arith.addf %186, %75 : vector<1x144xf32>
    %188 = vector.extract_strided_slice %64 {offsets = [0, 18], sizes = [8, 18], strides = [1, 1]} : vector<8x72xf32> to vector<8x18xf32>
    %cst_62 = arith.constant dense<0.000000e+00> : vector<8x144xf32>
    %189 = tpu.matmul %188, %67, %cst_62 {dimension_numbers = #tpu.dot_dimension_numbers<[1], [0], [0], [1], [0, 0, 1, 1], [], []>} : vector<8x18xf32>, vector<18x144xf32>, vector<8x144xf32> -> vector<8x144xf32>
    %190 = arith.mulf %189, %66 : vector<8x144xf32>
    %cst_63 = arith.constant dense<0.000000e+00> : vector<144xf32>
    %191 = vector.multi_reduction <add>, %190, %cst_63 [0] : vector<8x144xf32> to vector<144xf32>
    %192 = vector.shape_cast %191 : vector<144xf32> to vector<1x144xf32>
    %193 = vector.extract_strided_slice %65 {offsets = [0, 18], sizes = [8, 18], strides = [1, 1]} : vector<8x72xf32> to vector<8x18xf32>
    %cst_64 = arith.constant dense<0.000000e+00> : vector<8x144xf32>
    %194 = tpu.matmul %193, %67, %cst_64 {dimension_numbers = #tpu.dot_dimension_numbers<[1], [0], [0], [1], [0, 0, 1, 1], [], []>} : vector<8x18xf32>, vector<18x144xf32>, vector<8x144xf32> -> vector<8x144xf32>
    %195 = arith.mulf %194, %66 : vector<8x144xf32>
    %cst_65 = arith.constant dense<0.000000e+00> : vector<144xf32>
    %196 = vector.multi_reduction <add>, %195, %cst_65 [0] : vector<8x144xf32> to vector<144xf32>
    %197 = vector.shape_cast %196 : vector<144xf32> to vector<1x144xf32>
    %cst_66 = arith.constant 1.250000e-01 : f32
    %198 = vector.broadcast %cst_66 : f32 to vector<1x144xf32>
    %199 = arith.mulf %181, %198 : vector<1x144xf32>
    %cst_67 = arith.constant 5.000000e-01 : f32
    %200 = vector.broadcast %cst_67 : f32 to vector<1x144xf32>
    %201 = arith.subf %199, %200 : vector<1x144xf32>
    %cst_68 = arith.constant 1.250000e-01 : f32
    %202 = vector.broadcast %cst_68 : f32 to vector<1x144xf32>
    %203 = arith.mulf %187, %202 : vector<1x144xf32>
    %cst_69 = arith.constant 5.000000e-01 : f32
    %204 = vector.broadcast %cst_69 : f32 to vector<1x144xf32>
    %205 = arith.subf %203, %204 : vector<1x144xf32>
    %206 = vector.broadcast %201 : vector<1x144xf32> to vector<16x144xf32>
    %207 = arith.subf %77, %206 : vector<16x144xf32>
    %208 = math.absf %207 : vector<16x144xf32>
    %cst_70 = arith.constant 1.000000e+00 : f32
    %209 = vector.broadcast %cst_70 : f32 to vector<16x144xf32>
    %210 = arith.subf %209, %208 : vector<16x144xf32>
    %cst_71 = arith.constant 0.000000e+00 : f32
    %211 = vector.broadcast %cst_71 : f32 to vector<16x144xf32>
    %212 = arith.maximumf %210, %211 : vector<16x144xf32>
    %213 = vector.broadcast %205 : vector<1x144xf32> to vector<16x144xf32>
    %214 = arith.subf %79, %213 : vector<16x144xf32>
    %215 = math.absf %214 : vector<16x144xf32>
    %cst_72 = arith.constant 1.000000e+00 : f32
    %216 = vector.broadcast %cst_72 : f32 to vector<16x144xf32>
    %217 = arith.subf %216, %215 : vector<16x144xf32>
    %cst_73 = arith.constant 0.000000e+00 : f32
    %218 = vector.broadcast %cst_73 : f32 to vector<16x144xf32>
    %219 = arith.maximumf %217, %218 : vector<16x144xf32>
    %220 = vector.broadcast %192 : vector<1x144xf32> to vector<16x144xf32>
    %221 = arith.mulf %219, %220 : vector<16x144xf32>
    %222 = vector.shape_cast %221 : vector<16x144xf32> to vector<16x1x144xf32>
    %223 = vector.shape_cast %212 : vector<16x144xf32> to vector<1x16x144xf32>
    %224 = vector.broadcast %222 : vector<16x1x144xf32> to vector<16x16x144xf32>
    %225 = vector.broadcast %223 : vector<1x16x144xf32> to vector<16x16x144xf32>
    %226 = arith.mulf %224, %225 : vector<16x16x144xf32>
    %227 = vector.shape_cast %226 : vector<16x16x144xf32> to vector<256x144xf32>
    %c0_74 = arith.constant 0 : index
    %c8_75 = arith.constant 8 : index
    %c0_76 = arith.constant 0 : index
    %228 = vector.load %arg4[%c0_74, %c8_75, %c0_76] : memref<1x32x256xf32, #tpu.memory_space<vmem>>, vector<1x8x256xf32>
    %229 = vector.shape_cast %228 : vector<1x8x256xf32> to vector<8x256xf32>
    %cst_77 = arith.constant dense<0.000000e+00> : vector<8x144xf32>
    %230 = tpu.matmul %229, %227, %cst_77 {dimension_numbers = #tpu.dot_dimension_numbers<[1], [0], [0], [1], [0, 0, 1, 1], [], []>} : vector<8x256xf32>, vector<256x144xf32>, vector<8x144xf32> -> vector<8x144xf32>
    %cst_78 = arith.constant 6.250000e-02 : f32
    %231 = vector.broadcast %cst_78 : f32 to vector<1x144xf32>
    %232 = arith.mulf %181, %231 : vector<1x144xf32>
    %cst_79 = arith.constant 5.000000e-01 : f32
    %233 = vector.broadcast %cst_79 : f32 to vector<1x144xf32>
    %234 = arith.subf %232, %233 : vector<1x144xf32>
    %cst_80 = arith.constant 6.250000e-02 : f32
    %235 = vector.broadcast %cst_80 : f32 to vector<1x144xf32>
    %236 = arith.mulf %187, %235 : vector<1x144xf32>
    %cst_81 = arith.constant 5.000000e-01 : f32
    %237 = vector.broadcast %cst_81 : f32 to vector<1x144xf32>
    %238 = arith.subf %236, %237 : vector<1x144xf32>
    %239 = vector.broadcast %234 : vector<1x144xf32> to vector<8x144xf32>
    %240 = arith.subf %81, %239 : vector<8x144xf32>
    %241 = math.absf %240 : vector<8x144xf32>
    %cst_82 = arith.constant 1.000000e+00 : f32
    %242 = vector.broadcast %cst_82 : f32 to vector<8x144xf32>
    %243 = arith.subf %242, %241 : vector<8x144xf32>
    %cst_83 = arith.constant 0.000000e+00 : f32
    %244 = vector.broadcast %cst_83 : f32 to vector<8x144xf32>
    %245 = arith.maximumf %243, %244 : vector<8x144xf32>
    %246 = vector.broadcast %238 : vector<1x144xf32> to vector<8x144xf32>
    %247 = arith.subf %83, %246 : vector<8x144xf32>
    %248 = math.absf %247 : vector<8x144xf32>
    %cst_84 = arith.constant 1.000000e+00 : f32
    %249 = vector.broadcast %cst_84 : f32 to vector<8x144xf32>
    %250 = arith.subf %249, %248 : vector<8x144xf32>
    %cst_85 = arith.constant 0.000000e+00 : f32
    %251 = vector.broadcast %cst_85 : f32 to vector<8x144xf32>
    %252 = arith.maximumf %250, %251 : vector<8x144xf32>
    %253 = vector.broadcast %197 : vector<1x144xf32> to vector<8x144xf32>
    %254 = arith.mulf %252, %253 : vector<8x144xf32>
    %255 = vector.shape_cast %254 : vector<8x144xf32> to vector<8x1x144xf32>
    %256 = vector.shape_cast %245 : vector<8x144xf32> to vector<1x8x144xf32>
    %257 = vector.broadcast %255 : vector<8x1x144xf32> to vector<8x8x144xf32>
    %258 = vector.broadcast %256 : vector<1x8x144xf32> to vector<8x8x144xf32>
    %259 = arith.mulf %257, %258 : vector<8x8x144xf32>
    %260 = vector.shape_cast %259 : vector<8x8x144xf32> to vector<64x144xf32>
    %c0_86 = arith.constant 0 : index
    %c8_87 = arith.constant 8 : index
    %c0_88 = arith.constant 0 : index
    %261 = vector.load %arg5[%c0_86, %c8_87, %c0_88] : memref<1x32x64xf32, #tpu.memory_space<vmem>>, vector<1x8x64xf32>
    %262 = vector.shape_cast %261 : vector<1x8x64xf32> to vector<8x64xf32>
    %cst_89 = arith.constant dense<0.000000e+00> : vector<8x144xf32>
    %263 = tpu.matmul %262, %260, %cst_89 {dimension_numbers = #tpu.dot_dimension_numbers<[1], [0], [0], [1], [0, 0, 1, 1], [], []>} : vector<8x64xf32>, vector<64x144xf32>, vector<8x144xf32> -> vector<8x144xf32>
    %264 = arith.addf %230, %263 : vector<8x144xf32>
    %c0_90 = arith.constant 0 : index
    %c1 = arith.constant 1 : index
    %c0_91 = arith.constant 0 : index
    %c0_92 = arith.constant 0 : index
    %265 = vector.load %arg6[%c0_90, %c1, %c0_91, %c0_92] : memref<1x4x8x144xf32, #tpu.memory_space<vmem>>, vector<1x1x8x144xf32>
    %266 = vector.shape_cast %265 : vector<1x1x8x144xf32> to vector<8x144xf32>
    %267 = vector.shape_cast %264 : vector<8x144xf32> to vector<1x1x8x144xf32>
    tpu.vector_store %arg6[%c0_90, %c1, %c0_91, %c0_92], %267 {strides = array<i32>} : memref<1x4x8x144xf32, #tpu.memory_space<vmem>>, vector<1x1x8x144xf32>,
    %268 = vector.extract_strided_slice %32 {offsets = [0, 36], sizes = [8, 18], strides = [1, 1]} : vector<8x72xf32> to vector<8x18xf32>
    %cst_93 = arith.constant dense<0.000000e+00> : vector<8x144xf32>
    %269 = tpu.matmul %268, %67, %cst_93 {dimension_numbers = #tpu.dot_dimension_numbers<[1], [0], [0], [1], [0, 0, 1, 1], [], []>} : vector<8x18xf32>, vector<18x144xf32>, vector<8x144xf32> -> vector<8x144xf32>
    %270 = arith.mulf %269, %66 : vector<8x144xf32>
    %cst_94 = arith.constant dense<0.000000e+00> : vector<144xf32>
    %271 = vector.multi_reduction <add>, %270, %cst_94 [0] : vector<8x144xf32> to vector<144xf32>
    %272 = vector.shape_cast %271 : vector<144xf32> to vector<1x144xf32>
    %273 = arith.addf %272, %71 : vector<1x144xf32>
    %274 = vector.extract_strided_slice %36 {offsets = [0, 36], sizes = [8, 18], strides = [1, 1]} : vector<8x72xf32> to vector<8x18xf32>
    %cst_95 = arith.constant dense<0.000000e+00> : vector<8x144xf32>
    %275 = tpu.matmul %274, %67, %cst_95 {dimension_numbers = #tpu.dot_dimension_numbers<[1], [0], [0], [1], [0, 0, 1, 1], [], []>} : vector<8x18xf32>, vector<18x144xf32>, vector<8x144xf32> -> vector<8x144xf32>
    %276 = arith.mulf %275, %66 : vector<8x144xf32>
    %cst_96 = arith.constant dense<0.000000e+00> : vector<144xf32>
    %277 = vector.multi_reduction <add>, %276, %cst_96 [0] : vector<8x144xf32> to vector<144xf32>
    %278 = vector.shape_cast %277 : vector<144xf32> to vector<1x144xf32>
    %279 = arith.addf %278, %75 : vector<1x144xf32>
    %280 = vector.extract_strided_slice %64 {offsets = [0, 36], sizes = [8, 18], strides = [1, 1]} : vector<8x72xf32> to vector<8x18xf32>
    %cst_97 = arith.constant dense<0.000000e+00> : vector<8x144xf32>
    %281 = tpu.matmul %280, %67, %cst_97 {dimension_numbers = #tpu.dot_dimension_numbers<[1], [0], [0], [1], [0, 0, 1, 1], [], []>} : vector<8x18xf32>, vector<18x144xf32>, vector<8x144xf32> -> vector<8x144xf32>
    %282 = arith.mulf %281, %66 : vector<8x144xf32>
    %cst_98 = arith.constant dense<0.000000e+00> : vector<144xf32>
    %283 = vector.multi_reduction <add>, %282, %cst_98 [0] : vector<8x144xf32> to vector<144xf32>
    %284 = vector.shape_cast %283 : vector<144xf32> to vector<1x144xf32>
    %285 = vector.extract_strided_slice %65 {offsets = [0, 36], sizes = [8, 18], strides = [1, 1]} : vector<8x72xf32> to vector<8x18xf32>
    %cst_99 = arith.constant dense<0.000000e+00> : vector<8x144xf32>
    %286 = tpu.matmul %285, %67, %cst_99 {dimension_numbers = #tpu.dot_dimension_numbers<[1], [0], [0], [1], [0, 0, 1, 1], [], []>} : vector<8x18xf32>, vector<18x144xf32>, vector<8x144xf32> -> vector<8x144xf32>
    %287 = arith.mulf %286, %66 : vector<8x144xf32>
    %cst_100 = arith.constant dense<0.000000e+00> : vector<144xf32>
    %288 = vector.multi_reduction <add>, %287, %cst_100 [0] : vector<8x144xf32> to vector<144xf32>
    %289 = vector.shape_cast %288 : vector<144xf32> to vector<1x144xf32>
    %cst_101 = arith.constant 1.250000e-01 : f32
    %290 = vector.broadcast %cst_101 : f32 to vector<1x144xf32>
    %291 = arith.mulf %273, %290 : vector<1x144xf32>
    %cst_102 = arith.constant 5.000000e-01 : f32
    %292 = vector.broadcast %cst_102 : f32 to vector<1x144xf32>
    %293 = arith.subf %291, %292 : vector<1x144xf32>
    %cst_103 = arith.constant 1.250000e-01 : f32
    %294 = vector.broadcast %cst_103 : f32 to vector<1x144xf32>
    %295 = arith.mulf %279, %294 : vector<1x144xf32>
    %cst_104 = arith.constant 5.000000e-01 : f32
    %296 = vector.broadcast %cst_104 : f32 to vector<1x144xf32>
    %297 = arith.subf %295, %296 : vector<1x144xf32>
    %298 = vector.broadcast %293 : vector<1x144xf32> to vector<16x144xf32>
    %299 = arith.subf %77, %298 : vector<16x144xf32>
    %300 = math.absf %299 : vector<16x144xf32>
    %cst_105 = arith.constant 1.000000e+00 : f32
    %301 = vector.broadcast %cst_105 : f32 to vector<16x144xf32>
    %302 = arith.subf %301, %300 : vector<16x144xf32>
    %cst_106 = arith.constant 0.000000e+00 : f32
    %303 = vector.broadcast %cst_106 : f32 to vector<16x144xf32>
    %304 = arith.maximumf %302, %303 : vector<16x144xf32>
    %305 = vector.broadcast %297 : vector<1x144xf32> to vector<16x144xf32>
    %306 = arith.subf %79, %305 : vector<16x144xf32>
    %307 = math.absf %306 : vector<16x144xf32>
    %cst_107 = arith.constant 1.000000e+00 : f32
    %308 = vector.broadcast %cst_107 : f32 to vector<16x144xf32>
    %309 = arith.subf %308, %307 : vector<16x144xf32>
    %cst_108 = arith.constant 0.000000e+00 : f32
    %310 = vector.broadcast %cst_108 : f32 to vector<16x144xf32>
    %311 = arith.maximumf %309, %310 : vector<16x144xf32>
    %312 = vector.broadcast %284 : vector<1x144xf32> to vector<16x144xf32>
    %313 = arith.mulf %311, %312 : vector<16x144xf32>
    %314 = vector.shape_cast %313 : vector<16x144xf32> to vector<16x1x144xf32>
    %315 = vector.shape_cast %304 : vector<16x144xf32> to vector<1x16x144xf32>
    %316 = vector.broadcast %314 : vector<16x1x144xf32> to vector<16x16x144xf32>
    %317 = vector.broadcast %315 : vector<1x16x144xf32> to vector<16x16x144xf32>
    %318 = arith.mulf %316, %317 : vector<16x16x144xf32>
    %319 = vector.shape_cast %318 : vector<16x16x144xf32> to vector<256x144xf32>
    %c0_109 = arith.constant 0 : index
    %c16 = arith.constant 16 : index
    %c0_110 = arith.constant 0 : index
    %320 = vector.load %arg4[%c0_109, %c16, %c0_110] : memref<1x32x256xf32, #tpu.memory_space<vmem>>, vector<1x8x256xf32>
    %321 = vector.shape_cast %320 : vector<1x8x256xf32> to vector<8x256xf32>
    %cst_111 = arith.constant dense<0.000000e+00> : vector<8x144xf32>
    %322 = tpu.matmul %321, %319, %cst_111 {dimension_numbers = #tpu.dot_dimension_numbers<[1], [0], [0], [1], [0, 0, 1, 1], [], []>} : vector<8x256xf32>, vector<256x144xf32>, vector<8x144xf32> -> vector<8x144xf32>
    %cst_112 = arith.constant 6.250000e-02 : f32
    %323 = vector.broadcast %cst_112 : f32 to vector<1x144xf32>
    %324 = arith.mulf %273, %323 : vector<1x144xf32>
    %cst_113 = arith.constant 5.000000e-01 : f32
    %325 = vector.broadcast %cst_113 : f32 to vector<1x144xf32>
    %326 = arith.subf %324, %325 : vector<1x144xf32>
    %cst_114 = arith.constant 6.250000e-02 : f32
    %327 = vector.broadcast %cst_114 : f32 to vector<1x144xf32>
    %328 = arith.mulf %279, %327 : vector<1x144xf32>
    %cst_115 = arith.constant 5.000000e-01 : f32
    %329 = vector.broadcast %cst_115 : f32 to vector<1x144xf32>
    %330 = arith.subf %328, %329 : vector<1x144xf32>
    %331 = vector.broadcast %326 : vector<1x144xf32> to vector<8x144xf32>
    %332 = arith.subf %81, %331 : vector<8x144xf32>
    %333 = math.absf %332 : vector<8x144xf32>
    %cst_116 = arith.constant 1.000000e+00 : f32
    %334 = vector.broadcast %cst_116 : f32 to vector<8x144xf32>
    %335 = arith.subf %334, %333 : vector<8x144xf32>
    %cst_117 = arith.constant 0.000000e+00 : f32
    %336 = vector.broadcast %cst_117 : f32 to vector<8x144xf32>
    %337 = arith.maximumf %335, %336 : vector<8x144xf32>
    %338 = vector.broadcast %330 : vector<1x144xf32> to vector<8x144xf32>
    %339 = arith.subf %83, %338 : vector<8x144xf32>
    %340 = math.absf %339 : vector<8x144xf32>
    %cst_118 = arith.constant 1.000000e+00 : f32
    %341 = vector.broadcast %cst_118 : f32 to vector<8x144xf32>
    %342 = arith.subf %341, %340 : vector<8x144xf32>
    %cst_119 = arith.constant 0.000000e+00 : f32
    %343 = vector.broadcast %cst_119 : f32 to vector<8x144xf32>
    %344 = arith.maximumf %342, %343 : vector<8x144xf32>
    %345 = vector.broadcast %289 : vector<1x144xf32> to vector<8x144xf32>
    %346 = arith.mulf %344, %345 : vector<8x144xf32>
    %347 = vector.shape_cast %346 : vector<8x144xf32> to vector<8x1x144xf32>
    %348 = vector.shape_cast %337 : vector<8x144xf32> to vector<1x8x144xf32>
    %349 = vector.broadcast %347 : vector<8x1x144xf32> to vector<8x8x144xf32>
    %350 = vector.broadcast %348 : vector<1x8x144xf32> to vector<8x8x144xf32>
    %351 = arith.mulf %349, %350 : vector<8x8x144xf32>
    %352 = vector.shape_cast %351 : vector<8x8x144xf32> to vector<64x144xf32>
    %c0_120 = arith.constant 0 : index
    %c16_121 = arith.constant 16 : index
    %c0_122 = arith.constant 0 : index
    %353 = vector.load %arg5[%c0_120, %c16_121, %c0_122] : memref<1x32x64xf32, #tpu.memory_space<vmem>>, vector<1x8x64xf32>
    %354 = vector.shape_cast %353 : vector<1x8x64xf32> to vector<8x64xf32>
    %cst_123 = arith.constant dense<0.000000e+00> : vector<8x144xf32>
    %355 = tpu.matmul %354, %352, %cst_123 {dimension_numbers = #tpu.dot_dimension_numbers<[1], [0], [0], [1], [0, 0, 1, 1], [], []>} : vector<8x64xf32>, vector<64x144xf32>, vector<8x144xf32> -> vector<8x144xf32>
    %356 = arith.addf %322, %355 : vector<8x144xf32>
    %c0_124 = arith.constant 0 : index
    %c2 = arith.constant 2 : index
    %c0_125 = arith.constant 0 : index
    %c0_126 = arith.constant 0 : index
    %357 = vector.load %arg6[%c0_124, %c2, %c0_125, %c0_126] : memref<1x4x8x144xf32, #tpu.memory_space<vmem>>, vector<1x1x8x144xf32>
    %358 = vector.shape_cast %357 : vector<1x1x8x144xf32> to vector<8x144xf32>
    %359 = vector.shape_cast %356 : vector<8x144xf32> to vector<1x1x8x144xf32>
    tpu.vector_store %arg6[%c0_124, %c2, %c0_125, %c0_126], %359 {strides = array<i32>} : memref<1x4x8x144xf32, #tpu.memory_space<vmem>>, vector<1x1x8x144xf32>,
    %360 = vector.extract_strided_slice %32 {offsets = [0, 54], sizes = [8, 18], strides = [1, 1]} : vector<8x72xf32> to vector<8x18xf32>
    %cst_127 = arith.constant dense<0.000000e+00> : vector<8x144xf32>
    %361 = tpu.matmul %360, %67, %cst_127 {dimension_numbers = #tpu.dot_dimension_numbers<[1], [0], [0], [1], [0, 0, 1, 1], [], []>} : vector<8x18xf32>, vector<18x144xf32>, vector<8x144xf32> -> vector<8x144xf32>
    %362 = arith.mulf %361, %66 : vector<8x144xf32>
    %cst_128 = arith.constant dense<0.000000e+00> : vector<144xf32>
    %363 = vector.multi_reduction <add>, %362, %cst_128 [0] : vector<8x144xf32> to vector<144xf32>
    %364 = vector.shape_cast %363 : vector<144xf32> to vector<1x144xf32>
    %365 = arith.addf %364, %71 : vector<1x144xf32>
    %366 = vector.extract_strided_slice %36 {offsets = [0, 54], sizes = [8, 18], strides = [1, 1]} : vector<8x72xf32> to vector<8x18xf32>
    %cst_129 = arith.constant dense<0.000000e+00> : vector<8x144xf32>
    %367 = tpu.matmul %366, %67, %cst_129 {dimension_numbers = #tpu.dot_dimension_numbers<[1], [0], [0], [1], [0, 0, 1, 1], [], []>} : vector<8x18xf32>, vector<18x144xf32>, vector<8x144xf32> -> vector<8x144xf32>
    %368 = arith.mulf %367, %66 : vector<8x144xf32>
    %cst_130 = arith.constant dense<0.000000e+00> : vector<144xf32>
    %369 = vector.multi_reduction <add>, %368, %cst_130 [0] : vector<8x144xf32> to vector<144xf32>
    %370 = vector.shape_cast %369 : vector<144xf32> to vector<1x144xf32>
    %371 = arith.addf %370, %75 : vector<1x144xf32>
    %372 = vector.extract_strided_slice %64 {offsets = [0, 54], sizes = [8, 18], strides = [1, 1]} : vector<8x72xf32> to vector<8x18xf32>
    %cst_131 = arith.constant dense<0.000000e+00> : vector<8x144xf32>
    %373 = tpu.matmul %372, %67, %cst_131 {dimension_numbers = #tpu.dot_dimension_numbers<[1], [0], [0], [1], [0, 0, 1, 1], [], []>} : vector<8x18xf32>, vector<18x144xf32>, vector<8x144xf32> -> vector<8x144xf32>
    %374 = arith.mulf %373, %66 : vector<8x144xf32>
    %cst_132 = arith.constant dense<0.000000e+00> : vector<144xf32>
    %375 = vector.multi_reduction <add>, %374, %cst_132 [0] : vector<8x144xf32> to vector<144xf32>
    %376 = vector.shape_cast %375 : vector<144xf32> to vector<1x144xf32>
    %377 = vector.extract_strided_slice %65 {offsets = [0, 54], sizes = [8, 18], strides = [1, 1]} : vector<8x72xf32> to vector<8x18xf32>
    %cst_133 = arith.constant dense<0.000000e+00> : vector<8x144xf32>
    %378 = tpu.matmul %377, %67, %cst_133 {dimension_numbers = #tpu.dot_dimension_numbers<[1], [0], [0], [1], [0, 0, 1, 1], [], []>} : vector<8x18xf32>, vector<18x144xf32>, vector<8x144xf32> -> vector<8x144xf32>
    %379 = arith.mulf %378, %66 : vector<8x144xf32>
    %cst_134 = arith.constant dense<0.000000e+00> : vector<144xf32>
    %380 = vector.multi_reduction <add>, %379, %cst_134 [0] : vector<8x144xf32> to vector<144xf32>
    %381 = vector.shape_cast %380 : vector<144xf32> to vector<1x144xf32>
    %cst_135 = arith.constant 1.250000e-01 : f32
    %382 = vector.broadcast %cst_135 : f32 to vector<1x144xf32>
    %383 = arith.mulf %365, %382 : vector<1x144xf32>
    %cst_136 = arith.constant 5.000000e-01 : f32
    %384 = vector.broadcast %cst_136 : f32 to vector<1x144xf32>
    %385 = arith.subf %383, %384 : vector<1x144xf32>
    %cst_137 = arith.constant 1.250000e-01 : f32
    %386 = vector.broadcast %cst_137 : f32 to vector<1x144xf32>
    %387 = arith.mulf %371, %386 : vector<1x144xf32>
    %cst_138 = arith.constant 5.000000e-01 : f32
    %388 = vector.broadcast %cst_138 : f32 to vector<1x144xf32>
    %389 = arith.subf %387, %388 : vector<1x144xf32>
    %390 = vector.broadcast %385 : vector<1x144xf32> to vector<16x144xf32>
    %391 = arith.subf %77, %390 : vector<16x144xf32>
    %392 = math.absf %391 : vector<16x144xf32>
    %cst_139 = arith.constant 1.000000e+00 : f32
    %393 = vector.broadcast %cst_139 : f32 to vector<16x144xf32>
    %394 = arith.subf %393, %392 : vector<16x144xf32>
    %cst_140 = arith.constant 0.000000e+00 : f32
    %395 = vector.broadcast %cst_140 : f32 to vector<16x144xf32>
    %396 = arith.maximumf %394, %395 : vector<16x144xf32>
    %397 = vector.broadcast %389 : vector<1x144xf32> to vector<16x144xf32>
    %398 = arith.subf %79, %397 : vector<16x144xf32>
    %399 = math.absf %398 : vector<16x144xf32>
    %cst_141 = arith.constant 1.000000e+00 : f32
    %400 = vector.broadcast %cst_141 : f32 to vector<16x144xf32>
    %401 = arith.subf %400, %399 : vector<16x144xf32>
    %cst_142 = arith.constant 0.000000e+00 : f32
    %402 = vector.broadcast %cst_142 : f32 to vector<16x144xf32>
    %403 = arith.maximumf %401, %402 : vector<16x144xf32>
    %404 = vector.broadcast %376 : vector<1x144xf32> to vector<16x144xf32>
    %405 = arith.mulf %403, %404 : vector<16x144xf32>
    %406 = vector.shape_cast %405 : vector<16x144xf32> to vector<16x1x144xf32>
    %407 = vector.shape_cast %396 : vector<16x144xf32> to vector<1x16x144xf32>
    %408 = vector.broadcast %406 : vector<16x1x144xf32> to vector<16x16x144xf32>
    %409 = vector.broadcast %407 : vector<1x16x144xf32> to vector<16x16x144xf32>
    %410 = arith.mulf %408, %409 : vector<16x16x144xf32>
    %411 = vector.shape_cast %410 : vector<16x16x144xf32> to vector<256x144xf32>
    %c0_143 = arith.constant 0 : index
    %c24 = arith.constant 24 : index
    %c0_144 = arith.constant 0 : index
    %412 = vector.load %arg4[%c0_143, %c24, %c0_144] : memref<1x32x256xf32, #tpu.memory_space<vmem>>, vector<1x8x256xf32>
    %413 = vector.shape_cast %412 : vector<1x8x256xf32> to vector<8x256xf32>
    %cst_145 = arith.constant dense<0.000000e+00> : vector<8x144xf32>
    %414 = tpu.matmul %413, %411, %cst_145 {dimension_numbers = #tpu.dot_dimension_numbers<[1], [0], [0], [1], [0, 0, 1, 1], [], []>} : vector<8x256xf32>, vector<256x144xf32>, vector<8x144xf32> -> vector<8x144xf32>
    %cst_146 = arith.constant 6.250000e-02 : f32
    %415 = vector.broadcast %cst_146 : f32 to vector<1x144xf32>
    %416 = arith.mulf %365, %415 : vector<1x144xf32>
    %cst_147 = arith.constant 5.000000e-01 : f32
    %417 = vector.broadcast %cst_147 : f32 to vector<1x144xf32>
    %418 = arith.subf %416, %417 : vector<1x144xf32>
    %cst_148 = arith.constant 6.250000e-02 : f32
    %419 = vector.broadcast %cst_148 : f32 to vector<1x144xf32>
    %420 = arith.mulf %371, %419 : vector<1x144xf32>
    %cst_149 = arith.constant 5.000000e-01 : f32
    %421 = vector.broadcast %cst_149 : f32 to vector<1x144xf32>
    %422 = arith.subf %420, %421 : vector<1x144xf32>
    %423 = vector.broadcast %418 : vector<1x144xf32> to vector<8x144xf32>
    %424 = arith.subf %81, %423 : vector<8x144xf32>
    %425 = math.absf %424 : vector<8x144xf32>
    %cst_150 = arith.constant 1.000000e+00 : f32
    %426 = vector.broadcast %cst_150 : f32 to vector<8x144xf32>
    %427 = arith.subf %426, %425 : vector<8x144xf32>
    %cst_151 = arith.constant 0.000000e+00 : f32
    %428 = vector.broadcast %cst_151 : f32 to vector<8x144xf32>
    %429 = arith.maximumf %427, %428 : vector<8x144xf32>
    %430 = vector.broadcast %422 : vector<1x144xf32> to vector<8x144xf32>
    %431 = arith.subf %83, %430 : vector<8x144xf32>
    %432 = math.absf %431 : vector<8x144xf32>
    %cst_152 = arith.constant 1.000000e+00 : f32
    %433 = vector.broadcast %cst_152 : f32 to vector<8x144xf32>
    %434 = arith.subf %433, %432 : vector<8x144xf32>
    %cst_153 = arith.constant 0.000000e+00 : f32
    %435 = vector.broadcast %cst_153 : f32 to vector<8x144xf32>
    %436 = arith.maximumf %434, %435 : vector<8x144xf32>
    %437 = vector.broadcast %381 : vector<1x144xf32> to vector<8x144xf32>
    %438 = arith.mulf %436, %437 : vector<8x144xf32>
    %439 = vector.shape_cast %438 : vector<8x144xf32> to vector<8x1x144xf32>
    %440 = vector.shape_cast %429 : vector<8x144xf32> to vector<1x8x144xf32>
    %441 = vector.broadcast %439 : vector<8x1x144xf32> to vector<8x8x144xf32>
    %442 = vector.broadcast %440 : vector<1x8x144xf32> to vector<8x8x144xf32>
    %443 = arith.mulf %441, %442 : vector<8x8x144xf32>
    %444 = vector.shape_cast %443 : vector<8x8x144xf32> to vector<64x144xf32>
    %c0_154 = arith.constant 0 : index
    %c24_155 = arith.constant 24 : index
    %c0_156 = arith.constant 0 : index
    %445 = vector.load %arg5[%c0_154, %c24_155, %c0_156] : memref<1x32x64xf32, #tpu.memory_space<vmem>>, vector<1x8x64xf32>
    %446 = vector.shape_cast %445 : vector<1x8x64xf32> to vector<8x64xf32>
    %cst_157 = arith.constant dense<0.000000e+00> : vector<8x144xf32>
    %447 = tpu.matmul %446, %444, %cst_157 {dimension_numbers = #tpu.dot_dimension_numbers<[1], [0], [0], [1], [0, 0, 1, 1], [], []>} : vector<8x64xf32>, vector<64x144xf32>, vector<8x144xf32> -> vector<8x144xf32>
    %448 = arith.addf %414, %447 : vector<8x144xf32>
    %c0_158 = arith.constant 0 : index
    %c3 = arith.constant 3 : index
    %c0_159 = arith.constant 0 : index
    %c0_160 = arith.constant 0 : index
    %449 = vector.load %arg6[%c0_158, %c3, %c0_159, %c0_160] : memref<1x4x8x144xf32, #tpu.memory_space<vmem>>, vector<1x1x8x144xf32>
    %450 = vector.shape_cast %449 : vector<1x1x8x144xf32> to vector<8x144xf32>
    %451 = vector.shape_cast %448 : vector<8x144xf32> to vector<1x1x8x144xf32>
    tpu.vector_store %arg6[%c0_158, %c3, %c0_159, %c0_160], %451 {strides = array<i32>} : memref<1x4x8x144xf32, #tpu.memory_space<vmem>>, vector<1x1x8x144xf32>,
    return
  }
  func.func @transform_0(%arg0: i32) -> (i32, i32, i32) {
    %c0_i32 = arith.constant 0 : i32
    %c0_i32_0 = arith.constant 0 : i32
    %c0_i32_1 = arith.constant 0 : i32
    return %arg0, %c0_i32, %c0_i32_0 : i32, i32, i32
  }
  func.func @transform_1(%arg0: i32) -> (i32, i32) {
    %c0_i32 = arith.constant 0 : i32
    %c0_i32_0 = arith.constant 0 : i32
    %c0_i32_1 = arith.constant 0 : i32
    return %c0_i32, %c0_i32_0 : i32, i32
  }
  func.func @transform_2(%arg0: i32) -> (i32, i32) {
    %c0_i32 = arith.constant 0 : i32
    %c0_i32_0 = arith.constant 0 : i32
    %c0_i32_1 = arith.constant 0 : i32
    return %c0_i32, %c0_i32_0 : i32, i32
  }
  func.func @transform_3(%arg0: i32) -> (i32, i32, i32) {
    %c0_i32 = arith.constant 0 : i32
    %c0_i32_0 = arith.constant 0 : i32
    %c0_i32_1 = arith.constant 0 : i32
    return %arg0, %c0_i32, %c0_i32_0 : i32, i32, i32
  }
  func.func @transform_4(%arg0: i32) -> (i32, i32, i32) {
    %c0_i32 = arith.constant 0 : i32
    %c0_i32_0 = arith.constant 0 : i32
    %c0_i32_1 = arith.constant 0 : i32
    return %arg0, %c0_i32, %c0_i32_0 : i32, i32, i32
  }
  func.func @transform_5(%arg0: i32) -> (i32, i32, i32, i32) {
    %c0_i32 = arith.constant 0 : i32
    %c0_i32_0 = arith.constant 0 : i32
    %c0_i32_1 = arith.constant 0 : i32
    %c0_i32_2 = arith.constant 0 : i32
    return %arg0, %c0_i32, %c0_i32_0, %c0_i32_1 : i32, i32, i32, i32
  }
}

</mosaic_0001>

<llo_original>
// kernel: subquery_feature_sampler_forward.1
$region0: #{subquery_feature_sampler_forward.1}
  #allocation0 [shape = 'u32[]', space=smem, size = 0x4, offset = 0x4, fixed_abs, tag = 'smem constant byte address 0x4 - core index']
  #allocation1 [shape = 'u32[144,128]{1,0:T(1,128)}', space=vmem, size = 0x12000, scoped, tag = 'internal scratch']
  %s0 = inlined_call_operand.vmem [shape: f32[2,8,37], index: 0, kind: input, shape index: {}]
  %s1 = inlined_call_operand.vmem [shape: f32[37,768], index: 1, kind: input, shape index: {}]
  %s2 = inlined_call_operand.vmem [shape: f32[26,144], index: 2, kind: input, shape index: {}]
  %s3 = inlined_call_operand.vmem [shape: f32[2,32,256], index: 3, kind: input, shape index: {}]
  %s4 = inlined_call_operand.vmem [shape: f32[2,32,64], index: 4, kind: input, shape index: {}]
  %s5 = inlined_call_operand.vmem [shape: f32[2,4,8,144], index: 5, kind: output, shape index: {}]
  %s6 = sld [smem:[#allocation0]]
  $region53: #{subquery_feature_sampler_forward.1} parent=0
    _
  %s8 = ssub.s32 1, %s6
  %s9 = scalar_select 0, %s8, %s6
  loop: start=0, step=1, limit=4
  $region2: #{subquery_feature_sampler_forward.1} parent=0 // loop_pre_header
    _
  $region3: #{subquery_feature_sampler_forward.1} parent=0 // loop_header
    %s11 = sphi 0, %s15
    %p12 = scmp.ge.s32.totalorder %s11, 4
    %s21 = sphi 0, %s23
    %s24 = sphi 0, %s21
    %s25 = sphi 0, %s24
    %s41 = sphi 0, %s25
    %s45 = sphi 0, %s45
    %s47 = sphi 0, %s45
    %s48 = sphi 0, %s47
    %s62 = sphi 0, %s48
    %s66 = sphi 0, %s66
    %s68 = sphi 0, %s66
    %s69 = sphi 0, %s68
    %s83 = sphi 0, %s69
    %s89 = sphi 0, %s91
    %s92 = sphi 0, %s89
    %s93 = sphi 0, %s92
    %s109 = sphi 0, %s93
    %s115 = sphi 0, %s117
    %s118 = sphi 0, %s115
    %s119 = sphi 0, %s118
    %s135 = sphi 0, %s119
    %s141 = sphi 0, %s143
    %s144 = sphi 0, %s141
    %s145 = sphi 0, %s144
    %s161 = sphi 0, %s145
  $region4: #{subquery_feature_sampler_forward.1} parent=0 // loop_header_branch
    %14 = sbr.rel (%p12) target = $region8
  $region5: #{subquery_feature_sampler_forward.1} parent=0 // loop_body
    %s16 = ssub.s32 %s11, 1
    %s17 = ssub.s32 %s11, 2
    %s18 = sadd.s32 %s11, 1
    %s19 = ssub.s32 %s11, %s18
    %p20 = scmp.eq.s32.totalorder %s19, 0
    %s22 = sadd.s32 %s21, 1
    %s23 = scalar_select %p20, %s21, %s22
    %p26 = pneg %p20
    %p27 = scmp.eq.s32.totalorder %s11, 1
    %p28 = por %p26, %p27
    %p29 = scmp.ne.s32.totalorder %s21, %s24
    %p30 = scmp.eq.s32.totalorder %s11, 0
    %p31 = por %p29, %p30
    %p32 = scmp.ne.s32.totalorder %s21, %s24
    %p33 = scmp.eq.s32.totalorder %s16, 1
    %p34 = por %p32, %p33
    %p35 = scmp.ne.s32.totalorder %s24, %s25
    %p36 = scmp.eq.s32.totalorder %s16, 0
    %p37 = por %p35, %p36
    %p38 = scmp.ne.s32.totalorder %s24, %s25
    %p39 = scmp.eq.s32.totalorder %s17, 1
    %p40 = por %p38, %p39
    %p42 = scmp.ne.s32.totalorder %s25, %s41
    %p43 = scmp.eq.s32.totalorder %s17, 0
    %p44 = por %p42, %p43
    %s46 = sadd.s32 %s45, 1
    %p49 = scmp.eq.s32.totalorder %s11, 1
    %p50 = scmp.ne.s32.totalorder %s45, %s47
    %p51 = scmp.eq.s32.totalorder %s11, 0
    %p52 = por %p50, %p51
    %p53 = scmp.ne.s32.totalorder %s45, %s47
    %p54 = scmp.eq.s32.totalorder %s16, 1
    %p55 = por %p53, %p54
    %p56 = scmp.ne.s32.totalorder %s47, %s48
    %p57 = scmp.eq.s32.totalorder %s16, 0
    %p58 = por %p56, %p57
    %p59 = scmp.ne.s32.totalorder %s47, %s48
    %p60 = scmp.eq.s32.totalorder %s17, 1
    %p61 = por %p59, %p60
    %p63 = scmp.ne.s32.totalorder %s48, %s62
    %p64 = scmp.eq.s32.totalorder %s17, 0
    %p65 = por %p63, %p64
    %s67 = sadd.s32 %s66, 1
    %p70 = scmp.eq.s32.totalorder %s11, 1
    %p71 = scmp.ne.s32.totalorder %s66, %s68
    %p72 = scmp.eq.s32.totalorder %s11, 0
    %p73 = por %p71, %p72
    %p74 = scmp.ne.s32.totalorder %s66, %s68
    %p75 = scmp.eq.s32.totalorder %s16, 1
    %p76 = por %p74, %p75
    %p77 = scmp.ne.s32.totalorder %s68, %s69
    %p78 = scmp.eq.s32.totalorder %s16, 0
    %p79 = por %p77, %p78
    %p80 = scmp.ne.s32.totalorder %s68, %s69
    %p81 = scmp.eq.s32.totalorder %s17, 1
    %p82 = por %p80, %p81
    %p84 = scmp.ne.s32.totalorder %s69, %s83
    %p85 = scmp.eq.s32.totalorder %s17, 0
    %p86 = por %p84, %p85
    %s87 = ssub.s32 %s11, %s18
    %p88 = scmp.eq.s32.totalorder %s87, 0
    %s90 = sadd.s32 %s89, 1
    %s91 = scalar_select %p88, %s89, %s90
    %p94 = pneg %p88
    %p95 = scmp.eq.s32.totalorder %s11, 1
    %p96 = por %p94, %p95
    %p97 = scmp.ne.s32.totalorder %s89, %s92
    %p98 = scmp.eq.s32.totalorder %s11, 0
    %p99 = por %p97, %p98
    %p100 = scmp.ne.s32.totalorder %s89, %s92
    %p101 = scmp.eq.s32.totalorder %s16, 1
    %p102 = por %p100, %p101
    %p103 = scmp.ne.s32.totalorder %s92, %s93
    %p104 = scmp.eq.s32.totalorder %s16, 0
    %p105 = por %p103, %p104
    %p106 = scmp.ne.s32.totalorder %s92, %s93
    %p107 = scmp.eq.s32.totalorder %s17, 1
    %p108 = por %p106, %p107
    %p110 = scmp.ne.s32.totalorder %s93, %s109
    %p111 = scmp.eq.s32.totalorder %s17, 0
    %p112 = por %p110, %p111
    %s113 = ssub.s32 %s11, %s18
    %p114 = scmp.eq.s32.totalorder %s113, 0
    %s116 = sadd.s32 %s115, 1
    %s117 = scalar_select %p114, %s115, %s116
    %p120 = pneg %p114
    %p121 = scmp.eq.s32.totalorder %s11, 1
    %p122 = por %p120, %p121
    %p123 = scmp.ne.s32.totalorder %s115, %s118
    %p124 = scmp.eq.s32.totalorder %s11, 0
    %p125 = por %p123, %p124
    %p126 = scmp.ne.s32.totalorder %s115, %s118
    %p127 = scmp.eq.s32.totalorder %s16, 1
    %p128 = por %p126, %p127
    %p129 = scmp.ne.s32.totalorder %s118, %s119
    %p130 = scmp.eq.s32.totalorder %s16, 0
    %p131 = por %p129, %p130
    %p132 = scmp.ne.s32.totalorder %s118, %s119
    %p133 = scmp.eq.s32.totalorder %s17, 1
    %p134 = por %p132, %p133
    %p136 = scmp.ne.s32.totalorder %s119, %s135
    %p137 = scmp.eq.s32.totalorder %s17, 0
    %p138 = por %p136, %p137
    %s139 = ssub.s32 %s11, %s18
    %p140 = scmp.eq.s32.totalorder %s139, 0
    %s142 = sadd.s32 %s141, 1
    %s143 = scalar_select %p140, %s141, %s142
    %p146 = pneg %p140
    %p147 = scmp.eq.s32.totalorder %s11, 1
    %p148 = por %p146, %p147
    %p149 = scmp.ne.s32.totalorder %s141, %s144
    %p150 = scmp.eq.s32.totalorder %s11, 0
    %p151 = por %p149, %p150
    %p152 = scmp.ne.s32.totalorder %s141, %s144
    %p153 = scmp.eq.s32.totalorder %s16, 1
    %p154 = por %p152, %p153
    %p155 = scmp.ne.s32.totalorder %s144, %s145
    %p156 = scmp.eq.s32.totalorder %s16, 0
    %p157 = por %p155, %p156
    %p158 = scmp.ne.s32.totalorder %s144, %s145
    %p159 = scmp.eq.s32.totalorder %s17, 1
    %p160 = por %p158, %p159
    %p162 = scmp.ne.s32.totalorder %s145, %s161
    %p163 = scmp.eq.s32.totalorder %s17, 0
    %p164 = por %p162, %p163
    %p165 = scmp.le.s32.totalorder 1, %s11
    %p166 = scmp.lt.s32.totalorder %s11, 3
    %p167 = pnand %p165, %p166
    %p168 = pneg %p167
    // Predicated region
    $region9: #{subquery_feature_sampler_forward.1} parent=5 // pred_check
      _
    $region10: #{subquery_feature_sampler_forward.1} parent=5 // pred_check_branch
      %170 = sbr.rel (%p167) target = $region12
    $region11: #{subquery_feature_sampler_forward.1} parent=5 // pred_region
      %s171 = ssub.s32 %s11, 1
      // Predicated region
      $region13: #{subquery_feature_sampler_forward.1} parent=11 // pred_check
        %p172 = pneg %p58
      $region14: #{subquery_feature_sampler_forward.1} parent=11 // pred_check_branch
        %174 = sbr.rel (%p172) target = $region16
      $region15: #{subquery_feature_sampler_forward.1} parent=11 // pred_region
        _
      $region16: #{subquery_feature_sampler_forward.1} parent=11 // pred_fallthru
        _
      // Predicated region
      $region17: #{subquery_feature_sampler_forward.1} parent=11 // pred_check
        %p175 = pneg %p79
      $region18: #{subquery_feature_sampler_forward.1} parent=11 // pred_check_branch
        %177 = sbr.rel (%p175) target = $region20
      $region19: #{subquery_feature_sampler_forward.1} parent=11 // pred_region
        _
      $region20: #{subquery_feature_sampler_forward.1} parent=11 // pred_fallthru
        _
    $region12: #{subquery_feature_sampler_forward.1} parent=5 // pred_fallthru
      _
    %p178 = scmp.lt.s32.totalorder %s11, 2
    // Predicated region
    $region21: #{subquery_feature_sampler_forward.1} parent=5 // pred_check
      %p179 = pneg %p178
    $region22: #{subquery_feature_sampler_forward.1} parent=5 // pred_check_branch
      %181 = sbr.rel (%p179) target = $region24
    $region23: #{subquery_feature_sampler_forward.1} parent=5 // pred_region
      // Predicated region
      $region25: #{subquery_feature_sampler_forward.1} parent=23 // pred_check
        %p182 = pneg %p31
      $region26: #{subquery_feature_sampler_forward.1} parent=23 // pred_check_branch
        %184 = sbr.rel (%p182) target = $region28
      $region27: #{subquery_feature_sampler_forward.1} parent=23 // pred_region
        %p185 = scmp.lt.s32.totalorder %s11, 1
        %s186 = scalar_select %p185, %s11, 1
        %s187 = smul.addr %s186, 8
        %s188 = scalar_lea.vmem %s0, %s187
      $region28: #{subquery_feature_sampler_forward.1} parent=23 // pred_fallthru
        _
      // Predicated region
      $region29: #{subquery_feature_sampler_forward.1} parent=23 // pred_check
        %p189 = pneg %p99
      $region30: #{subquery_feature_sampler_forward.1} parent=23 // pred_check_branch
        %191 = sbr.rel (%p189) target = $region32
      $region31: #{subquery_feature_sampler_forward.1} parent=23 // pred_region
        %p192 = scmp.lt.s32.totalorder %s11, 1
        %s193 = scalar_select %p192, %s11, 1
        %s194 = smul.addr %s193, 8
        %s195 = smul.addr %s194, 8
        %s196 = scalar_lea.vmem %s3, %s195
      $region32: #{subquery_feature_sampler_forward.1} parent=23 // pred_fallthru
        _
      // Predicated region
      $region33: #{subquery_feature_sampler_forward.1} parent=23 // pred_check
        %p197 = pneg %p125
      $region34: #{subquery_feature_sampler_forward.1} parent=23 // pred_check_branch
        %199 = sbr.rel (%p197) target = $region36
      $region35: #{subquery_feature_sampler_forward.1} parent=23 // pred_region
        %p200 = scmp.lt.s32.totalorder %s11, 1
        %s201 = scalar_select %p200, %s11, 1
        %s202 = smul.addr %s201, 4
        %s203 = smul.addr %s202, 8
        %s204 = scalar_lea.vmem %s4, %s203
      $region36: #{subquery_feature_sampler_forward.1} parent=23 // pred_fallthru
        _
    $region24: #{subquery_feature_sampler_forward.1} parent=5 // pred_fallthru
      _
    %p205 = scmp.le.s32.totalorder 1, %s11
    %p206 = scmp.lt.s32.totalorder %s11, 3
    %p207 = pnand %p205, %p206
    %p208 = pneg %p207
    // Predicated region
    $region37: #{subquery_feature_sampler_forward.1} parent=5 // pred_check
      _
    $region38: #{subquery_feature_sampler_forward.1} parent=5 // pred_check_branch
      %210 = sbr.rel (%p207) target = $region40
    $region39: #{subquery_feature_sampler_forward.1} parent=5 // pred_region
      %s211 = ssub.s32 %s11, 1
      %p212 = scmp.lt.s32.totalorder %s16, 1
      %s213 = scalar_select %p212, %s16, 1
      %s214 = smul.addr %s213, 8
      %s215 = scalar_lea.vmem %s0, %s214
      %p216 = pneg %p37
      %p217 = pneg %p34
      %p218 = pneg %p58
      %p219 = pneg %p55
      %p220 = pneg %p79
      %p221 = pneg %p76
      %p222 = scmp.lt.s32.totalorder %s16, 1
      %s223 = scalar_select %p222, %s16, 1
      %s224 = smul.addr %s223, 8
      %s225 = smul.addr %s224, 8
      %s226 = scalar_lea.vmem %s3, %s225
      %p227 = pneg %p105
      %p228 = pneg %p102
      %p229 = scmp.lt.s32.totalorder %s16, 1
      %s230 = scalar_select %p229, %s16, 1
      %s231 = smul.addr %s230, 4
      %s232 = smul.addr %s231, 8
      %s233 = scalar_lea.vmem %s4, %s232
      %p234 = pneg %p131
      %p235 = pneg %p128
      %p236 = pneg %p157
      %p237 = pneg %p154
      %p238 = scmp.lt.s32.totalorder %s16, 1
      %s239 = scalar_select %p238, %s16, 1
      %s240 = smul.addr %s239, 8
      %s241 = smul.addr %s240, 8
      %s242 = scalar_lea.vmem %s5, %s241
      %p243 = scmp.lt.s32.totalorder %s16, 1
      %s244 = scalar_select %p243, %s16, 1
      %s245 = smul.addr %s244, 8
      %s246 = scalar_lea.vmem %s0, %s245
      %p247 = scmp.lt.s32.totalorder %s16, 1
      %s248 = scalar_select %p247, %s16, 1
      %s249 = smul.addr %s248, 8
      %s250 = smul.addr %s249, 8
      %s251 = scalar_lea.vmem %s3, %s250
      %p252 = scmp.lt.s32.totalorder %s16, 1
      %s253 = scalar_select %p252, %s16, 1
      %s254 = smul.addr %s253, 4
      %s255 = smul.addr %s254, 8
      %s256 = scalar_lea.vmem %s4, %s255
      %p257 = scmp.lt.s32.totalorder %s16, 1
      %s258 = scalar_select %p257, %s16, 1
      %s259 = smul.addr %s258, 8
      %s260 = smul.addr %s259, 8
      %s261 = scalar_lea.vmem %s5, %s260
      %v262 = vld [vmem:[%s246] sm:$0xff]
      %v263 = vld [vmem:[%s1] sm:$0xff]
      %v264 = vld [vmem:[%s1 + $0x8] sm:$0xff]
      %v265 = vld [vmem:[%s1 + $0x10] sm:$0xff]
      %v266 = vld [vmem:[%s1 + $0x18] sm:$0xff]
      %v267 = vld [vmem:[%s1 + $0x20] sm:$0xff]
      %v268 = vld [vmem:[%s1 + $0x28] sm:$0xff]
      %v269 = vld [vmem:[%s1 + $0x30] sm:$0xff]
      %v270 = vld [vmem:[%s1 + $0x38] sm:$0xff]
      %v271 = vld [vmem:[%s1 + $0x40] sm:$0xff]
      %v272 = vld [vmem:[%s1 + $0x48] sm:$0xff]
      %v273 = vld [vmem:[%s1 + $0x50] sm:$0xff]
      %v274 = vld [vmem:[%s1 + $0x58] sm:$0xff]
      %v275 = vld [vmem:[%s1 + $0x60] sm:$0xff]
      %v276 = vld [vmem:[%s1 + $0x68] sm:$0xff]
      %v277 = vld [vmem:[%s1 + $0x70] sm:$0xff]
      %v278 = vld [vmem:[%s1 + $0x78] sm:$0xff]
      %v279 = vld [vmem:[%s1 + $0x80] sm:$0xff]
      %v280 = vld [vmem:[%s1 + $0x88] sm:$0xff]
      %v281 = vld [vmem:[%s1 + $0x90] sm:$0xff]
      %v282 = vld [vmem:[%s1 + $0x98] sm:$0xff]
      %v283 = vld [vmem:[%s1 + $0xa0] sm:$0xff]
      %v284 = vld [vmem:[%s1 + $0xa8] sm:$0xff]
      %v285 = vld [vmem:[%s1 + $0xb0] sm:$0xff]
      %v286 = vld [vmem:[%s1 + $0xb8] sm:$0xff]
      %v287 = vld [vmem:[%s1 + $0xc0] sm:$0x1f]
      %v288 = vld [vmem:[%s1 + $0xc8] sm:$0x1f]
      %v289 = vld [vmem:[%s1 + $0xd0] sm:$0x1f]
      %v290 = vld [vmem:[%s1 + $0xd8] sm:$0x1f]
      %v291 = vld [vmem:[%s1 + $0xe0] sm:$0x1f]
      %v292 = vld [vmem:[%s1 + $0xe8] sm:$0x1f]
      %vm293 = vcmask 302080
      %v295 = vsel %vm293, %v262, 0
      %vm297 = vcmask 1044480
      %v299 = vsel %vm297, %v287, 0
      %v302 = vsel %vm297, %v288, 0
      %v305 = vsel %vm297, %v289, 0
      %v308 = vsel %vm297, %v290, 0
      %v311 = vsel %vm297, %v291, 0
      %v314 = vsel %vm297, %v292, 0
      %316 = vmatprep.subr.mxu0 %v264
      %317 = vmatpush1.msra.mxu0 %v263
      %318 = vmatprep.subr.mxu0 %v270
      %319 = vmatpush1.msra.mxu0 %v269
      %320 = vmatprep.subr.mxu0 %v276
      %321 = vmatpush1.msra.mxu0 %v275
      %322 = vmatprep.subr.mxu0 %v282
      %323 = vmatpush1.msra.mxu0 %v281
      %324 = vmatprep.subr.mxu0 %v302
      %325 = vmatpush1.msra.mxu0 %v299
      %326 = vmatprep.subr.mxu0 0.0
      %327 = vmatpush1.msra.mxu0 0.0
      %328 = vmatprep.subr.mxu0 0.0
      %329 = vmatpush1.msra.mxu0 0.0
      %330 = vmatprep.subr.mxu0 0.0
      %331 = vmatpush1.msra.mxu0 0.0
      %332 = vmatprep.subr.mxu0 0.0
      %333 = vmatpush1.msra.mxu0 0.0
      %334 = vmatprep.subr.mxu0 0.0
      %335 = vmatpush1.msra.mxu0 0.0
      %336 = vmatprep.subr.mxu0 0.0
      %337 = vmatpush1.msra.mxu0 0.0
      %338 = vmatprep.subr.mxu0 0.0
      %339 = vmatpush1.msra.mxu0 0.0
      %340 = vmatprep.subr.mxu0 0.0
      %341 = vmatpush1.msra.mxu0 0.0
      %342 = vmatprep.subr.mxu0 0.0
      %343 = vmatpush1.msra.mxu0 0.0
      %344 = vmatprep.subr.mxu0 0.0
      %345 = vmatpush1.msra.mxu0 0.0
      %346 = vmatprep.subr.mxu0 0.0
      %347 = vmatpush1.msra.mxu0 0.0
      %348 = vmatprep.subr.mxu0 0.0
      %349 = vmatpush1.msra.mxu0 0.0
      %350 = vmatprep.subr.mxu0 0.0
      %351 = vmatpush1.msra.mxu0 0.0
      %352 = vmatprep.subr.mxu0 0.0
      %353 = vmatpush1.msra.mxu0 0.0
      %354 = vmatprep.subr.mxu0 0.0
      %355 = vmatpush1.msra.mxu0 0.0
      %356 = vmatprep.subr.mxu0 0.0
      %357 = vmatpush1.msra.mxu0 0.0
      %358 = vmatprep.subr.mxu0 0.0
      %359 = vmatpush1.msra.mxu0 0.0
      %360 = vmatprep.subr.mxu0 0.0
      %361 = vmatpush1.msra.mxu0 0.0
      %362 = vmatprep.subr.mxu0 0.0
      %363 = vmatpush1.msra.mxu0 0.0
      %364 = vmatprep.subr.mxu0 0.0
      %365 = vmatpush1.msra.mxu0 0.0
      %366 = vmatprep.subr.mxu0 0.0
      %367 = vmatpush1.msra.mxu0 0.0
      %368 = vmatprep.subr.mxu0 0.0
      %369 = vmatpush1.msra.mxu0 0.0
      %370 = vmatprep.subr.mxu0 0.0
      %371 = vmatpush1.msra.mxu0 0.0
      %372 = vmatprep.subr.mxu0 0.0
      %373 = vmatpush1.msra.mxu0 0.0
      %374 = vmatprep.subr.mxu0 0.0
      %375 = vmatpush1.msra.mxu0 0.0
      %376 = vmatprep.subr.mxu0 0.0
      %377 = vmatpush1.msra.mxu0 0.0
      %378 = vmatprep.subr.mxu0 0.0
      %379 = vmatpush1.msra.mxu0 0.0
      %380 = vmatprep.mubr.f32.mxu0 0.0
      %381 = vmatmul.mubr.f32.gmra.mrb[0].mxu0 %v295
      %v382 = vpop.f32.mrb[0].mxu0
      %v383 = vadd.f32 0.0, %v382
      %v384 = vpop.f32.mrb[0].mxu0
      %v385 = vadd.f32 0.0, %v384
      %386 = vdwg.mxu0
      %387 = vmatprep.subr.mxu0 %v266
      %388 = vmatpush1.msra.mxu0 %v265
      %389 = vmatprep.subr.mxu0 %v272
      %390 = vmatpush1.msra.mxu0 %v271
      %391 = vmatprep.subr.mxu0 %v278
      %392 = vmatpush1.msra.mxu0 %v277
      %393 = vmatprep.subr.mxu0 %v284
      %394 = vmatpush1.msra.mxu0 %v283
      %395 = vmatprep.subr.mxu0 %v308
      %396 = vmatpush1.msra.mxu0 %v305
      %397 = vmatprep.subr.mxu0 0.0
      %398 = vmatpush1.msra.mxu0 0.0
      %399 = vmatprep.subr.mxu0 0.0
      %400 = vmatpush1.msra.mxu0 0.0
      %401 = vmatprep.subr.mxu0 0.0
      %402 = vmatpush1.msra.mxu0 0.0
      %403 = vmatprep.subr.mxu0 0.0
      %404 = vmatpush1.msra.mxu0 0.0
      %405 = vmatprep.subr.mxu0 0.0
      %406 = vmatpush1.msra.mxu0 0.0
      %407 = vmatprep.subr.mxu0 0.0
      %408 = vmatpush1.msra.mxu0 0.0
      %409 = vmatprep.subr.mxu0 0.0
      %410 = vmatpush1.msra.mxu0 0.0
      %411 = vmatprep.subr.mxu0 0.0
      %412 = vmatpush1.msra.mxu0 0.0
      %413 = vmatprep.subr.mxu0 0.0
      %414 = vmatpush1.msra.mxu0 0.0
      %415 = vmatprep.subr.mxu0 0.0
      %416 = vmatpush1.msra.mxu0 0.0
      %417 = vmatprep.subr.mxu0 0.0
      %418 = vmatpush1.msra.mxu0 0.0
      %419 = vmatprep.subr.mxu0 0.0
      %420 = vmatpush1.msra.mxu0 0.0
      %421 = vmatprep.subr.mxu0 0.0
      %422 = vmatpush1.msra.mxu0 0.0
      %423 = vmatprep.subr.mxu0 0.0
      %424 = vmatpush1.msra.mxu0 0.0
      %425 = vmatprep.subr.mxu0 0.0
      %426 = vmatpush1.msra.mxu0 0.0
      %427 = vmatprep.subr.mxu0 0.0
      %428 = vmatpush1.msra.mxu0 0.0
      %429 = vmatprep.subr.mxu0 0.0
      %430 = vmatpush1.msra.mxu0 0.0
      %431 = vmatprep.subr.mxu0 0.0
      %432 = vmatpush1.msra.mxu0 0.0
      %433 = vmatprep.subr.mxu0 0.0
      %434 = vmatpush1.msra.mxu0 0.0
      %435 = vmatprep.subr.mxu0 0.0
      %436 = vmatpush1.msra.mxu0 0.0
      %437 = vmatprep.subr.mxu0 0.0
      %438 = vmatpush1.msra.mxu0 0.0
      %439 = vmatprep.subr.mxu0 0.0
      %440 = vmatpush1.msra.mxu0 0.0
      %441 = vmatprep.subr.mxu0 0.0
      %442 = vmatpush1.msra.mxu0 0.0
      %443 = vmatprep.subr.mxu0 0.0
      %444 = vmatpush1.msra.mxu0 0.0
      %445 = vmatprep.subr.mxu0 0.0
      %446 = vmatpush1.msra.mxu0 0.0
      %447 = vmatprep.subr.mxu0 0.0
      %448 = vmatpush1.msra.mxu0 0.0
      %449 = vmatprep.subr.mxu0 0.0
      %450 = vmatpush1.msra.mxu0 0.0
      %451 = vmatprep.mubr.f32.mxu0 0.0
      %452 = vmatmul.mubr.f32.gmra.mrb[0].mxu0 %v295
      %v453 = vpop.f32.mrb[0].mxu0
      %v454 = vadd.f32 0.0, %v453
      %v455 = vpop.f32.mrb[0].mxu0
      %v456 = vadd.f32 0.0, %v455
      %457 = vdwg.mxu0
      %458 = vmatprep.subr.mxu0 %v268
      %459 = vmatpush1.msra.mxu0 %v267
      %460 = vmatprep.subr.mxu0 %v274
      %461 = vmatpush1.msra.mxu0 %v273
      %462 = vmatprep.subr.mxu0 %v280
      %463 = vmatpush1.msra.mxu0 %v279
      %464 = vmatprep.subr.mxu0 %v286
      %465 = vmatpush1.msra.mxu0 %v285
      %466 = vmatprep.subr.mxu0 %v314
      %467 = vmatpush1.msra.mxu0 %v311
      %468 = vmatprep.subr.mxu0 0.0
      %469 = vmatpush1.msra.mxu0 0.0
      %470 = vmatprep.subr.mxu0 0.0
      %471 = vmatpush1.msra.mxu0 0.0
      %472 = vmatprep.subr.mxu0 0.0
      %473 = vmatpush1.msra.mxu0 0.0
      %474 = vmatprep.subr.mxu0 0.0
      %475 = vmatpush1.msra.mxu0 0.0
      %476 = vmatprep.subr.mxu0 0.0
      %477 = vmatpush1.msra.mxu0 0.0
      %478 = vmatprep.subr.mxu0 0.0
      %479 = vmatpush1.msra.mxu0 0.0
      %480 = vmatprep.subr.mxu0 0.0
      %481 = vmatpush1.msra.mxu0 0.0
      %482 = vmatprep.subr.mxu0 0.0
      %483 = vmatpush1.msra.mxu0 0.0
      %484 = vmatprep.subr.mxu0 0.0
      %485 = vmatpush1.msra.mxu0 0.0
      %486 = vmatprep.subr.mxu0 0.0
      %487 = vmatpush1.msra.mxu0 0.0
      %488 = vmatprep.subr.mxu0 0.0
      %489 = vmatpush1.msra.mxu0 0.0
      %490 = vmatprep.subr.mxu0 0.0
      %491 = vmatpush1.msra.mxu0 0.0
      %492 = vmatprep.subr.mxu0 0.0
      %493 = vmatpush1.msra.mxu0 0.0
      %494 = vmatprep.subr.mxu0 0.0
      %495 = vmatpush1.msra.mxu0 0.0
      %496 = vmatprep.subr.mxu0 0.0
      %497 = vmatpush1.msra.mxu0 0.0
      %498 = vmatprep.subr.mxu0 0.0
      %499 = vmatpush1.msra.mxu0 0.0
      %500 = vmatprep.subr.mxu0 0.0
      %501 = vmatpush1.msra.mxu0 0.0
      %502 = vmatprep.subr.mxu0 0.0
      %503 = vmatpush1.msra.mxu0 0.0
      %504 = vmatprep.subr.mxu0 0.0
      %505 = vmatpush1.msra.mxu0 0.0
      %506 = vmatprep.subr.mxu0 0.0
      %507 = vmatpush1.msra.mxu0 0.0
      %508 = vmatprep.subr.mxu0 0.0
      %509 = vmatpush1.msra.mxu0 0.0
      %510 = vmatprep.subr.mxu0 0.0
      %511 = vmatpush1.msra.mxu0 0.0
      %512 = vmatprep.subr.mxu0 0.0
      %513 = vmatpush1.msra.mxu0 0.0
      %514 = vmatprep.subr.mxu0 0.0
      %515 = vmatpush1.msra.mxu0 0.0
      %516 = vmatprep.subr.mxu0 0.0
      %517 = vmatpush1.msra.mxu0 0.0
      %518 = vmatprep.subr.mxu0 0.0
      %519 = vmatpush1.msra.mxu0 0.0
      %520 = vmatprep.subr.mxu0 0.0
      %521 = vmatpush1.msra.mxu0 0.0
      %522 = vmatprep.mubr.f32.mxu0 0.0
      %523 = vmatmul.mubr.f32.gmra.mrb[0].mxu0 %v295
      %v524 = vpop.f32.mrb[0].mxu0
      %v525 = vadd.f32 0.0, %v524
      %v526 = vpop.f32.mrb[0].mxu0
      %v527 = vadd.f32 0.0, %v526
      %528 = vdwg.mxu0
      %v529 = vmul.f32 %v262, 0.5
      %531 = vrot.lane.b32.xlu0 %v529, 127
      %v532 = vpop.permute.xlu0 %531
      %v534 = vsub.f32 %v262, %v532
      %v535 = vmul.f32 %v534, 0.6931472
      %v536 = vmul.f32 %v535, 1.442695
      %v537 = vpow.pop %v536
      %v538 = vadd.f32 %v262, %v532
      %v539 = vmul.f32 %v538, 0.6931472
      %v540 = vmul.f32 %v539, 1.442695
      %v541 = vpow.pop %v540
      %v542 = vmul.f32 %v454, 0.6931472
      %v543 = vmul.f32 %v542, 1.442695
      %v544 = vpow.pop %v543
      %v545 = vmul.f32 %v544, %v456
      %v546 = vadd.f32 %v383, %v545
      %548 = vset.pattern.permute.xlu0 2
      %549 = vperm.xlu0 %548, %v537
      %v550 = vpop.permute.xlu0 %549
      %v552 = vmul.f32 %v550, %v546
      %v553 = vmul.f32 %v544, %v525
      %v554 = vadd.f32 %v385, %v553
      %556 = vset.pattern.permute.xlu0 2
      %557 = vperm.xlu0 %556, %v541
      %v558 = vpop.permute.xlu0 %557
      %v560 = vmul.f32 %v558, %v554
      %561 = vset.pattern.permute.xlu0 2
      %562 = vperm.xlu0 %561, %v262
      %v563 = vpop.permute.xlu0 %562
      %v565 = vadd.f32 %v563, %v454
      %v566 = vadd.f32 %v565, %v527
      %v567 = vsub.f32 %v566, 3.0
      %v568 = vmul.f32 %v567, %v567
      %v569 = vsub.f32 0.0, %v568
      %v570 = vmul.f32 %v569, 0.5
      %v571 = vsub.f32 %v567, 1.0
      %v572 = vmul.f32 %v571, %v571
      %v573 = vsub.f32 0.0, %v572
      %v574 = vmul.f32 %v573, 0.5
      %v575 = vmax.f32 %v570, %v574
      %v576 = vsub.f32 %v570, %v575
      %v577 = vmul.f32 %v576, 1.442695
      %v578 = vpow.pop %v577
      %v579 = vsub.f32 %v574, %v575
      %v580 = vmul.f32 %v579, 1.442695
      %v581 = vpow.pop %v580
      %v582 = vadd.f32 %v578, %v581
      %v583 = vrcp.pop %v582
      %v584 = vmul.f32 1.0, %v583
      %v585 = vmul.f32 %v578, %v584
      %v586 = vmul.f32 %v581, %v584
      %v587 = vld [vmem:[%s2] sm:$0xff]
      %v588 = vld [vmem:[%s2 + $0x8] sm:$0xff]
      %v589 = vld [vmem:[%s2 + $0x10] sm:$0xff]
      %v590 = vld [vmem:[%s2 + $0x18] sm:$0xff]
      %v591 = vld [vmem:[%s2 + $0x20] sm:$0xff]
      %v592 = vld [vmem:[%s2 + $0x28] sm:$0xff]
      %v593 = vld [vmem:[%s2 + $0x30] sm:$0x3]
      %v594 = vld [vmem:[%s2 + $0x38] sm:$0x3]
      %595 = vset.pattern.permute.xlu0 0
      %596 = vperm.xlu0 %595, %v262
      %v597 = vpop.permute.xlu0 %596
      %v599 = vmul.f32 %v597, %v587
      %v600 = vmul.f32 %v597, %v588
      %v601 = vrot.slane %v599, 4
      %v602 = vadd.f32 %v599, %v601
      %v603 = vrot.slane %v602, 2
      %v604 = vadd.f32 %v602, %v603
      %v605 = vrot.slane %v604, 1
      %v606 = vadd.f32 %v604, %v605
      %vm607 = vcmask 130048
      %v608 = vsel %vm607, %v600, 0.0
      %v609 = vrot.slane %v608, 4
      %v610 = vadd.f32 %v608, %v609
      %v611 = vrot.slane %v610, 2
      %v612 = vadd.f32 %v610, %v611
      %v613 = vrot.slane %v612, 1
      %v614 = vadd.f32 %v612, %v613
      %615 = vset.pattern.permute.xlu0 1
      %616 = vperm.xlu0 %615, %v262
      %v617 = vpop.permute.xlu0 %616
      %v619 = vmul.f32 %v617, %v587
      %v620 = vmul.f32 %v617, %v588
      %v621 = vrot.slane %v619, 4
      %v622 = vadd.f32 %v619, %v621
      %v623 = vrot.slane %v622, 2
      %v624 = vadd.f32 %v622, %v623
      %v625 = vrot.slane %v624, 1
      %v626 = vadd.f32 %v624, %v625
      %v627 = vsel %vm607, %v620, 0.0
      %v628 = vrot.slane %v627, 4
      %v629 = vadd.f32 %v627, %v628
      %v630 = vrot.slane %v629, 2
      %v631 = vadd.f32 %v629, %v630
      %v632 = vrot.slane %v631, 1
      %v633 = vadd.f32 %v631, %v632
      %v634 = vlaneseq
      %v635 = vshrl.u32 %v634, 7
      %v636 = vadd.s32 %v635, 8
      %v637 = vcvt.s32.f32 %v635
      %v638 = vcvt.s32.f32 %v636
      %vm639 = vcmask 146432
      %v641 = vsel %vm639, %v552, 0
      %vm643 = vcmask 1041408
      %v645 = vsel %vm643, %v593, 0
      %v648 = vsel %vm643, %v594, 0
      %650 = vmatprep.subr.mxu0 %v590
      %651 = vmatpush1.msra.mxu0 %v589
      %652 = vmatprep.subr.mxu0 %v592
      %653 = vmatpush1.msra.mxu0 %v591
      %654 = vmatprep.subr.mxu0 %v648
      %655 = vmatpush1.msra.mxu0 %v645
      %656 = vmatprep.subr.mxu0 0.0
      %657 = vmatpush1.msra.mxu0 0.0
      %658 = vmatprep.subr.mxu0 0.0
      %659 = vmatpush1.msra.mxu0 0.0
      %660 = vmatprep.subr.mxu0 0.0
      %661 = vmatpush1.msra.mxu0 0.0
      %662 = vmatprep.subr.mxu0 0.0
      %663 = vmatpush1.msra.mxu0 0.0
      %664 = vmatprep.subr.mxu0 0.0
      %665 = vmatpush1.msra.mxu0 0.0
      %666 = vmatprep.subr.mxu0 0.0
      %667 = vmatpush1.msra.mxu0 0.0
      %668 = vmatprep.subr.mxu0 0.0
      %669 = vmatpush1.msra.mxu0 0.0
      %670 = vmatprep.subr.mxu0 0.0
      %671 = vmatpush1.msra.mxu0 0.0
      %672 = vmatprep.subr.mxu0 0.0
      %673 = vmatpush1.msra.mxu0 0.0
      %674 = vmatprep.subr.mxu0 0.0
      %675 = vmatpush1.msra.mxu0 0.0
      %676 = vmatprep.subr.mxu0 0.0
      %677 = vmatpush1.msra.mxu0 0.0
      %678 = vmatprep.subr.mxu0 0.0
      %679 = vmatpush1.msra.mxu0 0.0
      %680 = vmatprep.subr.mxu0 0.0
      %681 = vmatpush1.msra.mxu0 0.0
      %682 = vmatprep.subr.mxu0 0.0
      %683 = vmatpush1.msra.mxu0 0.0
      %684 = vmatprep.subr.mxu0 0.0
      %685 = vmatpush1.msra.mxu0 0.0
      %686 = vmatprep.subr.mxu0 0.0
      %687 = vmatpush1.msra.mxu0 0.0
      %688 = vmatprep.subr.mxu0 0.0
      %689 = vmatpush1.msra.mxu0 0.0
      %690 = vmatprep.subr.mxu0 0.0
      %691 = vmatpush1.msra.mxu0 0.0
      %692 = vmatprep.subr.mxu0 0.0
      %693 = vmatpush1.msra.mxu0 0.0
      %694 = vmatprep.subr.mxu0 0.0
      %695 = vmatpush1.msra.mxu0 0.0
      %696 = vmatprep.subr.mxu0 0.0
      %697 = vmatpush1.msra.mxu0 0.0
      %698 = vmatprep.subr.mxu0 0.0
      %699 = vmatpush1.msra.mxu0 0.0
      %700 = vmatprep.subr.mxu0 0.0
      %701 = vmatpush1.msra.mxu0 0.0
      %702 = vmatprep.subr.mxu0 0.0
      %703 = vmatpush1.msra.mxu0 0.0
      %704 = vmatprep.subr.mxu0 0.0
      %705 = vmatpush1.msra.mxu0 0.0
      %706 = vmatprep.subr.mxu0 0.0
      %707 = vmatpush1.msra.mxu0 0.0
      %708 = vmatprep.subr.mxu0 0.0
      %709 = vmatpush1.msra.mxu0 0.0
      %710 = vmatprep.subr.mxu0 0.0
      %711 = vmatpush1.msra.mxu0 0.0
      %712 = vmatprep.subr.mxu0 0.0
      %713 = vmatpush1.msra.mxu0 0.0
      %714 = vmatprep.mubr.f32.mxu0 0.0
      %715 = vmatmul.mubr.f32.gmra.mrb[0].mxu0 %v641
      %v716 = vpop.f32.mrb[0].mxu0
      %v717 = vadd.f32 0.0, %v716
      %v718 = vpop.f32.mrb[0].mxu0
      %v719 = vadd.f32 0.0, %v718
      %720 = vdwg.mxu0
      %v721 = vmul.f32 %v717, %v587
      %v722 = vmul.f32 %v719, %v588
      %v723 = vrot.slane %v721, 4
      %v724 = vadd.f32 %v721, %v723
      %v725 = vrot.slane %v724, 2
      %v726 = vadd.f32 %v724, %v725
      %v727 = vrot.slane %v726, 1
      %v728 = vadd.f32 %v726, %v727
      %v729 = vsel %vm607, %v722, 0.0
      %v730 = vrot.slane %v729, 4
      %v731 = vadd.f32 %v729, %v730
      %v732 = vrot.slane %v731, 2
      %v733 = vadd.f32 %v731, %v732
      %v734 = vrot.slane %v733, 1
      %v735 = vadd.f32 %v733, %v734
      %v736 = vadd.f32 %v728, %v606
      %v737 = vadd.f32 %v735, %v614
      %v739 = vsel %vm639, %v560, 0
      %741 = vmatprep.subr.mxu0 %v590
      %742 = vmatpush1.msra.mxu0 %v589
      %743 = vmatprep.subr.mxu0 %v592
      %744 = vmatpush1.msra.mxu0 %v591
      %745 = vmatprep.subr.mxu0 %v648
      %746 = vmatpush1.msra.mxu0 %v645
      %747 = vmatprep.subr.mxu0 0.0
      %748 = vmatpush1.msra.mxu0 0.0
      %749 = vmatprep.subr.mxu0 0.0
      %750 = vmatpush1.msra.mxu0 0.0
      %751 = vmatprep.subr.mxu0 0.0
      %752 = vmatpush1.msra.mxu0 0.0
      %753 = vmatprep.subr.mxu0 0.0
      %754 = vmatpush1.msra.mxu0 0.0
      %755 = vmatprep.subr.mxu0 0.0
      %756 = vmatpush1.msra.mxu0 0.0
      %757 = vmatprep.subr.mxu0 0.0
      %758 = vmatpush1.msra.mxu0 0.0
      %759 = vmatprep.subr.mxu0 0.0
      %760 = vmatpush1.msra.mxu0 0.0
      %761 = vmatprep.subr.mxu0 0.0
      %762 = vmatpush1.msra.mxu0 0.0
      %763 = vmatprep.subr.mxu0 0.0
      %764 = vmatpush1.msra.mxu0 0.0
      %765 = vmatprep.subr.mxu0 0.0
      %766 = vmatpush1.msra.mxu0 0.0
      %767 = vmatprep.subr.mxu0 0.0
      %768 = vmatpush1.msra.mxu0 0.0
      %769 = vmatprep.subr.mxu0 0.0
      %770 = vmatpush1.msra.mxu0 0.0
      %771 = vmatprep.subr.mxu0 0.0
      %772 = vmatpush1.msra.mxu0 0.0
      %773 = vmatprep.subr.mxu0 0.0
      %774 = vmatpush1.msra.mxu0 0.0
      %775 = vmatprep.subr.mxu0 0.0
      %776 = vmatpush1.msra.mxu0 0.0
      %777 = vmatprep.subr.mxu0 0.0
      %778 = vmatpush1.msra.mxu0 0.0
      %779 = vmatprep.subr.mxu0 0.0
      %780 = vmatpush1.msra.mxu0 0.0
      %781 = vmatprep.subr.mxu0 0.0
      %782 = vmatpush1.msra.mxu0 0.0
      %783 = vmatprep.subr.mxu0 0.0
      %784 = vmatpush1.msra.mxu0 0.0
      %785 = vmatprep.subr.mxu0 0.0
      %786 = vmatpush1.msra.mxu0 0.0
      %787 = vmatprep.subr.mxu0 0.0
      %788 = vmatpush1.msra.mxu0 0.0
      %789 = vmatprep.subr.mxu0 0.0
      %790 = vmatpush1.msra.mxu0 0.0
      %791 = vmatprep.subr.mxu0 0.0
      %792 = vmatpush1.msra.mxu0 0.0
      %793 = vmatprep.subr.mxu0 0.0
      %794 = vmatpush1.msra.mxu0 0.0
      %795 = vmatprep.subr.mxu0 0.0
      %796 = vmatpush1.msra.mxu0 0.0
      %797 = vmatprep.subr.mxu0 0.0
      %798 = vmatpush1.msra.mxu0 0.0
      %799 = vmatprep.subr.mxu0 0.0
      %800 = vmatpush1.msra.mxu0 0.0
      %801 = vmatprep.subr.mxu0 0.0
      %802 = vmatpush1.msra.mxu0 0.0
      %803 = vmatprep.subr.mxu0 0.0
      %804 = vmatpush1.msra.mxu0 0.0
      %805 = vmatprep.mubr.f32.mxu0 0.0
      %806 = vmatmul.mubr.f32.gmra.mrb[0].mxu0 %v739
      %v807 = vpop.f32.mrb[0].mxu0
      %v808 = vadd.f32 0.0, %v807
      %v809 = vpop.f32.mrb[0].mxu0
      %v810 = vadd.f32 0.0, %v809
      %811 = vdwg.mxu0
      %v812 = vmul.f32 %v808, %v587
      %v813 = vmul.f32 %v810, %v588
      %v814 = vrot.slane %v812, 4
      %v815 = vadd.f32 %v812, %v814
      %v816 = vrot.slane %v815, 2
      %v817 = vadd.f32 %v815, %v816
      %v818 = vrot.slane %v817, 1
      %v819 = vadd.f32 %v817, %v818
      %v820 = vsel %vm607, %v813, 0.0
      %v821 = vrot.slane %v820, 4
      %v822 = vadd.f32 %v820, %v821
      %v823 = vrot.slane %v822, 2
      %v824 = vadd.f32 %v822, %v823
      %v825 = vrot.slane %v824, 1
      %v826 = vadd.f32 %v824, %v825
      %v827 = vadd.f32 %v819, %v626
      %v828 = vadd.f32 %v826, %v633
      %v830 = vsel %vm639, %v585, 0
      %832 = vmatprep.subr.mxu0 %v590
      %833 = vmatpush1.msra.mxu0 %v589
      %834 = vmatprep.subr.mxu0 %v592
      %835 = vmatpush1.msra.mxu0 %v591
      %836 = vmatprep.subr.mxu0 %v648
      %837 = vmatpush1.msra.mxu0 %v645
      %838 = vmatprep.subr.mxu0 0.0
      %839 = vmatpush1.msra.mxu0 0.0
      %840 = vmatprep.subr.mxu0 0.0
      %841 = vmatpush1.msra.mxu0 0.0
      %842 = vmatprep.subr.mxu0 0.0
      %843 = vmatpush1.msra.mxu0 0.0
      %844 = vmatprep.subr.mxu0 0.0
      %845 = vmatpush1.msra.mxu0 0.0
      %846 = vmatprep.subr.mxu0 0.0
      %847 = vmatpush1.msra.mxu0 0.0
      %848 = vmatprep.subr.mxu0 0.0
      %849 = vmatpush1.msra.mxu0 0.0
      %850 = vmatprep.subr.mxu0 0.0
      %851 = vmatpush1.msra.mxu0 0.0
      %852 = vmatprep.subr.mxu0 0.0
      %853 = vmatpush1.msra.mxu0 0.0
      %854 = vmatprep.subr.mxu0 0.0
      %855 = vmatpush1.msra.mxu0 0.0
      %856 = vmatprep.subr.mxu0 0.0
      %857 = vmatpush1.msra.mxu0 0.0
      %858 = vmatprep.subr.mxu0 0.0
      %859 = vmatpush1.msra.mxu0 0.0
      %860 = vmatprep.subr.mxu0 0.0
      %861 = vmatpush1.msra.mxu0 0.0
      %862 = vmatprep.subr.mxu0 0.0
      %863 = vmatpush1.msra.mxu0 0.0
      %864 = vmatprep.subr.mxu0 0.0
      %865 = vmatpush1.msra.mxu0 0.0
      %866 = vmatprep.subr.mxu0 0.0
      %867 = vmatpush1.msra.mxu0 0.0
      %868 = vmatprep.subr.mxu0 0.0
      %869 = vmatpush1.msra.mxu0 0.0
      %870 = vmatprep.subr.mxu0 0.0
      %871 = vmatpush1.msra.mxu0 0.0
      %872 = vmatprep.subr.mxu0 0.0
      %873 = vmatpush1.msra.mxu0 0.0
      %874 = vmatprep.subr.mxu0 0.0
      %875 = vmatpush1.msra.mxu0 0.0
      %876 = vmatprep.subr.mxu0 0.0
      %877 = vmatpush1.msra.mxu0 0.0
      %878 = vmatprep.subr.mxu0 0.0
      %879 = vmatpush1.msra.mxu0 0.0
      %880 = vmatprep.subr.mxu0 0.0
      %881 = vmatpush1.msra.mxu0 0.0
      %882 = vmatprep.subr.mxu0 0.0
      %883 = vmatpush1.msra.mxu0 0.0
      %884 = vmatprep.subr.mxu0 0.0
      %885 = vmatpush1.msra.mxu0 0.0
      %886 = vmatprep.subr.mxu0 0.0
      %887 = vmatpush1.msra.mxu0 0.0
      %888 = vmatprep.subr.mxu0 0.0
      %889 = vmatpush1.msra.mxu0 0.0
      %890 = vmatprep.subr.mxu0 0.0
      %891 = vmatpush1.msra.mxu0 0.0
      %892 = vmatprep.subr.mxu0 0.0
      %893 = vmatpush1.msra.mxu0 0.0
      %894 = vmatprep.subr.mxu0 0.0
      %895 = vmatpush1.msra.mxu0 0.0
      %896 = vmatprep.mubr.f32.mxu0 0.0
      %897 = vmatmul.mubr.f32.gmra.mrb[0].mxu0 %v830
      %v898 = vpop.f32.mrb[0].mxu0
      %v899 = vadd.f32 0.0, %v898
      %v900 = vpop.f32.mrb[0].mxu0
      %v901 = vadd.f32 0.0, %v900
      %902 = vdwg.mxu0
      %v903 = vmul.f32 %v899, %v587
      %v904 = vmul.f32 %v901, %v588
      %v905 = vrot.slane %v903, 4
      %v906 = vadd.f32 %v903, %v905
      %v907 = vrot.slane %v906, 2
      %v908 = vadd.f32 %v906, %v907
      %v909 = vrot.slane %v908, 1
      %v910 = vadd.f32 %v908, %v909
      %v911 = vsel %vm607, %v904, 0.0
      %v912 = vrot.slane %v911, 4
      %v913 = vadd.f32 %v911, %v912
      %v914 = vrot.slane %v913, 2
      %v915 = vadd.f32 %v913, %v914
      %v916 = vrot.slane %v915, 1
      %v917 = vadd.f32 %v915, %v916
      %v919 = vsel %vm639, %v586, 0
      %921 = vmatprep.subr.mxu0 %v590
      %922 = vmatpush1.msra.mxu0 %v589
      %923 = vmatprep.subr.mxu0 %v592
      %924 = vmatpush1.msra.mxu0 %v591
      %925 = vmatprep.subr.mxu0 %v648
      %926 = vmatpush1.msra.mxu0 %v645
      %927 = vmatprep.subr.mxu0 0.0
      %928 = vmatpush1.msra.mxu0 0.0
      %929 = vmatprep.subr.mxu0 0.0
      %930 = vmatpush1.msra.mxu0 0.0
      %931 = vmatprep.subr.mxu0 0.0
      %932 = vmatpush1.msra.mxu0 0.0
      %933 = vmatprep.subr.mxu0 0.0
      %934 = vmatpush1.msra.mxu0 0.0
      %935 = vmatprep.subr.mxu0 0.0
      %936 = vmatpush1.msra.mxu0 0.0
      %937 = vmatprep.subr.mxu0 0.0
      %938 = vmatpush1.msra.mxu0 0.0
      %939 = vmatprep.subr.mxu0 0.0
      %940 = vmatpush1.msra.mxu0 0.0
      %941 = vmatprep.subr.mxu0 0.0
      %942 = vmatpush1.msra.mxu0 0.0
      %943 = vmatprep.subr.mxu0 0.0
      %944 = vmatpush1.msra.mxu0 0.0
      %945 = vmatprep.subr.mxu0 0.0
      %946 = vmatpush1.msra.mxu0 0.0
      %947 = vmatprep.subr.mxu0 0.0
      %948 = vmatpush1.msra.mxu0 0.0
      %949 = vmatprep.subr.mxu0 0.0
      %950 = vmatpush1.msra.mxu0 0.0
      %951 = vmatprep.subr.mxu0 0.0
      %952 = vmatpush1.msra.mxu0 0.0
      %953 = vmatprep.subr.mxu0 0.0
      %954 = vmatpush1.msra.mxu0 0.0
      %955 = vmatprep.subr.mxu0 0.0
      %956 = vmatpush1.msra.mxu0 0.0
      %957 = vmatprep.subr.mxu0 0.0
      %958 = vmatpush1.msra.mxu0 0.0
      %959 = vmatprep.subr.mxu0 0.0
      %960 = vmatpush1.msra.mxu0 0.0
      %961 = vmatprep.subr.mxu0 0.0
      %962 = vmatpush1.msra.mxu0 0.0
      %963 = vmatprep.subr.mxu0 0.0
      %964 = vmatpush1.msra.mxu0 0.0
      %965 = vmatprep.subr.mxu0 0.0
      %966 = vmatpush1.msra.mxu0 0.0
      %967 = vmatprep.subr.mxu0 0.0
      %968 = vmatpush1.msra.mxu0 0.0
      %969 = vmatprep.subr.mxu0 0.0
      %970 = vmatpush1.msra.mxu0 0.0
      %971 = vmatprep.subr.mxu0 0.0
      %972 = vmatpush1.msra.mxu0 0.0
      %973 = vmatprep.subr.mxu0 0.0
      %974 = vmatpush1.msra.mxu0 0.0
      %975 = vmatprep.subr.mxu0 0.0
      %976 = vmatpush1.msra.mxu0 0.0
      %977 = vmatprep.subr.mxu0 0.0
      %978 = vmatpush1.msra.mxu0 0.0
      %979 = vmatprep.subr.mxu0 0.0
      %980 = vmatpush1.msra.mxu0 0.0
      %981 = vmatprep.subr.mxu0 0.0
      %982 = vmatpush1.msra.mxu0 0.0
      %983 = vmatprep.subr.mxu0 0.0
      %984 = vmatpush1.msra.mxu0 0.0
      %985 = vmatprep.mubr.f32.mxu0 0.0
      %986 = vmatmul.mubr.f32.gmra.mrb[0].mxu0 %v919
      %v987 = vpop.f32.mrb[0].mxu0
      %v988 = vadd.f32 0.0, %v987
      %v989 = vpop.f32.mrb[0].mxu0
      %v990 = vadd.f32 0.0, %v989
      %991 = vdwg.mxu0
      %v992 = vmul.f32 %v988, %v587
      %v993 = vmul.f32 %v990, %v588
      %v994 = vrot.slane %v992, 4
      %v995 = vadd.f32 %v992, %v994
      %v996 = vrot.slane %v995, 2
      %v997 = vadd.f32 %v995, %v996
      %v998 = vrot.slane %v997, 1
      %v999 = vadd.f32 %v997, %v998
      %v1000 = vsel %vm607, %v993, 0.0
      %v1001 = vrot.slane %v1000, 4
      %v1002 = vadd.f32 %v1000, %v1001
      %v1003 = vrot.slane %v1002, 2
      %v1004 = vadd.f32 %v1002, %v1003
      %v1005 = vrot.slane %v1004, 1
      %v1006 = vadd.f32 %v1004, %v1005
      %v1007 = vmul.f32 %v736, 0.125
      %v1008 = vmul.f32 %v737, 0.125
      %v1009 = vsub.f32 %v1007, 0.5
      %v1010 = vsub.f32 %v1008, 0.5
      %v1011 = vmul.f32 %v827, 0.125
      %v1012 = vmul.f32 %v828, 0.125
      %v1013 = vsub.f32 %v1011, 0.5
      %v1014 = vsub.f32 %v1012, 0.5
      %v1015 = vsub.f32 %v637, %v1009
      %v1016 = vsub.f32 %v637, %v1010
      %v1017 = vsub.f32 %v638, %v1009
      %v1018 = vsub.f32 %v638, %v1010
      %v1019 = vand.u32 2147483647, %v1015
      %v1020 = vand.u32 2147483647, %v1016
      %v1021 = vand.u32 2147483647, %v1017
      %v1022 = vand.u32 2147483647, %v1018
      %v1023 = vsub.f32 1.0, %v1019
      %v1024 = vsub.f32 1.0, %v1020
      %v1025 = vsub.f32 1.0, %v1021
      %v1026 = vsub.f32 1.0, %v1022
      %v1027 = vmax.f32 %v1023, 0.0
      %v1028 = vmax.f32 %v1024, 0.0
      %v1029 = vmax.f32 %v1025, 0.0
      %v1030 = vmax.f32 %v1026, 0.0
      %v1031 = vsub.f32 %v637, %v1013
      %v1032 = vsub.f32 %v637, %v1014
      %v1033 = vsub.f32 %v638, %v1013
      %v1034 = vsub.f32 %v638, %v1014
      %v1035 = vand.u32 2147483647, %v1031
      %v1036 = vand.u32 2147483647, %v1032
      %v1037 = vand.u32 2147483647, %v1033
      %v1038 = vand.u32 2147483647, %v1034
      %v1039 = vsub.f32 1.0, %v1035
      %v1040 = vsub.f32 1.0, %v1036
      %v1041 = vsub.f32 1.0, %v1037
      %v1042 = vsub.f32 1.0, %v1038
      %v1043 = vmax.f32 %v1039, 0.0
      %v1044 = vmax.f32 %v1040, 0.0
      %v1045 = vmax.f32 %v1041, 0.0
      %v1046 = vmax.f32 %v1042, 0.0
      %v1047 = vmul.f32 %v1043, %v910
      %v1048 = vmul.f32 %v1044, %v917
      %v1049 = vmul.f32 %v1045, %v910
      %v1050 = vmul.f32 %v1046, %v917
      %v1055 = vcombine.low %v1047, %v1048
      %v1056 = vcombine.high %v1047, %v1048
      %v1058 = vunpack.c.l.s4 1966171168
      %v1059 = vunpack.c.0.s8 %v1058
      %v1060 = vlaneseq
      %v1061 = vshrl.u32 %v1060, 7
      %v1062 = vsub.s32 %v1059, %v1061
      %v1063 = vrot.slane %v1055, %v1062
      %v1065 = vunpack.c.l.s4 1966171168
      %v1066 = vunpack.c.0.s8 %v1065
      %v1067 = vlaneseq
      %v1068 = vshrl.u32 %v1067, 7
      %v1069 = vsub.s32 %v1066, %v1068
      %v1070 = vrot.slane %v1056, %v1069
      %v1071 = vcombine.high %v1063, %v1063
      %v1072 = vcombine.high %v1070, %v1070
      %v1074 = vunpack.c.l.s4 1966171168
      %v1075 = vunpack.c.0.s8 %v1074
      %v1076 = vlaneseq
      %v1077 = vshrl.u32 %v1076, 7
      %v1078 = vsub.s32 %v1075, %v1077
      %v1079 = vrot.slane %v1063, %v1078
      %v1081 = vunpack.c.l.s4 1966171168
      %v1082 = vunpack.c.0.s8 %v1081
      %v1083 = vlaneseq
      %v1084 = vshrl.u32 %v1083, 7
      %v1085 = vsub.s32 %v1082, %v1084
      %v1086 = vrot.slane %v1070, %v1085
      %v1088 = vunpack.c.l.s4 1966171168
      %v1089 = vunpack.c.0.s8 %v1088
      %v1090 = vlaneseq
      %v1091 = vshrl.u32 %v1090, 7
      %v1092 = vsub.s32 %v1089, %v1091
      %v1093 = vrot.slane %v1071, %v1092
      %v1095 = vunpack.c.l.s4 1966171168
      %v1096 = vunpack.c.0.s8 %v1095
      %v1097 = vlaneseq
      %v1098 = vshrl.u32 %v1097, 7
      %v1099 = vsub.s32 %v1096, %v1098
      %v1100 = vrot.slane %v1072, %v1099
      %v1101 = vcombine.high %v1079, %v1079
      %v1102 = vcombine.high %v1086, %v1086
      %v1103 = vcombine.high %v1093, %v1093
      %v1104 = vcombine.high %v1100, %v1100
      %v1105 = vcombine.low %v1049, %v1050
      %v1106 = vcombine.high %v1049, %v1050
      %v1108 = vunpack.c.l.s4 1966171168
      %v1109 = vunpack.c.0.s8 %v1108
      %v1110 = vlaneseq
      %v1111 = vshrl.u32 %v1110, 7
      %v1112 = vsub.s32 %v1109, %v1111
      %v1113 = vrot.slane %v1105, %v1112
      %v1115 = vunpack.c.l.s4 1966171168
      %v1116 = vunpack.c.0.s8 %v1115
      %v1117 = vlaneseq
      %v1118 = vshrl.u32 %v1117, 7
      %v1119 = vsub.s32 %v1116, %v1118
      %v1120 = vrot.slane %v1106, %v1119
      %v1121 = vcombine.high %v1113, %v1113
      %v1122 = vcombine.high %v1120, %v1120
      %v1124 = vunpack.c.l.s4 1966171168
      %v1125 = vunpack.c.0.s8 %v1124
      %v1126 = vlaneseq
      %v1127 = vshrl.u32 %v1126, 7
      %v1128 = vsub.s32 %v1125, %v1127
      %v1129 = vrot.slane %v1113, %v1128
      %v1131 = vunpack.c.l.s4 1966171168
      %v1132 = vunpack.c.0.s8 %v1131
      %v1133 = vlaneseq
      %v1134 = vshrl.u32 %v1133, 7
      %v1135 = vsub.s32 %v1132, %v1134
      %v1136 = vrot.slane %v1120, %v1135
      %v1138 = vunpack.c.l.s4 1966171168
      %v1139 = vunpack.c.0.s8 %v1138
      %v1140 = vlaneseq
      %v1141 = vshrl.u32 %v1140, 7
      %v1142 = vsub.s32 %v1139, %v1141
      %v1143 = vrot.slane %v1121, %v1142
      %v1145 = vunpack.c.l.s4 1966171168
      %v1146 = vunpack.c.0.s8 %v1145
      %v1147 = vlaneseq
      %v1148 = vshrl.u32 %v1147, 7
      %v1149 = vsub.s32 %v1146, %v1148
      %v1150 = vrot.slane %v1122, %v1149
      %v1151 = vcombine.high %v1129, %v1129
      %v1152 = vcombine.high %v1136, %v1136
      %v1153 = vcombine.high %v1143, %v1143
      %v1154 = vcombine.high %v1150, %v1150
      %v1155 = vlaneseq
      %v1156 = vshrl.u32 %v1155, 7
      %v1157 = vsub.s32 0, %v1156
      %v1158 = vrot.slane %v1079, %v1157
      %v1159 = vlaneseq
      %v1160 = vshrl.u32 %v1159, 7
      %v1161 = vsub.s32 1, %v1160
      %v1162 = vrot.slane %v1079, %v1161
      %v1163 = vlaneseq
      %v1164 = vshrl.u32 %v1163, 7
      %v1165 = vsub.s32 0, %v1164
      %v1166 = vrot.slane %v1093, %v1165
      %v1167 = vlaneseq
      %v1168 = vshrl.u32 %v1167, 7
      %v1169 = vsub.s32 1, %v1168
      %v1170 = vrot.slane %v1093, %v1169
      %v1171 = vlaneseq
      %v1172 = vshrl.u32 %v1171, 7
      %v1173 = vsub.s32 0, %v1172
      %v1174 = vrot.slane %v1101, %v1173
      %v1175 = vlaneseq
      %v1176 = vshrl.u32 %v1175, 7
      %v1177 = vsub.s32 1, %v1176
      %v1178 = vrot.slane %v1101, %v1177
      %v1179 = vlaneseq
      %v1180 = vshrl.u32 %v1179, 7
      %v1181 = vsub.s32 0, %v1180
      %v1182 = vrot.slane %v1103, %v1181
      %v1183 = vlaneseq
      %v1184 = vshrl.u32 %v1183, 7
      %v1185 = vsub.s32 1, %v1184
      %v1186 = vrot.slane %v1103, %v1185
      %v1187 = vlaneseq
      %v1188 = vshrl.u32 %v1187, 7
      %v1189 = vsub.s32 0, %v1188
      %v1190 = vrot.slane %v1086, %v1189
      %v1191 = vlaneseq
      %v1192 = vshrl.u32 %v1191, 7
      %v1193 = vsub.s32 1, %v1192
      %v1194 = vrot.slane %v1086, %v1193
      %v1195 = vlaneseq
      %v1196 = vshrl.u32 %v1195, 7
      %v1197 = vsub.s32 0, %v1196
      %v1198 = vrot.slane %v1100, %v1197
      %v1199 = vlaneseq
      %v1200 = vshrl.u32 %v1199, 7
      %v1201 = vsub.s32 1, %v1200
      %v1202 = vrot.slane %v1100, %v1201
      %v1203 = vlaneseq
      %v1204 = vshrl.u32 %v1203, 7
      %v1205 = vsub.s32 0, %v1204
      %v1206 = vrot.slane %v1102, %v1205
      %v1207 = vlaneseq
      %v1208 = vshrl.u32 %v1207, 7
      %v1209 = vsub.s32 1, %v1208
      %v1210 = vrot.slane %v1102, %v1209
      %v1211 = vlaneseq
      %v1212 = vshrl.u32 %v1211, 7
      %v1213 = vsub.s32 0, %v1212
      %v1214 = vrot.slane %v1104, %v1213
      %v1215 = vlaneseq
      %v1216 = vshrl.u32 %v1215, 7
      %v1217 = vsub.s32 1, %v1216
      %v1218 = vrot.slane %v1104, %v1217
      %v1219 = vlaneseq
      %v1220 = vshrl.u32 %v1219, 7
      %v1221 = vsub.s32 0, %v1220
      %v1222 = vrot.slane %v1129, %v1221
      %v1223 = vlaneseq
      %v1224 = vshrl.u32 %v1223, 7
      %v1225 = vsub.s32 1, %v1224
      %v1226 = vrot.slane %v1129, %v1225
      %v1227 = vlaneseq
      %v1228 = vshrl.u32 %v1227, 7
      %v1229 = vsub.s32 0, %v1228
      %v1230 = vrot.slane %v1143, %v1229
      %v1231 = vlaneseq
      %v1232 = vshrl.u32 %v1231, 7
      %v1233 = vsub.s32 1, %v1232
      %v1234 = vrot.slane %v1143, %v1233
      %v1235 = vlaneseq
      %v1236 = vshrl.u32 %v1235, 7
      %v1237 = vsub.s32 0, %v1236
      %v1238 = vrot.slane %v1151, %v1237
      %v1239 = vlaneseq
      %v1240 = vshrl.u32 %v1239, 7
      %v1241 = vsub.s32 1, %v1240
      %v1242 = vrot.slane %v1151, %v1241
      %v1243 = vlaneseq
      %v1244 = vshrl.u32 %v1243, 7
      %v1245 = vsub.s32 0, %v1244
      %v1246 = vrot.slane %v1153, %v1245
      %v1247 = vlaneseq
      %v1248 = vshrl.u32 %v1247, 7
      %v1249 = vsub.s32 1, %v1248
      %v1250 = vrot.slane %v1153, %v1249
      %v1251 = vlaneseq
      %v1252 = vshrl.u32 %v1251, 7
      %v1253 = vsub.s32 0, %v1252
      %v1254 = vrot.slane %v1136, %v1253
      %v1255 = vlaneseq
      %v1256 = vshrl.u32 %v1255, 7
      %v1257 = vsub.s32 1, %v1256
      %v1258 = vrot.slane %v1136, %v1257
      %v1259 = vlaneseq
      %v1260 = vshrl.u32 %v1259, 7
      %v1261 = vsub.s32 0, %v1260
      %v1262 = vrot.slane %v1150, %v1261
      %v1263 = vlaneseq
      %v1264 = vshrl.u32 %v1263, 7
      %v1265 = vsub.s32 1, %v1264
      %v1266 = vrot.slane %v1150, %v1265
      %v1267 = vlaneseq
      %v1268 = vshrl.u32 %v1267, 7
      %v1269 = vsub.s32 0, %v1268
      %v1270 = vrot.slane %v1152, %v1269
      %v1271 = vlaneseq
      %v1272 = vshrl.u32 %v1271, 7
      %v1273 = vsub.s32 1, %v1272
      %v1274 = vrot.slane %v1152, %v1273
      %v1275 = vlaneseq
      %v1276 = vshrl.u32 %v1275, 7
      %v1277 = vsub.s32 0, %v1276
      %v1278 = vrot.slane %v1154, %v1277
      %v1279 = vlaneseq
      %v1280 = vshrl.u32 %v1279, 7
      %v1281 = vsub.s32 1, %v1280
      %v1282 = vrot.slane %v1154, %v1281
      %v1315 = vmul.f32 %v1158, %v1027
      %v1316 = vmul.f32 %v1162, %v1028
      %v1317 = vmul.f32 %v1158, %v1029
      %v1318 = vmul.f32 %v1162, %v1030
      %v1319 = vmul.f32 %v1166, %v1027
      %v1320 = vmul.f32 %v1170, %v1028
      %v1321 = vmul.f32 %v1166, %v1029
      %v1322 = vmul.f32 %v1170, %v1030
      %v1323 = vmul.f32 %v1174, %v1027
      %v1324 = vmul.f32 %v1178, %v1028
      %v1325 = vmul.f32 %v1174, %v1029
      %v1326 = vmul.f32 %v1178, %v1030
      %v1327 = vmul.f32 %v1182, %v1027
      %v1328 = vmul.f32 %v1186, %v1028
      %v1329 = vmul.f32 %v1182, %v1029
      %v1330 = vmul.f32 %v1186, %v1030
      %v1331 = vmul.f32 %v1190, %v1027
      %v1332 = vmul.f32 %v1194, %v1028
      %v1333 = vmul.f32 %v1190, %v1029
      %v1334 = vmul.f32 %v1194, %v1030
      %v1335 = vmul.f32 %v1198, %v1027
      %v1336 = vmul.f32 %v1202, %v1028
      %v1337 = vmul.f32 %v1198, %v1029
      %v1338 = vmul.f32 %v1202, %v1030
      %v1339 = vmul.f32 %v1206, %v1027
      %v1340 = vmul.f32 %v1210, %v1028
      %v1341 = vmul.f32 %v1206, %v1029
      %v1342 = vmul.f32 %v1210, %v1030
      %v1343 = vmul.f32 %v1214, %v1027
      %v1344 = vmul.f32 %v1218, %v1028
      %v1345 = vmul.f32 %v1214, %v1029
      %v1346 = vmul.f32 %v1218, %v1030
      %v1347 = vmul.f32 %v1222, %v1027
      %v1348 = vmul.f32 %v1226, %v1028
      %v1349 = vmul.f32 %v1222, %v1029
      %v1350 = vmul.f32 %v1226, %v1030
      %v1351 = vmul.f32 %v1230, %v1027
      %v1352 = vmul.f32 %v1234, %v1028
      %v1353 = vmul.f32 %v1230, %v1029
      %v1354 = vmul.f32 %v1234, %v1030
      %v1355 = vmul.f32 %v1238, %v1027
      %v1356 = vmul.f32 %v1242, %v1028
      %v1357 = vmul.f32 %v1238, %v1029
      %v1358 = vmul.f32 %v1242, %v1030
      %v1359 = vmul.f32 %v1246, %v1027
      %v1360 = vmul.f32 %v1250, %v1028
      %v1361 = vmul.f32 %v1246, %v1029
      %v1362 = vmul.f32 %v1250, %v1030
      %v1363 = vmul.f32 %v1254, %v1027
      %v1364 = vmul.f32 %v1258, %v1028
      %v1365 = vmul.f32 %v1254, %v1029
      %v1366 = vmul.f32 %v1258, %v1030
      %v1367 = vmul.f32 %v1262, %v1027
      %v1368 = vmul.f32 %v1266, %v1028
      %v1369 = vmul.f32 %v1262, %v1029
      %v1370 = vmul.f32 %v1266, %v1030
      %v1371 = vmul.f32 %v1270, %v1027
      %v1372 = vmul.f32 %v1274, %v1028
      %v1373 = vmul.f32 %v1270, %v1029
      %v1374 = vmul.f32 %v1274, %v1030
      %v1375 = vmul.f32 %v1278, %v1027
      %v1376 = vmul.f32 %v1282, %v1028
      %v1377 = vmul.f32 %v1278, %v1029
      %v1378 = vmul.f32 %v1282, %v1030
      %v1379 = vld [vmem:[%s251] sm:$0xff]
      %v1380 = vld [vmem:[%s251 + $0x8] sm:$0xff]
      %v1381 = vmul.f32 %v736, 0.0625
      %v1382 = vmul.f32 %v737, 0.0625
      %v1383 = vsub.f32 %v1381, 0.5
      %v1384 = vsub.f32 %v1382, 0.5
      %v1385 = vmul.f32 %v827, 0.0625
      %v1386 = vmul.f32 %v828, 0.0625
      %v1387 = vsub.f32 %v1385, 0.5
      %v1388 = vsub.f32 %v1386, 0.5
      %v1389 = vsub.f32 %v637, %v1383
      %v1390 = vsub.f32 %v637, %v1384
      %v1391 = vand.u32 2147483647, %v1389
      %v1392 = vand.u32 2147483647, %v1390
      %v1393 = vsub.f32 1.0, %v1391
      %v1394 = vsub.f32 1.0, %v1392
      %v1395 = vmax.f32 %v1393, 0.0
      %v1396 = vmax.f32 %v1394, 0.0
      %v1397 = vsub.f32 %v637, %v1387
      %v1398 = vsub.f32 %v637, %v1388
      %v1399 = vand.u32 2147483647, %v1397
      %v1400 = vand.u32 2147483647, %v1398
      %v1401 = vsub.f32 1.0, %v1399
      %v1402 = vsub.f32 1.0, %v1400
      %v1403 = vmax.f32 %v1401, 0.0
      %v1404 = vmax.f32 %v1402, 0.0
      %v1405 = vmul.f32 %v1403, %v999
      %v1406 = vmul.f32 %v1404, %v1006
      %v1409 = vcombine.low %v1405, %v1406
      %v1410 = vcombine.high %v1405, %v1406
      %v1412 = vunpack.c.l.s4 1966171168
      %v1413 = vunpack.c.0.s8 %v1412
      %v1414 = vlaneseq
      %v1415 = vshrl.u32 %v1414, 7
      %v1416 = vsub.s32 %v1413, %v1415
      %v1417 = vrot.slane %v1409, %v1416
      %v1419 = vunpack.c.l.s4 1966171168
      %v1420 = vunpack.c.0.s8 %v1419
      %v1421 = vlaneseq
      %v1422 = vshrl.u32 %v1421, 7
      %v1423 = vsub.s32 %v1420, %v1422
      %v1424 = vrot.slane %v1410, %v1423
      %v1425 = vcombine.high %v1417, %v1417
      %v1426 = vcombine.high %v1424, %v1424
      %v1428 = vunpack.c.l.s4 1966171168
      %v1429 = vunpack.c.0.s8 %v1428
      %v1430 = vlaneseq
      %v1431 = vshrl.u32 %v1430, 7
      %v1432 = vsub.s32 %v1429, %v1431
      %v1433 = vrot.slane %v1417, %v1432
      %v1435 = vunpack.c.l.s4 1966171168
      %v1436 = vunpack.c.0.s8 %v1435
      %v1437 = vlaneseq
      %v1438 = vshrl.u32 %v1437, 7
      %v1439 = vsub.s32 %v1436, %v1438
      %v1440 = vrot.slane %v1424, %v1439
      %v1442 = vunpack.c.l.s4 1966171168
      %v1443 = vunpack.c.0.s8 %v1442
      %v1444 = vlaneseq
      %v1445 = vshrl.u32 %v1444, 7
      %v1446 = vsub.s32 %v1443, %v1445
      %v1447 = vrot.slane %v1425, %v1446
      %v1449 = vunpack.c.l.s4 1966171168
      %v1450 = vunpack.c.0.s8 %v1449
      %v1451 = vlaneseq
      %v1452 = vshrl.u32 %v1451, 7
      %v1453 = vsub.s32 %v1450, %v1452
      %v1454 = vrot.slane %v1426, %v1453
      %v1455 = vcombine.high %v1433, %v1433
      %v1456 = vcombine.high %v1440, %v1440
      %v1457 = vcombine.high %v1447, %v1447
      %v1458 = vcombine.high %v1454, %v1454
      %v1459 = vlaneseq
      %v1460 = vshrl.u32 %v1459, 7
      %v1461 = vsub.s32 0, %v1460
      %v1462 = vrot.slane %v1433, %v1461
      %v1463 = vlaneseq
      %v1464 = vshrl.u32 %v1463, 7
      %v1465 = vsub.s32 1, %v1464
      %v1466 = vrot.slane %v1433, %v1465
      %v1467 = vlaneseq
      %v1468 = vshrl.u32 %v1467, 7
      %v1469 = vsub.s32 0, %v1468
      %v1470 = vrot.slane %v1447, %v1469
      %v1471 = vlaneseq
      %v1472 = vshrl.u32 %v1471, 7
      %v1473 = vsub.s32 1, %v1472
      %v1474 = vrot.slane %v1447, %v1473
      %v1475 = vlaneseq
      %v1476 = vshrl.u32 %v1475, 7
      %v1477 = vsub.s32 0, %v1476
      %v1478 = vrot.slane %v1455, %v1477
      %v1479 = vlaneseq
      %v1480 = vshrl.u32 %v1479, 7
      %v1481 = vsub.s32 1, %v1480
      %v1482 = vrot.slane %v1455, %v1481
      %v1483 = vlaneseq
      %v1484 = vshrl.u32 %v1483, 7
      %v1485 = vsub.s32 0, %v1484
      %v1486 = vrot.slane %v1457, %v1485
      %v1487 = vlaneseq
      %v1488 = vshrl.u32 %v1487, 7
      %v1489 = vsub.s32 1, %v1488
      %v1490 = vrot.slane %v1457, %v1489
      %v1491 = vlaneseq
      %v1492 = vshrl.u32 %v1491, 7
      %v1493 = vsub.s32 0, %v1492
      %v1494 = vrot.slane %v1440, %v1493
      %v1495 = vlaneseq
      %v1496 = vshrl.u32 %v1495, 7
      %v1497 = vsub.s32 1, %v1496
      %v1498 = vrot.slane %v1440, %v1497
      %v1499 = vlaneseq
      %v1500 = vshrl.u32 %v1499, 7
      %v1501 = vsub.s32 0, %v1500
      %v1502 = vrot.slane %v1454, %v1501
      %v1503 = vlaneseq
      %v1504 = vshrl.u32 %v1503, 7
      %v1505 = vsub.s32 1, %v1504
      %v1506 = vrot.slane %v1454, %v1505
      %v1507 = vlaneseq
      %v1508 = vshrl.u32 %v1507, 7
      %v1509 = vsub.s32 0, %v1508
      %v1510 = vrot.slane %v1456, %v1509
      %v1511 = vlaneseq
      %v1512 = vshrl.u32 %v1511, 7
      %v1513 = vsub.s32 1, %v1512
      %v1514 = vrot.slane %v1456, %v1513
      %v1515 = vlaneseq
      %v1516 = vshrl.u32 %v1515, 7
      %v1517 = vsub.s32 0, %v1516
      %v1518 = vrot.slane %v1458, %v1517
      %v1519 = vlaneseq
      %v1520 = vshrl.u32 %v1519, 7
      %v1521 = vsub.s32 1, %v1520
      %v1522 = vrot.slane %v1458, %v1521
      %v1539 = vmul.f32 %v1462, %v1395
      %v1540 = vmul.f32 %v1466, %v1396
      %v1541 = vmul.f32 %v1470, %v1395
      %v1542 = vmul.f32 %v1474, %v1396
      %v1543 = vmul.f32 %v1478, %v1395
      %v1544 = vmul.f32 %v1482, %v1396
      %v1545 = vmul.f32 %v1486, %v1395
      %v1546 = vmul.f32 %v1490, %v1396
      %v1547 = vmul.f32 %v1494, %v1395
      %v1548 = vmul.f32 %v1498, %v1396
      %v1549 = vmul.f32 %v1502, %v1395
      %v1550 = vmul.f32 %v1506, %v1396
      %v1551 = vmul.f32 %v1510, %v1395
      %v1552 = vmul.f32 %v1514, %v1396
      %v1553 = vmul.f32 %v1518, %v1395
      %v1554 = vmul.f32 %v1522, %v1396
      %v1555 = vld [vmem:[%s256] sm:$0xff]
      %vm1556 = vcmask 523264
      %v1558 = vsel %vm1556, %v1555, 0
      %1560 = vmatprep.subr.mxu0 %v1540
      %1561 = vmatpush1.msra.mxu0 %v1539
      %1562 = vmatprep.subr.mxu0 %v1542
      %1563 = vmatpush1.msra.mxu0 %v1541
      %1564 = vmatprep.subr.mxu0 %v1544
      %1565 = vmatpush1.msra.mxu0 %v1543
      %1566 = vmatprep.subr.mxu0 %v1546
      %1567 = vmatpush1.msra.mxu0 %v1545
      %1568 = vmatprep.subr.mxu0 %v1548
      %1569 = vmatpush1.msra.mxu0 %v1547
      %1570 = vmatprep.subr.mxu0 %v1550
      %1571 = vmatpush1.msra.mxu0 %v1549
      %1572 = vmatprep.subr.mxu0 %v1552
      %1573 = vmatpush1.msra.mxu0 %v1551
      %1574 = vmatprep.subr.mxu0 %v1554
      %1575 = vmatpush1.msra.mxu0 %v1553
      %1576 = vmatprep.subr.mxu0 0.0
      %1577 = vmatpush1.msra.mxu0 0.0
      %1578 = vmatprep.subr.mxu0 0.0
      %1579 = vmatpush1.msra.mxu0 0.0
      %1580 = vmatprep.subr.mxu0 0.0
      %1581 = vmatpush1.msra.mxu0 0.0
      %1582 = vmatprep.subr.mxu0 0.0
      %1583 = vmatpush1.msra.mxu0 0.0
      %1584 = vmatprep.subr.mxu0 0.0
      %1585 = vmatpush1.msra.mxu0 0.0
      %1586 = vmatprep.subr.mxu0 0.0
      %1587 = vmatpush1.msra.mxu0 0.0
      %1588 = vmatprep.subr.mxu0 0.0
      %1589 = vmatpush1.msra.mxu0 0.0
      %1590 = vmatprep.subr.mxu0 0.0
      %1591 = vmatpush1.msra.mxu0 0.0
      %1592 = vmatprep.subr.mxu0 0.0
      %1593 = vmatpush1.msra.mxu0 0.0
      %1594 = vmatprep.subr.mxu0 0.0
      %1595 = vmatpush1.msra.mxu0 0.0
      %1596 = vmatprep.subr.mxu0 0.0
      %1597 = vmatpush1.msra.mxu0 0.0
      %1598 = vmatprep.subr.mxu0 0.0
      %1599 = vmatpush1.msra.mxu0 0.0
      %1600 = vmatprep.subr.mxu0 0.0
      %1601 = vmatpush1.msra.mxu0 0.0
      %1602 = vmatprep.subr.mxu0 0.0
      %1603 = vmatpush1.msra.mxu0 0.0
      %1604 = vmatprep.subr.mxu0 0.0
      %1605 = vmatpush1.msra.mxu0 0.0
      %1606 = vmatprep.subr.mxu0 0.0
      %1607 = vmatpush1.msra.mxu0 0.0
      %1608 = vmatprep.subr.mxu0 0.0
      %1609 = vmatpush1.msra.mxu0 0.0
      %1610 = vmatprep.subr.mxu0 0.0
      %1611 = vmatpush1.msra.mxu0 0.0
      %1612 = vmatprep.subr.mxu0 0.0
      %1613 = vmatpush1.msra.mxu0 0.0
      %1614 = vmatprep.subr.mxu0 0.0
      %1615 = vmatpush1.msra.mxu0 0.0
      %1616 = vmatprep.subr.mxu0 0.0
      %1617 = vmatpush1.msra.mxu0 0.0
      %1618 = vmatprep.subr.mxu0 0.0
      %1619 = vmatpush1.msra.mxu0 0.0
      %1620 = vmatprep.subr.mxu0 0.0
      %1621 = vmatpush1.msra.mxu0 0.0
      %1622 = vmatprep.subr.mxu0 0.0
      %1623 = vmatpush1.msra.mxu0 0.0
      %1624 = vmatprep.mubr.f32.mxu0 0.0
      %1625 = vmatmul.mubr.f32.gmra.mrb[0].mxu0 %v1558
      %v1626 = vpop.f32.mrb[0].mxu0
      %v1627 = vadd.f32 0.0, %v1626
      %v1628 = vpop.f32.mrb[0].mxu0
      %v1629 = vadd.f32 0.0, %v1628
      %1630 = vdwg.mxu0
      %1631 = vmatprep.subr.mxu0 %v1316
      %1632 = vmatpush1.msra.mxu0 %v1315
      %1633 = vmatprep.subr.mxu0 %v1318
      %1634 = vmatpush1.msra.mxu0 %v1317
      %1635 = vmatprep.subr.mxu0 %v1320
      %1636 = vmatpush1.msra.mxu0 %v1319
      %1637 = vmatprep.subr.mxu0 %v1322
      %1638 = vmatpush1.msra.mxu0 %v1321
      %1639 = vmatprep.subr.mxu0 %v1324
      %1640 = vmatpush1.msra.mxu0 %v1323
      %1641 = vmatprep.subr.mxu0 %v1326
      %1642 = vmatpush1.msra.mxu0 %v1325
      %1643 = vmatprep.subr.mxu0 %v1328
      %1644 = vmatpush1.msra.mxu0 %v1327
      %1645 = vmatprep.subr.mxu0 %v1330
      %1646 = vmatpush1.msra.mxu0 %v1329
      %1647 = vmatprep.subr.mxu0 %v1332
      %1648 = vmatpush1.msra.mxu0 %v1331
      %1649 = vmatprep.subr.mxu0 %v1334
      %1650 = vmatpush1.msra.mxu0 %v1333
      %1651 = vmatprep.subr.mxu0 %v1336
      %1652 = vmatpush1.msra.mxu0 %v1335
      %1653 = vmatprep.subr.mxu0 %v1338
      %1654 = vmatpush1.msra.mxu0 %v1337
      %1655 = vmatprep.subr.mxu0 %v1340
      %1656 = vmatpush1.msra.mxu0 %v1339
      %1657 = vmatprep.subr.mxu0 %v1342
      %1658 = vmatpush1.msra.mxu0 %v1341
      %1659 = vmatprep.subr.mxu0 %v1344
      %1660 = vmatpush1.msra.mxu0 %v1343
      %1661 = vmatprep.subr.mxu0 %v1346
      %1662 = vmatpush1.msra.mxu0 %v1345
      %1663 = vmatprep.subr.mxu0 %v1348
      %1664 = vmatpush1.msra.mxu0 %v1347
      %1665 = vmatprep.subr.mxu0 %v1350
      %1666 = vmatpush1.msra.mxu0 %v1349
      %1667 = vmatprep.subr.mxu0 %v1352
      %1668 = vmatpush1.msra.mxu0 %v1351
      %1669 = vmatprep.subr.mxu0 %v1354
      %1670 = vmatpush1.msra.mxu0 %v1353
      %1671 = vmatprep.subr.mxu0 %v1356
      %1672 = vmatpush1.msra.mxu0 %v1355
      %1673 = vmatprep.subr.mxu0 %v1358
      %1674 = vmatpush1.msra.mxu0 %v1357
      %1675 = vmatprep.subr.mxu0 %v1360
      %1676 = vmatpush1.msra.mxu0 %v1359
      %1677 = vmatprep.subr.mxu0 %v1362
      %1678 = vmatpush1.msra.mxu0 %v1361
      %1679 = vmatprep.subr.mxu0 %v1364
      %1680 = vmatpush1.msra.mxu0 %v1363
      %1681 = vmatprep.subr.mxu0 %v1366
      %1682 = vmatpush1.msra.mxu0 %v1365
      %1683 = vmatprep.subr.mxu0 %v1368
      %1684 = vmatpush1.msra.mxu0 %v1367
      %1685 = vmatprep.subr.mxu0 %v1370
      %1686 = vmatpush1.msra.mxu0 %v1369
      %1687 = vmatprep.subr.mxu0 %v1372
      %1688 = vmatpush1.msra.mxu0 %v1371
      %1689 = vmatprep.subr.mxu0 %v1374
      %1690 = vmatpush1.msra.mxu0 %v1373
      %1691 = vmatprep.subr.mxu0 %v1376
      %1692 = vmatpush1.msra.mxu0 %v1375
      %1693 = vmatprep.subr.mxu0 %v1378
      %1694 = vmatpush1.msra.mxu0 %v1377
      %1695 = vmatprep.mubr.f32.mxu0 %v1380
      %1696 = vmatmul.mubr.f32.gmra.mrb[0].mxu0 %v1379
      %v1697 = vpop.f32.mrb[0].mxu0
      %v1698 = vadd.f32 %v1627, %v1697
      %v1699 = vpop.f32.mrb[0].mxu0
      %v1700 = vadd.f32 %v1629, %v1699
      %1701 = vdwg.mxu0
      %1702 = vst [vmem:[%s261] sm:$0xff] %v1698
      %1703 = vst.msk [vmem:[%s261 + $0x8] sm:$0xff] %vm607, %v1700
      %1704 = vrot.lane.b32.xlu0 %v552, 110
      %v1705 = vpop.permute.xlu0 %1704
      %v1706 = vsel %vm639, %v1705, 0
      %1708 = vmatprep.subr.mxu0 %v590
      %1709 = vmatpush1.msra.mxu0 %v589
      %1710 = vmatprep.subr.mxu0 %v592
      %1711 = vmatpush1.msra.mxu0 %v591
      %1712 = vmatprep.subr.mxu0 %v648
      %1713 = vmatpush1.msra.mxu0 %v645
      %1714 = vmatprep.subr.mxu0 0.0
      %1715 = vmatpush1.msra.mxu0 0.0
      %1716 = vmatprep.subr.mxu0 0.0
      %1717 = vmatpush1.msra.mxu0 0.0
      %1718 = vmatprep.subr.mxu0 0.0
      %1719 = vmatpush1.msra.mxu0 0.0
      %1720 = vmatprep.subr.mxu0 0.0
      %1721 = vmatpush1.msra.mxu0 0.0
      %1722 = vmatprep.subr.mxu0 0.0
      %1723 = vmatpush1.msra.mxu0 0.0
      %1724 = vmatprep.subr.mxu0 0.0
      %1725 = vmatpush1.msra.mxu0 0.0
      %1726 = vmatprep.subr.mxu0 0.0
      %1727 = vmatpush1.msra.mxu0 0.0
      %1728 = vmatprep.subr.mxu0 0.0
      %1729 = vmatpush1.msra.mxu0 0.0
      %1730 = vmatprep.subr.mxu0 0.0
      %1731 = vmatpush1.msra.mxu0 0.0
      %1732 = vmatprep.subr.mxu0 0.0
      %1733 = vmatpush1.msra.mxu0 0.0
      %1734 = vmatprep.subr.mxu0 0.0
      %1735 = vmatpush1.msra.mxu0 0.0
      %1736 = vmatprep.subr.mxu0 0.0
      %1737 = vmatpush1.msra.mxu0 0.0
      %1738 = vmatprep.subr.mxu0 0.0
      %1739 = vmatpush1.msra.mxu0 0.0
      %1740 = vmatprep.subr.mxu0 0.0
      %1741 = vmatpush1.msra.mxu0 0.0
      %1742 = vmatprep.subr.mxu0 0.0
      %1743 = vmatpush1.msra.mxu0 0.0
      %1744 = vmatprep.subr.mxu0 0.0
      %1745 = vmatpush1.msra.mxu0 0.0
      %1746 = vmatprep.subr.mxu0 0.0
      %1747 = vmatpush1.msra.mxu0 0.0
      %1748 = vmatprep.subr.mxu0 0.0
      %1749 = vmatpush1.msra.mxu0 0.0
      %1750 = vmatprep.subr.mxu0 0.0
      %1751 = vmatpush1.msra.mxu0 0.0
      %1752 = vmatprep.subr.mxu0 0.0
      %1753 = vmatpush1.msra.mxu0 0.0
      %1754 = vmatprep.subr.mxu0 0.0
      %1755 = vmatpush1.msra.mxu0 0.0
      %1756 = vmatprep.subr.mxu0 0.0
      %1757 = vmatpush1.msra.mxu0 0.0
      %1758 = vmatprep.subr.mxu0 0.0
      %1759 = vmatpush1.msra.mxu0 0.0
      %1760 = vmatprep.subr.mxu0 0.0
      %1761 = vmatpush1.msra.mxu0 0.0
      %1762 = vmatprep.subr.mxu0 0.0
      %1763 = vmatpush1.msra.mxu0 0.0
      %1764 = vmatprep.subr.mxu0 0.0
      %1765 = vmatpush1.msra.mxu0 0.0
      %1766 = vmatprep.subr.mxu0 0.0
      %1767 = vmatpush1.msra.mxu0 0.0
      %1768 = vmatprep.subr.mxu0 0.0
      %1769 = vmatpush1.msra.mxu0 0.0
      %1770 = vmatprep.subr.mxu0 0.0
      %1771 = vmatpush1.msra.mxu0 0.0
      %1772 = vmatprep.mubr.f32.mxu0 0.0
      %1773 = vmatmul.mubr.f32.gmra.mrb[0].mxu0 %v1706
      %v1774 = vpop.f32.mrb[0].mxu0
      %v1775 = vadd.f32 0.0, %v1774
      %v1776 = vpop.f32.mrb[0].mxu0
      %v1777 = vadd.f32 0.0, %v1776
      %1778 = vdwg.mxu0
      %v1779 = vmul.f32 %v1775, %v587
      %v1780 = vmul.f32 %v1777, %v588
      %v1781 = vrot.slane %v1779, 4
      %v1782 = vadd.f32 %v1779, %v1781
      %v1783 = vrot.slane %v1782, 2
      %v1784 = vadd.f32 %v1782, %v1783
      %v1785 = vrot.slane %v1784, 1
      %v1786 = vadd.f32 %v1784, %v1785
      %v1787 = vsel %vm607, %v1780, 0.0
      %v1788 = vrot.slane %v1787, 4
      %v1789 = vadd.f32 %v1787, %v1788
      %v1790 = vrot.slane %v1789, 2
      %v1791 = vadd.f32 %v1789, %v1790
      %v1792 = vrot.slane %v1791, 1
      %v1793 = vadd.f32 %v1791, %v1792
      %v1794 = vadd.f32 %v1786, %v606
      %v1795 = vadd.f32 %v1793, %v614
      %1796 = vrot.lane.b32.xlu0 %v560, 110
      %v1797 = vpop.permute.xlu0 %1796
      %v1798 = vsel %vm639, %v1797, 0
      %1800 = vmatprep.subr.mxu0 %v590
      %1801 = vmatpush1.msra.mxu0 %v589
      %1802 = vmatprep.subr.mxu0 %v592
      %1803 = vmatpush1.msra.mxu0 %v591
      %1804 = vmatprep.subr.mxu0 %v648
      %1805 = vmatpush1.msra.mxu0 %v645
      %1806 = vmatprep.subr.mxu0 0.0
      %1807 = vmatpush1.msra.mxu0 0.0
      %1808 = vmatprep.subr.mxu0 0.0
      %1809 = vmatpush1.msra.mxu0 0.0
      %1810 = vmatprep.subr.mxu0 0.0
      %1811 = vmatpush1.msra.mxu0 0.0
      %1812 = vmatprep.subr.mxu0 0.0
      %1813 = vmatpush1.msra.mxu0 0.0
      %1814 = vmatprep.subr.mxu0 0.0
      %1815 = vmatpush1.msra.mxu0 0.0
      %1816 = vmatprep.subr.mxu0 0.0
      %1817 = vmatpush1.msra.mxu0 0.0
      %1818 = vmatprep.subr.mxu0 0.0
      %1819 = vmatpush1.msra.mxu0 0.0
      %1820 = vmatprep.subr.mxu0 0.0
      %1821 = vmatpush1.msra.mxu0 0.0
      %1822 = vmatprep.subr.mxu0 0.0
      %1823 = vmatpush1.msra.mxu0 0.0
      %1824 = vmatprep.subr.mxu0 0.0
      %1825 = vmatpush1.msra.mxu0 0.0
      %1826 = vmatprep.subr.mxu0 0.0
      %1827 = vmatpush1.msra.mxu0 0.0
      %1828 = vmatprep.subr.mxu0 0.0
      %1829 = vmatpush1.msra.mxu0 0.0
      %1830 = vmatprep.subr.mxu0 0.0
      %1831 = vmatpush1.msra.mxu0 0.0
      %1832 = vmatprep.subr.mxu0 0.0
      %1833 = vmatpush1.msra.mxu0 0.0
      %1834 = vmatprep.subr.mxu0 0.0
      %1835 = vmatpush1.msra.mxu0 0.0
      %1836 = vmatprep.subr.mxu0 0.0
      %1837 = vmatpush1.msra.mxu0 0.0
      %1838 = vmatprep.subr.mxu0 0.0
      %1839 = vmatpush1.msra.mxu0 0.0
      %1840 = vmatprep.subr.mxu0 0.0
      %1841 = vmatpush1.msra.mxu0 0.0
      %1842 = vmatprep.subr.mxu0 0.0
      %1843 = vmatpush1.msra.mxu0 0.0
      %1844 = vmatprep.subr.mxu0 0.0
      %1845 = vmatpush1.msra.mxu0 0.0
      %1846 = vmatprep.subr.mxu0 0.0
      %1847 = vmatpush1.msra.mxu0 0.0
      %1848 = vmatprep.subr.mxu0 0.0
      %1849 = vmatpush1.msra.mxu0 0.0
      %1850 = vmatprep.subr.mxu0 0.0
      %1851 = vmatpush1.msra.mxu0 0.0
      %1852 = vmatprep.subr.mxu0 0.0
      %1853 = vmatpush1.msra.mxu0 0.0
      %1854 = vmatprep.subr.mxu0 0.0
      %1855 = vmatpush1.msra.mxu0 0.0
      %1856 = vmatprep.subr.mxu0 0.0
      %1857 = vmatpush1.msra.mxu0 0.0
      %1858 = vmatprep.subr.mxu0 0.0
      %1859 = vmatpush1.msra.mxu0 0.0
      %1860 = vmatprep.subr.mxu0 0.0
      %1861 = vmatpush1.msra.mxu0 0.0
      %1862 = vmatprep.subr.mxu0 0.0
      %1863 = vmatpush1.msra.mxu0 0.0
      %1864 = vmatprep.mubr.f32.mxu0 0.0
      %1865 = vmatmul.mubr.f32.gmra.mrb[0].mxu0 %v1798
      %v1866 = vpop.f32.mrb[0].mxu0
      %v1867 = vadd.f32 0.0, %v1866
      %v1868 = vpop.f32.mrb[0].mxu0
      %v1869 = vadd.f32 0.0, %v1868
      %1870 = vdwg.mxu0
      %v1871 = vmul.f32 %v1867, %v587
      %v1872 = vmul.f32 %v1869, %v588
      %v1873 = vrot.slane %v1871, 4
      %v1874 = vadd.f32 %v1871, %v1873
      %v1875 = vrot.slane %v1874, 2
      %v1876 = vadd.f32 %v1874, %v1875
      %v1877 = vrot.slane %v1876, 1
      %v1878 = vadd.f32 %v1876, %v1877
      %v1879 = vsel %vm607, %v1872, 0.0
      %v1880 = vrot.slane %v1879, 4
      %v1881 = vadd.f32 %v1879, %v1880
      %v1882 = vrot.slane %v1881, 2
      %v1883 = vadd.f32 %v1881, %v1882
      %v1884 = vrot.slane %v1883, 1
      %v1885 = vadd.f32 %v1883, %v1884
      %v1886 = vadd.f32 %v1878, %v626
      %v1887 = vadd.f32 %v1885, %v633
      %1888 = vrot.lane.b32.xlu0 %v585, 110
      %v1889 = vpop.permute.xlu0 %1888
      %v1890 = vsel %vm639, %v1889, 0
      %1892 = vmatprep.subr.mxu0 %v590
      %1893 = vmatpush1.msra.mxu0 %v589
      %1894 = vmatprep.subr.mxu0 %v592
      %1895 = vmatpush1.msra.mxu0 %v591
      %1896 = vmatprep.subr.mxu0 %v648
      %1897 = vmatpush1.msra.mxu0 %v645
      %1898 = vmatprep.subr.mxu0 0.0
      %1899 = vmatpush1.msra.mxu0 0.0
      %1900 = vmatprep.subr.mxu0 0.0
      %1901 = vmatpush1.msra.mxu0 0.0
      %1902 = vmatprep.subr.mxu0 0.0
      %1903 = vmatpush1.msra.mxu0 0.0
      %1904 = vmatprep.subr.mxu0 0.0
      %1905 = vmatpush1.msra.mxu0 0.0
      %1906 = vmatprep.subr.mxu0 0.0
      %1907 = vmatpush1.msra.mxu0 0.0
      %1908 = vmatprep.subr.mxu0 0.0
      %1909 = vmatpush1.msra.mxu0 0.0
      %1910 = vmatprep.subr.mxu0 0.0
      %1911 = vmatpush1.msra.mxu0 0.0
      %1912 = vmatprep.subr.mxu0 0.0
      %1913 = vmatpush1.msra.mxu0 0.0
      %1914 = vmatprep.subr.mxu0 0.0
      %1915 = vmatpush1.msra.mxu0 0.0
      %1916 = vmatprep.subr.mxu0 0.0
      %1917 = vmatpush1.msra.mxu0 0.0
      %1918 = vmatprep.subr.mxu0 0.0
      %1919 = vmatpush1.msra.mxu0 0.0
      %1920 = vmatprep.subr.mxu0 0.0
      %1921 = vmatpush1.msra.mxu0 0.0
      %1922 = vmatprep.subr.mxu0 0.0
      %1923 = vmatpush1.msra.mxu0 0.0
      %1924 = vmatprep.subr.mxu0 0.0
      %1925 = vmatpush1.msra.mxu0 0.0
      %1926 = vmatprep.subr.mxu0 0.0
      %1927 = vmatpush1.msra.mxu0 0.0
      %1928 = vmatprep.subr.mxu0 0.0
      %1929 = vmatpush1.msra.mxu0 0.0
      %1930 = vmatprep.subr.mxu0 0.0
      %1931 = vmatpush1.msra.mxu0 0.0
      %1932 = vmatprep.subr.mxu0 0.0
      %1933 = vmatpush1.msra.mxu0 0.0
      %1934 = vmatprep.subr.mxu0 0.0
      %1935 = vmatpush1.msra.mxu0 0.0
      %1936 = vmatprep.subr.mxu0 0.0
      %1937 = vmatpush1.msra.mxu0 0.0
      %1938 = vmatprep.subr.mxu0 0.0
      %1939 = vmatpush1.msra.mxu0 0.0
      %1940 = vmatprep.subr.mxu0 0.0
      %1941 = vmatpush1.msra.mxu0 0.0
      %1942 = vmatprep.subr.mxu0 0.0
      %1943 = vmatpush1.msra.mxu0 0.0
      %1944 = vmatprep.subr.mxu0 0.0
      %1945 = vmatpush1.msra.mxu0 0.0
      %1946 = vmatprep.subr.mxu0 0.0
      %1947 = vmatpush1.msra.mxu0 0.0
      %1948 = vmatprep.subr.mxu0 0.0
      %1949 = vmatpush1.msra.mxu0 0.0
      %1950 = vmatprep.subr.mxu0 0.0
      %1951 = vmatpush1.msra.mxu0 0.0
      %1952 = vmatprep.subr.mxu0 0.0
      %1953 = vmatpush1.msra.mxu0 0.0
      %1954 = vmatprep.subr.mxu0 0.0
      %1955 = vmatpush1.msra.mxu0 0.0
      %1956 = vmatprep.mubr.f32.mxu0 0.0
      %1957 = vmatmul.mubr.f32.gmra.mrb[0].mxu0 %v1890
      %v1958 = vpop.f32.mrb[0].mxu0
      %v1959 = vadd.f32 0.0, %v1958
      %v1960 = vpop.f32.mrb[0].mxu0
      %v1961 = vadd.f32 0.0, %v1960
      %1962 = vdwg.mxu0
      %v1963 = vmul.f32 %v1959, %v587
      %v1964 = vmul.f32 %v1961, %v588
      %v1965 = vrot.slane %v1963, 4
      %v1966 = vadd.f32 %v1963, %v1965
      %v1967 = vrot.slane %v1966, 2
      %v1968 = vadd.f32 %v1966, %v1967
      %v1969 = vrot.slane %v1968, 1
      %v1970 = vadd.f32 %v1968, %v1969
      %v1971 = vsel %vm607, %v1964, 0.0
      %v1972 = vrot.slane %v1971, 4
      %v1973 = vadd.f32 %v1971, %v1972
      %v1974 = vrot.slane %v1973, 2
      %v1975 = vadd.f32 %v1973, %v1974
      %v1976 = vrot.slane %v1975, 1
      %v1977 = vadd.f32 %v1975, %v1976
      %1978 = vrot.lane.b32.xlu0 %v586, 110
      %v1979 = vpop.permute.xlu0 %1978
      %v1980 = vsel %vm639, %v1979, 0
      %1982 = vmatprep.subr.mxu0 %v590
      %1983 = vmatpush1.msra.mxu0 %v589
      %1984 = vmatprep.subr.mxu0 %v592
      %1985 = vmatpush1.msra.mxu0 %v591
      %1986 = vmatprep.subr.mxu0 %v648
      %1987 = vmatpush1.msra.mxu0 %v645
      %1988 = vmatprep.subr.mxu0 0.0
      %1989 = vmatpush1.msra.mxu0 0.0
      %1990 = vmatprep.subr.mxu0 0.0
      %1991 = vmatpush1.msra.mxu0 0.0
      %1992 = vmatprep.subr.mxu0 0.0
      %1993 = vmatpush1.msra.mxu0 0.0
      %1994 = vmatprep.subr.mxu0 0.0
      %1995 = vmatpush1.msra.mxu0 0.0
      %1996 = vmatprep.subr.mxu0 0.0
      %1997 = vmatpush1.msra.mxu0 0.0
      %1998 = vmatprep.subr.mxu0 0.0
      %1999 = vmatpush1.msra.mxu0 0.0
      %2000 = vmatprep.subr.mxu0 0.0
      %2001 = vmatpush1.msra.mxu0 0.0
      %2002 = vmatprep.subr.mxu0 0.0
      %2003 = vmatpush1.msra.mxu0 0.0
      %2004 = vmatprep.subr.mxu0 0.0
      %2005 = vmatpush1.msra.mxu0 0.0
      %2006 = vmatprep.subr.mxu0 0.0
      %2007 = vmatpush1.msra.mxu0 0.0
      %2008 = vmatprep.subr.mxu0 0.0
      %2009 = vmatpush1.msra.mxu0 0.0
      %2010 = vmatprep.subr.mxu0 0.0
      %2011 = vmatpush1.msra.mxu0 0.0
      %2012 = vmatprep.subr.mxu0 0.0
      %2013 = vmatpush1.msra.mxu0 0.0
      %2014 = vmatprep.subr.mxu0 0.0
      %2015 = vmatpush1.msra.mxu0 0.0
      %2016 = vmatprep.subr.mxu0 0.0
      %2017 = vmatpush1.msra.mxu0 0.0
      %2018 = vmatprep.subr.mxu0 0.0
      %2019 = vmatpush1.msra.mxu0 0.0
      %2020 = vmatprep.subr.mxu0 0.0
      %2021 = vmatpush1.msra.mxu0 0.0
      %2022 = vmatprep.subr.mxu0 0.0
      %2023 = vmatpush1.msra.mxu0 0.0
      %2024 = vmatprep.subr.mxu0 0.0
      %2025 = vmatpush1.msra.mxu0 0.0
      %2026 = vmatprep.subr.mxu0 0.0
      %2027 = vmatpush1.msra.mxu0 0.0
      %2028 = vmatprep.subr.mxu0 0.0
      %2029 = vmatpush1.msra.mxu0 0.0
      %2030 = vmatprep.subr.mxu0 0.0
      %2031 = vmatpush1.msra.mxu0 0.0
      %2032 = vmatprep.subr.mxu0 0.0
      %2033 = vmatpush1.msra.mxu0 0.0
      %2034 = vmatprep.subr.mxu0 0.0
      %2035 = vmatpush1.msra.mxu0 0.0
      %2036 = vmatprep.subr.mxu0 0.0
      %2037 = vmatpush1.msra.mxu0 0.0
      %2038 = vmatprep.subr.mxu0 0.0
      %2039 = vmatpush1.msra.mxu0 0.0
      %2040 = vmatprep.subr.mxu0 0.0
      %2041 = vmatpush1.msra.mxu0 0.0
      %2042 = vmatprep.subr.mxu0 0.0
      %2043 = vmatpush1.msra.mxu0 0.0
      %2044 = vmatprep.subr.mxu0 0.0
      %2045 = vmatpush1.msra.mxu0 0.0
      %2046 = vmatprep.mubr.f32.mxu0 0.0
      %2047 = vmatmul.mubr.f32.gmra.mrb[0].mxu0 %v1980
      %v2048 = vpop.f32.mrb[0].mxu0
      %v2049 = vadd.f32 0.0, %v2048
      %v2050 = vpop.f32.mrb[0].mxu0
      %v2051 = vadd.f32 0.0, %v2050
      %2052 = vdwg.mxu0
      %v2053 = vmul.f32 %v2049, %v587
      %v2054 = vmul.f32 %v2051, %v588
      %v2055 = vrot.slane %v2053, 4
      %v2056 = vadd.f32 %v2053, %v2055
      %v2057 = vrot.slane %v2056, 2
      %v2058 = vadd.f32 %v2056, %v2057
      %v2059 = vrot.slane %v2058, 1
      %v2060 = vadd.f32 %v2058, %v2059
      %v2061 = vsel %vm607, %v2054, 0.0
      %v2062 = vrot.slane %v2061, 4
      %v2063 = vadd.f32 %v2061, %v2062
      %v2064 = vrot.slane %v2063, 2
      %v2065 = vadd.f32 %v2063, %v2064
      %v2066 = vrot.slane %v2065, 1
      %v2067 = vadd.f32 %v2065, %v2066
      %v2068 = vmul.f32 %v1794, 0.125
      %v2069 = vmul.f32 %v1795, 0.125
      %v2070 = vsub.f32 %v2068, 0.5
      %v2071 = vsub.f32 %v2069, 0.5
      %v2072 = vmul.f32 %v1886, 0.125
      %v2073 = vmul.f32 %v1887, 0.125
      %v2074 = vsub.f32 %v2072, 0.5
      %v2075 = vsub.f32 %v2073, 0.5
      %v2076 = vsub.f32 %v637, %v2070
      %v2077 = vsub.f32 %v637, %v2071
      %v2078 = vsub.f32 %v638, %v2070
      %v2079 = vsub.f32 %v638, %v2071
      %v2080 = vand.u32 2147483647, %v2076
      %v2081 = vand.u32 2147483647, %v2077
      %v2082 = vand.u32 2147483647, %v2078
      %v2083 = vand.u32 2147483647, %v2079
      %v2084 = vsub.f32 1.0, %v2080
      %v2085 = vsub.f32 1.0, %v2081
      %v2086 = vsub.f32 1.0, %v2082
      %v2087 = vsub.f32 1.0, %v2083
      %v2088 = vmax.f32 %v2084, 0.0
      %v2089 = vmax.f32 %v2085, 0.0
      %v2090 = vmax.f32 %v2086, 0.0
      %v2091 = vmax.f32 %v2087, 0.0
      %v2092 = vsub.f32 %v637, %v2074
      %v2093 = vsub.f32 %v637, %v2075
      %v2094 = vsub.f32 %v638, %v2074
      %v2095 = vsub.f32 %v638, %v2075
      %v2096 = vand.u32 2147483647, %v2092
      %v2097 = vand.u32 2147483647, %v2093
      %v2098 = vand.u32 2147483647, %v2094
      %v2099 = vand.u32 2147483647, %v2095
      %v2100 = vsub.f32 1.0, %v2096
      %v2101 = vsub.f32 1.0, %v2097
      %v2102 = vsub.f32 1.0, %v2098
      %v2103 = vsub.f32 1.0, %v2099
      %v2104 = vmax.f32 %v2100, 0.0
      %v2105 = vmax.f32 %v2101, 0.0
      %v2106 = vmax.f32 %v2102, 0.0
      %v2107 = vmax.f32 %v2103, 0.0
      %v2108 = vmul.f32 %v2104, %v1970
      %v2109 = vmul.f32 %v2105, %v1977
      %v2110 = vmul.f32 %v2106, %v1970
      %v2111 = vmul.f32 %v2107, %v1977
      %v2116 = vcombine.low %v2108, %v2109
      %v2117 = vcombine.high %v2108, %v2109
      %v2119 = vunpack.c.l.s4 1966171168
      %v2120 = vunpack.c.0.s8 %v2119
      %v2121 = vlaneseq
      %v2122 = vshrl.u32 %v2121, 7
      %v2123 = vsub.s32 %v2120, %v2122
      %v2124 = vrot.slane %v2116, %v2123
      %v2126 = vunpack.c.l.s4 1966171168
      %v2127 = vunpack.c.0.s8 %v2126
      %v2128 = vlaneseq
      %v2129 = vshrl.u32 %v2128, 7
      %v2130 = vsub.s32 %v2127, %v2129
      %v2131 = vrot.slane %v2117, %v2130
      %v2132 = vcombine.high %v2124, %v2124
      %v2133 = vcombine.high %v2131, %v2131
      %v2135 = vunpack.c.l.s4 1966171168
      %v2136 = vunpack.c.0.s8 %v2135
      %v2137 = vlaneseq
      %v2138 = vshrl.u32 %v2137, 7
      %v2139 = vsub.s32 %v2136, %v2138
      %v2140 = vrot.slane %v2124, %v2139
      %v2142 = vunpack.c.l.s4 1966171168
      %v2143 = vunpack.c.0.s8 %v2142
      %v2144 = vlaneseq
      %v2145 = vshrl.u32 %v2144, 7
      %v2146 = vsub.s32 %v2143, %v2145
      %v2147 = vrot.slane %v2131, %v2146
      %v2149 = vunpack.c.l.s4 1966171168
      %v2150 = vunpack.c.0.s8 %v2149
      %v2151 = vlaneseq
      %v2152 = vshrl.u32 %v2151, 7
      %v2153 = vsub.s32 %v2150, %v2152
      %v2154 = vrot.slane %v2132, %v2153
      %v2156 = vunpack.c.l.s4 1966171168
      %v2157 = vunpack.c.0.s8 %v2156
      %v2158 = vlaneseq
      %v2159 = vshrl.u32 %v2158, 7
      %v2160 = vsub.s32 %v2157, %v2159
      %v2161 = vrot.slane %v2133, %v2160
      %v2162 = vcombine.high %v2140, %v2140
      %v2163 = vcombine.high %v2147, %v2147
      %v2164 = vcombine.high %v2154, %v2154
      %v2165 = vcombine.high %v2161, %v2161
      %v2166 = vcombine.low %v2110, %v2111
      %v2167 = vcombine.high %v2110, %v2111
      %v2169 = vunpack.c.l.s4 1966171168
      %v2170 = vunpack.c.0.s8 %v2169
      %v2171 = vlaneseq
      %v2172 = vshrl.u32 %v2171, 7
      %v2173 = vsub.s32 %v2170, %v2172
      %v2174 = vrot.slane %v2166, %v2173
      %v2176 = vunpack.c.l.s4 1966171168
      %v2177 = vunpack.c.0.s8 %v2176
      %v2178 = vlaneseq
      %v2179 = vshrl.u32 %v2178, 7
      %v2180 = vsub.s32 %v2177, %v2179
      %v2181 = vrot.slane %v2167, %v2180
      %v2182 = vcombine.high %v2174, %v2174
      %v2183 = vcombine.high %v2181, %v2181
      %v2185 = vunpack.c.l.s4 1966171168
      %v2186 = vunpack.c.0.s8 %v2185
      %v2187 = vlaneseq
      %v2188 = vshrl.u32 %v2187, 7
      %v2189 = vsub.s32 %v2186, %v2188
      %v2190 = vrot.slane %v2174, %v2189
      %v2192 = vunpack.c.l.s4 1966171168
      %v2193 = vunpack.c.0.s8 %v2192
      %v2194 = vlaneseq
      %v2195 = vshrl.u32 %v2194, 7
      %v2196 = vsub.s32 %v2193, %v2195
      %v2197 = vrot.slane %v2181, %v2196
      %v2199 = vunpack.c.l.s4 1966171168
      %v2200 = vunpack.c.0.s8 %v2199
      %v2201 = vlaneseq
      %v2202 = vshrl.u32 %v2201, 7
      %v2203 = vsub.s32 %v2200, %v2202
      %v2204 = vrot.slane %v2182, %v2203
      %v2206 = vunpack.c.l.s4 1966171168
      %v2207 = vunpack.c.0.s8 %v2206
      %v2208 = vlaneseq
      %v2209 = vshrl.u32 %v2208, 7
      %v2210 = vsub.s32 %v2207, %v2209
      %v2211 = vrot.slane %v2183, %v2210
      %v2212 = vcombine.high %v2190, %v2190
      %v2213 = vcombine.high %v2197, %v2197
      %v2214 = vcombine.high %v2204, %v2204
      %v2215 = vcombine.high %v2211, %v2211
      %v2216 = vlaneseq
      %v2217 = vshrl.u32 %v2216, 7
      %v2218 = vsub.s32 0, %v2217
      %v2219 = vrot.slane %v2140, %v2218
      %v2220 = vlaneseq
      %v2221 = vshrl.u32 %v2220, 7
      %v2222 = vsub.s32 1, %v2221
      %v2223 = vrot.slane %v2140, %v2222
      %v2224 = vlaneseq
      %v2225 = vshrl.u32 %v2224, 7
      %v2226 = vsub.s32 0, %v2225
      %v2227 = vrot.slane %v2154, %v2226
      %v2228 = vlaneseq
      %v2229 = vshrl.u32 %v2228, 7
      %v2230 = vsub.s32 1, %v2229
      %v2231 = vrot.slane %v2154, %v2230
      %v2232 = vlaneseq
      %v2233 = vshrl.u32 %v2232, 7
      %v2234 = vsub.s32 0, %v2233
      %v2235 = vrot.slane %v2162, %v2234
      %v2236 = vlaneseq
      %v2237 = vshrl.u32 %v2236, 7
      %v2238 = vsub.s32 1, %v2237
      %v2239 = vrot.slane %v2162, %v2238
      %v2240 = vlaneseq
      %v2241 = vshrl.u32 %v2240, 7
      %v2242 = vsub.s32 0, %v2241
      %v2243 = vrot.slane %v2164, %v2242
      %v2244 = vlaneseq
      %v2245 = vshrl.u32 %v2244, 7
      %v2246 = vsub.s32 1, %v2245
      %v2247 = vrot.slane %v2164, %v2246
      %v2248 = vlaneseq
      %v2249 = vshrl.u32 %v2248, 7
      %v2250 = vsub.s32 0, %v2249
      %v2251 = vrot.slane %v2147, %v2250
      %v2252 = vlaneseq
      %v2253 = vshrl.u32 %v2252, 7
      %v2254 = vsub.s32 1, %v2253
      %v2255 = vrot.slane %v2147, %v2254
      %v2256 = vlaneseq
      %v2257 = vshrl.u32 %v2256, 7
      %v2258 = vsub.s32 0, %v2257
      %v2259 = vrot.slane %v2161, %v2258
      %v2260 = vlaneseq
      %v2261 = vshrl.u32 %v2260, 7
      %v2262 = vsub.s32 1, %v2261
      %v2263 = vrot.slane %v2161, %v2262
      %v2264 = vlaneseq
      %v2265 = vshrl.u32 %v2264, 7
      %v2266 = vsub.s32 0, %v2265
      %v2267 = vrot.slane %v2163, %v2266
      %v2268 = vlaneseq
      %v2269 = vshrl.u32 %v2268, 7
      %v2270 = vsub.s32 1, %v2269
      %v2271 = vrot.slane %v2163, %v2270
      %v2272 = vlaneseq
      %v2273 = vshrl.u32 %v2272, 7
      %v2274 = vsub.s32 0, %v2273
      %v2275 = vrot.slane %v2165, %v2274
      %v2276 = vlaneseq
      %v2277 = vshrl.u32 %v2276, 7
      %v2278 = vsub.s32 1, %v2277
      %v2279 = vrot.slane %v2165, %v2278
      %v2280 = vlaneseq
      %v2281 = vshrl.u32 %v2280, 7
      %v2282 = vsub.s32 0, %v2281
      %v2283 = vrot.slane %v2190, %v2282
      %v2284 = vlaneseq
      %v2285 = vshrl.u32 %v2284, 7
      %v2286 = vsub.s32 1, %v2285
      %v2287 = vrot.slane %v2190, %v2286
      %v2288 = vlaneseq
      %v2289 = vshrl.u32 %v2288, 7
      %v2290 = vsub.s32 0, %v2289
      %v2291 = vrot.slane %v2204, %v2290
      %v2292 = vlaneseq
      %v2293 = vshrl.u32 %v2292, 7
      %v2294 = vsub.s32 1, %v2293
      %v2295 = vrot.slane %v2204, %v2294
      %v2296 = vlaneseq
      %v2297 = vshrl.u32 %v2296, 7
      %v2298 = vsub.s32 0, %v2297
      %v2299 = vrot.slane %v2212, %v2298
      %v2300 = vlaneseq
      %v2301 = vshrl.u32 %v2300, 7
      %v2302 = vsub.s32 1, %v2301
      %v2303 = vrot.slane %v2212, %v2302
      %v2304 = vlaneseq
      %v2305 = vshrl.u32 %v2304, 7
      %v2306 = vsub.s32 0, %v2305
      %v2307 = vrot.slane %v2214, %v2306
      %v2308 = vlaneseq
      %v2309 = vshrl.u32 %v2308, 7
      %v2310 = vsub.s32 1, %v2309
      %v2311 = vrot.slane %v2214, %v2310
      %v2312 = vlaneseq
      %v2313 = vshrl.u32 %v2312, 7
      %v2314 = vsub.s32 0, %v2313
      %v2315 = vrot.slane %v2197, %v2314
      %v2316 = vlaneseq
      %v2317 = vshrl.u32 %v2316, 7
      %v2318 = vsub.s32 1, %v2317
      %v2319 = vrot.slane %v2197, %v2318
      %v2320 = vlaneseq
      %v2321 = vshrl.u32 %v2320, 7
      %v2322 = vsub.s32 0, %v2321
      %v2323 = vrot.slane %v2211, %v2322
      %v2324 = vlaneseq
      %v2325 = vshrl.u32 %v2324, 7
      %v2326 = vsub.s32 1, %v2325
      %v2327 = vrot.slane %v2211, %v2326
      %v2328 = vlaneseq
      %v2329 = vshrl.u32 %v2328, 7
      %v2330 = vsub.s32 0, %v2329
      %v2331 = vrot.slane %v2213, %v2330
      %v2332 = vlaneseq
      %v2333 = vshrl.u32 %v2332, 7
      %v2334 = vsub.s32 1, %v2333
      %v2335 = vrot.slane %v2213, %v2334
      %v2336 = vlaneseq
      %v2337 = vshrl.u32 %v2336, 7
      %v2338 = vsub.s32 0, %v2337
      %v2339 = vrot.slane %v2215, %v2338
      %v2340 = vlaneseq
      %v2341 = vshrl.u32 %v2340, 7
      %v2342 = vsub.s32 1, %v2341
      %v2343 = vrot.slane %v2215, %v2342
      %v2376 = vmul.f32 %v2219, %v2088
      %v2377 = vmul.f32 %v2223, %v2089
      %v2378 = vmul.f32 %v2219, %v2090
      %v2379 = vmul.f32 %v2223, %v2091
      %v2380 = vmul.f32 %v2227, %v2088
      %v2381 = vmul.f32 %v2231, %v2089
      %v2382 = vmul.f32 %v2227, %v2090
      %v2383 = vmul.f32 %v2231, %v2091
      %v2384 = vmul.f32 %v2235, %v2088
      %v2385 = vmul.f32 %v2239, %v2089
      %v2386 = vmul.f32 %v2235, %v2090
      %v2387 = vmul.f32 %v2239, %v2091
      %v2388 = vmul.f32 %v2243, %v2088
      %v2389 = vmul.f32 %v2247, %v2089
      %v2390 = vmul.f32 %v2243, %v2090
      %v2391 = vmul.f32 %v2247, %v2091
      %v2392 = vmul.f32 %v2251, %v2088
      %v2393 = vmul.f32 %v2255, %v2089
      %v2394 = vmul.f32 %v2251, %v2090
      %v2395 = vmul.f32 %v2255, %v2091
      %v2396 = vmul.f32 %v2259, %v2088
      %v2397 = vmul.f32 %v2263, %v2089
      %v2398 = vmul.f32 %v2259, %v2090
      %v2399 = vmul.f32 %v2263, %v2091
      %v2400 = vmul.f32 %v2267, %v2088
      %v2401 = vmul.f32 %v2271, %v2089
      %v2402 = vmul.f32 %v2267, %v2090
      %v2403 = vmul.f32 %v2271, %v2091
      %v2404 = vmul.f32 %v2275, %v2088
      %v2405 = vmul.f32 %v2279, %v2089
      %v2406 = vmul.f32 %v2275, %v2090
      %v2407 = vmul.f32 %v2279, %v2091
      %v2408 = vmul.f32 %v2283, %v2088
      %v2409 = vmul.f32 %v2287, %v2089
      %v2410 = vmul.f32 %v2283, %v2090
      %v2411 = vmul.f32 %v2287, %v2091
      %v2412 = vmul.f32 %v2291, %v2088
      %v2413 = vmul.f32 %v2295, %v2089
      %v2414 = vmul.f32 %v2291, %v2090
      %v2415 = vmul.f32 %v2295, %v2091
      %v2416 = vmul.f32 %v2299, %v2088
      %v2417 = vmul.f32 %v2303, %v2089
      %v2418 = vmul.f32 %v2299, %v2090
      %v2419 = vmul.f32 %v2303, %v2091
      %v2420 = vmul.f32 %v2307, %v2088
      %v2421 = vmul.f32 %v2311, %v2089
      %v2422 = vmul.f32 %v2307, %v2090
      %v2423 = vmul.f32 %v2311, %v2091
      %v2424 = vmul.f32 %v2315, %v2088
      %v2425 = vmul.f32 %v2319, %v2089
      %v2426 = vmul.f32 %v2315, %v2090
      %v2427 = vmul.f32 %v2319, %v2091
      %v2428 = vmul.f32 %v2323, %v2088
      %v2429 = vmul.f32 %v2327, %v2089
      %v2430 = vmul.f32 %v2323, %v2090
      %v2431 = vmul.f32 %v2327, %v2091
      %v2432 = vmul.f32 %v2331, %v2088
      %v2433 = vmul.f32 %v2335, %v2089
      %v2434 = vmul.f32 %v2331, %v2090
      %v2435 = vmul.f32 %v2335, %v2091
      %v2436 = vmul.f32 %v2339, %v2088
      %v2437 = vmul.f32 %v2343, %v2089
      %v2438 = vmul.f32 %v2339, %v2090
      %v2439 = vmul.f32 %v2343, %v2091
      %v2440 = vld [vmem:[%s251 + $0x10] sm:$0xff]
      %v2441 = vld [vmem:[%s251 + $0x18] sm:$0xff]
      %v2442 = vmul.f32 %v1794, 0.0625
      %v2443 = vmul.f32 %v1795, 0.0625
      %v2444 = vsub.f32 %v2442, 0.5
      %v2445 = vsub.f32 %v2443, 0.5
      %v2446 = vmul.f32 %v1886, 0.0625
      %v2447 = vmul.f32 %v1887, 0.0625
      %v2448 = vsub.f32 %v2446, 0.5
      %v2449 = vsub.f32 %v2447, 0.5
      %v2450 = vsub.f32 %v637, %v2444
      %v2451 = vsub.f32 %v637, %v2445
      %v2452 = vand.u32 2147483647, %v2450
      %v2453 = vand.u32 2147483647, %v2451
      %v2454 = vsub.f32 1.0, %v2452
      %v2455 = vsub.f32 1.0, %v2453
      %v2456 = vmax.f32 %v2454, 0.0
      %v2457 = vmax.f32 %v2455, 0.0
      %v2458 = vsub.f32 %v637, %v2448
      %v2459 = vsub.f32 %v637, %v2449
      %v2460 = vand.u32 2147483647, %v2458
      %v2461 = vand.u32 2147483647, %v2459
      %v2462 = vsub.f32 1.0, %v2460
      %v2463 = vsub.f32 1.0, %v2461
      %v2464 = vmax.f32 %v2462, 0.0
      %v2465 = vmax.f32 %v2463, 0.0
      %v2466 = vmul.f32 %v2464, %v2060
      %v2467 = vmul.f32 %v2465, %v2067
      %v2470 = vcombine.low %v2466, %v2467
      %v2471 = vcombine.high %v2466, %v2467
      %v2473 = vunpack.c.l.s4 1966171168
      %v2474 = vunpack.c.0.s8 %v2473
      %v2475 = vlaneseq
      %v2476 = vshrl.u32 %v2475, 7
      %v2477 = vsub.s32 %v2474, %v2476
      %v2478 = vrot.slane %v2470, %v2477
      %v2480 = vunpack.c.l.s4 1966171168
      %v2481 = vunpack.c.0.s8 %v2480
      %v2482 = vlaneseq
      %v2483 = vshrl.u32 %v2482, 7
      %v2484 = vsub.s32 %v2481, %v2483
      %v2485 = vrot.slane %v2471, %v2484
      %v2486 = vcombine.high %v2478, %v2478
      %v2487 = vcombine.high %v2485, %v2485
      %v2489 = vunpack.c.l.s4 1966171168
      %v2490 = vunpack.c.0.s8 %v2489
      %v2491 = vlaneseq
      %v2492 = vshrl.u32 %v2491, 7
      %v2493 = vsub.s32 %v2490, %v2492
      %v2494 = vrot.slane %v2478, %v2493
      %v2496 = vunpack.c.l.s4 1966171168
      %v2497 = vunpack.c.0.s8 %v2496
      %v2498 = vlaneseq
      %v2499 = vshrl.u32 %v2498, 7
      %v2500 = vsub.s32 %v2497, %v2499
      %v2501 = vrot.slane %v2485, %v2500
      %v2503 = vunpack.c.l.s4 1966171168
      %v2504 = vunpack.c.0.s8 %v2503
      %v2505 = vlaneseq
      %v2506 = vshrl.u32 %v2505, 7
      %v2507 = vsub.s32 %v2504, %v2506
      %v2508 = vrot.slane %v2486, %v2507
      %v2510 = vunpack.c.l.s4 1966171168
      %v2511 = vunpack.c.0.s8 %v2510
      %v2512 = vlaneseq
      %v2513 = vshrl.u32 %v2512, 7
      %v2514 = vsub.s32 %v2511, %v2513
      %v2515 = vrot.slane %v2487, %v2514
      %v2516 = vcombine.high %v2494, %v2494
      %v2517 = vcombine.high %v2501, %v2501
      %v2518 = vcombine.high %v2508, %v2508
      %v2519 = vcombine.high %v2515, %v2515
      %v2520 = vlaneseq
      %v2521 = vshrl.u32 %v2520, 7
      %v2522 = vsub.s32 0, %v2521
      %v2523 = vrot.slane %v2494, %v2522
      %v2524 = vlaneseq
      %v2525 = vshrl.u32 %v2524, 7
      %v2526 = vsub.s32 1, %v2525
      %v2527 = vrot.slane %v2494, %v2526
      %v2528 = vlaneseq
      %v2529 = vshrl.u32 %v2528, 7
      %v2530 = vsub.s32 0, %v2529
      %v2531 = vrot.slane %v2508, %v2530
      %v2532 = vlaneseq
      %v2533 = vshrl.u32 %v2532, 7
      %v2534 = vsub.s32 1, %v2533
      %v2535 = vrot.slane %v2508, %v2534
      %v2536 = vlaneseq
      %v2537 = vshrl.u32 %v2536, 7
      %v2538 = vsub.s32 0, %v2537
      %v2539 = vrot.slane %v2516, %v2538
      %v2540 = vlaneseq
      %v2541 = vshrl.u32 %v2540, 7
      %v2542 = vsub.s32 1, %v2541
      %v2543 = vrot.slane %v2516, %v2542
      %v2544 = vlaneseq
      %v2545 = vshrl.u32 %v2544, 7
      %v2546 = vsub.s32 0, %v2545
      %v2547 = vrot.slane %v2518, %v2546
      %v2548 = vlaneseq
      %v2549 = vshrl.u32 %v2548, 7
      %v2550 = vsub.s32 1, %v2549
      %v2551 = vrot.slane %v2518, %v2550
      %v2552 = vlaneseq
      %v2553 = vshrl.u32 %v2552, 7
      %v2554 = vsub.s32 0, %v2553
      %v2555 = vrot.slane %v2501, %v2554
      %v2556 = vlaneseq
      %v2557 = vshrl.u32 %v2556, 7
      %v2558 = vsub.s32 1, %v2557
      %v2559 = vrot.slane %v2501, %v2558
      %v2560 = vlaneseq
      %v2561 = vshrl.u32 %v2560, 7
      %v2562 = vsub.s32 0, %v2561
      %v2563 = vrot.slane %v2515, %v2562
      %v2564 = vlaneseq
      %v2565 = vshrl.u32 %v2564, 7
      %v2566 = vsub.s32 1, %v2565
      %v2567 = vrot.slane %v2515, %v2566
      %v2568 = vlaneseq
      %v2569 = vshrl.u32 %v2568, 7
      %v2570 = vsub.s32 0, %v2569
      %v2571 = vrot.slane %v2517, %v2570
      %v2572 = vlaneseq
      %v2573 = vshrl.u32 %v2572, 7
      %v2574 = vsub.s32 1, %v2573
      %v2575 = vrot.slane %v2517, %v2574
      %v2576 = vlaneseq
      %v2577 = vshrl.u32 %v2576, 7
      %v2578 = vsub.s32 0, %v2577
      %v2579 = vrot.slane %v2519, %v2578
      %v2580 = vlaneseq
      %v2581 = vshrl.u32 %v2580, 7
      %v2582 = vsub.s32 1, %v2581
      %v2583 = vrot.slane %v2519, %v2582
      %v2600 = vmul.f32 %v2523, %v2456
      %v2601 = vmul.f32 %v2527, %v2457
      %v2602 = vmul.f32 %v2531, %v2456
      %v2603 = vmul.f32 %v2535, %v2457
      %v2604 = vmul.f32 %v2539, %v2456
      %v2605 = vmul.f32 %v2543, %v2457
      %v2606 = vmul.f32 %v2547, %v2456
      %v2607 = vmul.f32 %v2551, %v2457
      %v2608 = vmul.f32 %v2555, %v2456
      %v2609 = vmul.f32 %v2559, %v2457
      %v2610 = vmul.f32 %v2563, %v2456
      %v2611 = vmul.f32 %v2567, %v2457
      %v2612 = vmul.f32 %v2571, %v2456
      %v2613 = vmul.f32 %v2575, %v2457
      %v2614 = vmul.f32 %v2579, %v2456
      %v2615 = vmul.f32 %v2583, %v2457
      %v2616 = vld [vmem:[%s256 + $0x8] sm:$0xff]
      %v2618 = vsel %vm1556, %v2616, 0
      %2620 = vmatprep.subr.mxu0 %v2601
      %2621 = vmatpush1.msra.mxu0 %v2600
      %2622 = vmatprep.subr.mxu0 %v2603
      %2623 = vmatpush1.msra.mxu0 %v2602
      %2624 = vmatprep.subr.mxu0 %v2605
      %2625 = vmatpush1.msra.mxu0 %v2604
      %2626 = vmatprep.subr.mxu0 %v2607
      %2627 = vmatpush1.msra.mxu0 %v2606
      %2628 = vmatprep.subr.mxu0 %v2609
      %2629 = vmatpush1.msra.mxu0 %v2608
      %2630 = vmatprep.subr.mxu0 %v2611
      %2631 = vmatpush1.msra.mxu0 %v2610
      %2632 = vmatprep.subr.mxu0 %v2613
      %2633 = vmatpush1.msra.mxu0 %v2612
      %2634 = vmatprep.subr.mxu0 %v2615
      %2635 = vmatpush1.msra.mxu0 %v2614
      %2636 = vmatprep.subr.mxu0 0.0
      %2637 = vmatpush1.msra.mxu0 0.0
      %2638 = vmatprep.subr.mxu0 0.0
      %2639 = vmatpush1.msra.mxu0 0.0
      %2640 = vmatprep.subr.mxu0 0.0
      %2641 = vmatpush1.msra.mxu0 0.0
      %2642 = vmatprep.subr.mxu0 0.0
      %2643 = vmatpush1.msra.mxu0 0.0
      %2644 = vmatprep.subr.mxu0 0.0
      %2645 = vmatpush1.msra.mxu0 0.0
      %2646 = vmatprep.subr.mxu0 0.0
      %2647 = vmatpush1.msra.mxu0 0.0
      %2648 = vmatprep.subr.mxu0 0.0
      %2649 = vmatpush1.msra.mxu0 0.0
      %2650 = vmatprep.subr.mxu0 0.0
      %2651 = vmatpush1.msra.mxu0 0.0
      %2652 = vmatprep.subr.mxu0 0.0
      %2653 = vmatpush1.msra.mxu0 0.0
      %2654 = vmatprep.subr.mxu0 0.0
      %2655 = vmatpush1.msra.mxu0 0.0
      %2656 = vmatprep.subr.mxu0 0.0
      %2657 = vmatpush1.msra.mxu0 0.0
      %2658 = vmatprep.subr.mxu0 0.0
      %2659 = vmatpush1.msra.mxu0 0.0
      %2660 = vmatprep.subr.mxu0 0.0
      %2661 = vmatpush1.msra.mxu0 0.0
      %2662 = vmatprep.subr.mxu0 0.0
      %2663 = vmatpush1.msra.mxu0 0.0
      %2664 = vmatprep.subr.mxu0 0.0
      %2665 = vmatpush1.msra.mxu0 0.0
      %2666 = vmatprep.subr.mxu0 0.0
      %2667 = vmatpush1.msra.mxu0 0.0
      %2668 = vmatprep.subr.mxu0 0.0
      %2669 = vmatpush1.msra.mxu0 0.0
      %2670 = vmatprep.subr.mxu0 0.0
      %2671 = vmatpush1.msra.mxu0 0.0
      %2672 = vmatprep.subr.mxu0 0.0
      %2673 = vmatpush1.msra.mxu0 0.0
      %2674 = vmatprep.subr.mxu0 0.0
      %2675 = vmatpush1.msra.mxu0 0.0
      %2676 = vmatprep.subr.mxu0 0.0
      %2677 = vmatpush1.msra.mxu0 0.0
      %2678 = vmatprep.subr.mxu0 0.0
      %2679 = vmatpush1.msra.mxu0 0.0
      %2680 = vmatprep.subr.mxu0 0.0
      %2681 = vmatpush1.msra.mxu0 0.0
      %2682 = vmatprep.subr.mxu0 0.0
      %2683 = vmatpush1.msra.mxu0 0.0
      %2684 = vmatprep.mubr.f32.mxu0 0.0
      %2685 = vmatmul.mubr.f32.gmra.mrb[0].mxu0 %v2618
      %v2686 = vpop.f32.mrb[0].mxu0
      %v2687 = vadd.f32 0.0, %v2686
      %v2688 = vpop.f32.mrb[0].mxu0
      %v2689 = vadd.f32 0.0, %v2688
      %2690 = vdwg.mxu0
      %2691 = vmatprep.subr.mxu0 %v2377
      %2692 = vmatpush1.msra.mxu0 %v2376
      %2693 = vmatprep.subr.mxu0 %v2379
      %2694 = vmatpush1.msra.mxu0 %v2378
      %2695 = vmatprep.subr.mxu0 %v2381
      %2696 = vmatpush1.msra.mxu0 %v2380
      %2697 = vmatprep.subr.mxu0 %v2383
      %2698 = vmatpush1.msra.mxu0 %v2382
      %2699 = vmatprep.subr.mxu0 %v2385
      %2700 = vmatpush1.msra.mxu0 %v2384
      %2701 = vmatprep.subr.mxu0 %v2387
      %2702 = vmatpush1.msra.mxu0 %v2386
      %2703 = vmatprep.subr.mxu0 %v2389
      %2704 = vmatpush1.msra.mxu0 %v2388
      %2705 = vmatprep.subr.mxu0 %v2391
      %2706 = vmatpush1.msra.mxu0 %v2390
      %2707 = vmatprep.subr.mxu0 %v2393
      %2708 = vmatpush1.msra.mxu0 %v2392
      %2709 = vmatprep.subr.mxu0 %v2395
      %2710 = vmatpush1.msra.mxu0 %v2394
      %2711 = vmatprep.subr.mxu0 %v2397
      %2712 = vmatpush1.msra.mxu0 %v2396
      %2713 = vmatprep.subr.mxu0 %v2399
      %2714 = vmatpush1.msra.mxu0 %v2398
      %2715 = vmatprep.subr.mxu0 %v2401
      %2716 = vmatpush1.msra.mxu0 %v2400
      %2717 = vmatprep.subr.mxu0 %v2403
      %2718 = vmatpush1.msra.mxu0 %v2402
      %2719 = vmatprep.subr.mxu0 %v2405
      %2720 = vmatpush1.msra.mxu0 %v2404
      %2721 = vmatprep.subr.mxu0 %v2407
      %2722 = vmatpush1.msra.mxu0 %v2406
      %2723 = vmatprep.subr.mxu0 %v2409
      %2724 = vmatpush1.msra.mxu0 %v2408
      %2725 = vmatprep.subr.mxu0 %v2411
      %2726 = vmatpush1.msra.mxu0 %v2410
      %2727 = vmatprep.subr.mxu0 %v2413
      %2728 = vmatpush1.msra.mxu0 %v2412
      %2729 = vmatprep.subr.mxu0 %v2415
      %2730 = vmatpush1.msra.mxu0 %v2414
      %2731 = vmatprep.subr.mxu0 %v2417
      %2732 = vmatpush1.msra.mxu0 %v2416
      %2733 = vmatprep.subr.mxu0 %v2419
      %2734 = vmatpush1.msra.mxu0 %v2418
      %2735 = vmatprep.subr.mxu0 %v2421
      %2736 = vmatpush1.msra.mxu0 %v2420
      %2737 = vmatprep.subr.mxu0 %v2423
      %2738 = vmatpush1.msra.mxu0 %v2422
      %2739 = vmatprep.subr.mxu0 %v2425
      %2740 = vmatpush1.msra.mxu0 %v2424
      %2741 = vmatprep.subr.mxu0 %v2427
      %2742 = vmatpush1.msra.mxu0 %v2426
      %2743 = vmatprep.subr.mxu0 %v2429
      %2744 = vmatpush1.msra.mxu0 %v2428
      %2745 = vmatprep.subr.mxu0 %v2431
      %2746 = vmatpush1.msra.mxu0 %v2430
      %2747 = vmatprep.subr.mxu0 %v2433
      %2748 = vmatpush1.msra.mxu0 %v2432
      %2749 = vmatprep.subr.mxu0 %v2435
      %2750 = vmatpush1.msra.mxu0 %v2434
      %2751 = vmatprep.subr.mxu0 %v2437
      %2752 = vmatpush1.msra.mxu0 %v2436
      %2753 = vmatprep.subr.mxu0 %v2439
      %2754 = vmatpush1.msra.mxu0 %v2438
      %2755 = vmatprep.mubr.f32.mxu0 %v2441
      %2756 = vmatmul.mubr.f32.gmra.mrb[0].mxu0 %v2440
      %v2757 = vpop.f32.mrb[0].mxu0
      %v2758 = vadd.f32 %v2687, %v2757
      %v2759 = vpop.f32.mrb[0].mxu0
      %v2760 = vadd.f32 %v2689, %v2759
      %2761 = vdwg.mxu0
      %s2762 = scalar_lea.vmem %s261, 16
      %2763 = vst [vmem:[%s2762] sm:$0xff] %v2758
      %2764 = vst.msk [vmem:[%s2762 + $0x8] sm:$0xff] %vm607, %v2760
      %2765 = vrot.lane.b32.xlu0 %v552, 92
      %v2766 = vpop.permute.xlu0 %2765
      %v2767 = vsel %vm639, %v2766, 0
      %2769 = vmatprep.subr.mxu0 %v590
      %2770 = vmatpush1.msra.mxu0 %v589
      %2771 = vmatprep.subr.mxu0 %v592
      %2772 = vmatpush1.msra.mxu0 %v591
      %2773 = vmatprep.subr.mxu0 %v648
      %2774 = vmatpush1.msra.mxu0 %v645
      %2775 = vmatprep.subr.mxu0 0.0
      %2776 = vmatpush1.msra.mxu0 0.0
      %2777 = vmatprep.subr.mxu0 0.0
      %2778 = vmatpush1.msra.mxu0 0.0
      %2779 = vmatprep.subr.mxu0 0.0
      %2780 = vmatpush1.msra.mxu0 0.0
      %2781 = vmatprep.subr.mxu0 0.0
      %2782 = vmatpush1.msra.mxu0 0.0
      %2783 = vmatprep.subr.mxu0 0.0
      %2784 = vmatpush1.msra.mxu0 0.0
      %2785 = vmatprep.subr.mxu0 0.0
      %2786 = vmatpush1.msra.mxu0 0.0
      %2787 = vmatprep.subr.mxu0 0.0
      %2788 = vmatpush1.msra.mxu0 0.0
      %2789 = vmatprep.subr.mxu0 0.0
      %2790 = vmatpush1.msra.mxu0 0.0
      %2791 = vmatprep.subr.mxu0 0.0
      %2792 = vmatpush1.msra.mxu0 0.0
      %2793 = vmatprep.subr.mxu0 0.0
      %2794 = vmatpush1.msra.mxu0 0.0
      %2795 = vmatprep.subr.mxu0 0.0
      %2796 = vmatpush1.msra.mxu0 0.0
      %2797 = vmatprep.subr.mxu0 0.0
      %2798 = vmatpush1.msra.mxu0 0.0
      %2799 = vmatprep.subr.mxu0 0.0
      %2800 = vmatpush1.msra.mxu0 0.0
      %2801 = vmatprep.subr.mxu0 0.0
      %2802 = vmatpush1.msra.mxu0 0.0
      %2803 = vmatprep.subr.mxu0 0.0
      %2804 = vmatpush1.msra.mxu0 0.0
      %2805 = vmatprep.subr.mxu0 0.0
      %2806 = vmatpush1.msra.mxu0 0.0
      %2807 = vmatprep.subr.mxu0 0.0
      %2808 = vmatpush1.msra.mxu0 0.0
      %2809 = vmatprep.subr.mxu0 0.0
      %2810 = vmatpush1.msra.mxu0 0.0
      %2811 = vmatprep.subr.mxu0 0.0
      %2812 = vmatpush1.msra.mxu0 0.0
      %2813 = vmatprep.subr.mxu0 0.0
      %2814 = vmatpush1.msra.mxu0 0.0
      %2815 = vmatprep.subr.mxu0 0.0
      %2816 = vmatpush1.msra.mxu0 0.0
      %2817 = vmatprep.subr.mxu0 0.0
      %2818 = vmatpush1.msra.mxu0 0.0
      %2819 = vmatprep.subr.mxu0 0.0
      %2820 = vmatpush1.msra.mxu0 0.0
      %2821 = vmatprep.subr.mxu0 0.0
      %2822 = vmatpush1.msra.mxu0 0.0
      %2823 = vmatprep.subr.mxu0 0.0
      %2824 = vmatpush1.msra.mxu0 0.0
      %2825 = vmatprep.subr.mxu0 0.0
      %2826 = vmatpush1.msra.mxu0 0.0
      %2827 = vmatprep.subr.mxu0 0.0
      %2828 = vmatpush1.msra.mxu0 0.0
      %2829 = vmatprep.subr.mxu0 0.0
      %2830 = vmatpush1.msra.mxu0 0.0
      %2831 = vmatprep.subr.mxu0 0.0
      %2832 = vmatpush1.msra.mxu0 0.0
      %2833 = vmatprep.mubr.f32.mxu0 0.0
      %2834 = vmatmul.mubr.f32.gmra.mrb[0].mxu0 %v2767
      %v2835 = vpop.f32.mrb[0].mxu0
      %v2836 = vadd.f32 0.0, %v2835
      %v2837 = vpop.f32.mrb[0].mxu0
      %v2838 = vadd.f32 0.0, %v2837
      %2839 = vdwg.mxu0
      %v2840 = vmul.f32 %v2836, %v587
      %v2841 = vmul.f32 %v2838, %v588
      %v2842 = vrot.slane %v2840, 4
      %v2843 = vadd.f32 %v2840, %v2842
      %v2844 = vrot.slane %v2843, 2
      %v2845 = vadd.f32 %v2843, %v2844
      %v2846 = vrot.slane %v2845, 1
      %v2847 = vadd.f32 %v2845, %v2846
      %v2848 = vsel %vm607, %v2841, 0.0
      %v2849 = vrot.slane %v2848, 4
      %v2850 = vadd.f32 %v2848, %v2849
      %v2851 = vrot.slane %v2850, 2
      %v2852 = vadd.f32 %v2850, %v2851
      %v2853 = vrot.slane %v2852, 1
      %v2854 = vadd.f32 %v2852, %v2853
      %v2855 = vadd.f32 %v2847, %v606
      %v2856 = vadd.f32 %v2854, %v614
      %2857 = vrot.lane.b32.xlu0 %v560, 92
      %v2858 = vpop.permute.xlu0 %2857
      %v2859 = vsel %vm639, %v2858, 0
      %2861 = vmatprep.subr.mxu0 %v590
      %2862 = vmatpush1.msra.mxu0 %v589
      %2863 = vmatprep.subr.mxu0 %v592
      %2864 = vmatpush1.msra.mxu0 %v591
      %2865 = vmatprep.subr.mxu0 %v648
      %2866 = vmatpush1.msra.mxu0 %v645
      %2867 = vmatprep.subr.mxu0 0.0
      %2868 = vmatpush1.msra.mxu0 0.0
      %2869 = vmatprep.subr.mxu0 0.0
      %2870 = vmatpush1.msra.mxu0 0.0
      %2871 = vmatprep.subr.mxu0 0.0
      %2872 = vmatpush1.msra.mxu0 0.0
      %2873 = vmatprep.subr.mxu0 0.0
      %2874 = vmatpush1.msra.mxu0 0.0
      %2875 = vmatprep.subr.mxu0 0.0
      %2876 = vmatpush1.msra.mxu0 0.0
      %2877 = vmatprep.subr.mxu0 0.0
      %2878 = vmatpush1.msra.mxu0 0.0
      %2879 = vmatprep.subr.mxu0 0.0
      %2880 = vmatpush1.msra.mxu0 0.0
      %2881 = vmatprep.subr.mxu0 0.0
      %2882 = vmatpush1.msra.mxu0 0.0
      %2883 = vmatprep.subr.mxu0 0.0
      %2884 = vmatpush1.msra.mxu0 0.0
      %2885 = vmatprep.subr.mxu0 0.0
      %2886 = vmatpush1.msra.mxu0 0.0
      %2887 = vmatprep.subr.mxu0 0.0
      %2888 = vmatpush1.msra.mxu0 0.0
      %2889 = vmatprep.subr.mxu0 0.0
      %2890 = vmatpush1.msra.mxu0 0.0
      %2891 = vmatprep.subr.mxu0 0.0
      %2892 = vmatpush1.msra.mxu0 0.0
      %2893 = vmatprep.subr.mxu0 0.0
      %2894 = vmatpush1.msra.mxu0 0.0
      %2895 = vmatprep.subr.mxu0 0.0
      %2896 = vmatpush1.msra.mxu0 0.0
      %2897 = vmatprep.subr.mxu0 0.0
      %2898 = vmatpush1.msra.mxu0 0.0
      %2899 = vmatprep.subr.mxu0 0.0
      %2900 = vmatpush1.msra.mxu0 0.0
      %2901 = vmatprep.subr.mxu0 0.0
      %2902 = vmatpush1.msra.mxu0 0.0
      %2903 = vmatprep.subr.mxu0 0.0
      %2904 = vmatpush1.msra.mxu0 0.0
      %2905 = vmatprep.subr.mxu0 0.0
      %2906 = vmatpush1.msra.mxu0 0.0
      %2907 = vmatprep.subr.mxu0 0.0
      %2908 = vmatpush1.msra.mxu0 0.0
      %2909 = vmatprep.subr.mxu0 0.0
      %2910 = vmatpush1.msra.mxu0 0.0
      %2911 = vmatprep.subr.mxu0 0.0
      %2912 = vmatpush1.msra.mxu0 0.0
      %2913 = vmatprep.subr.mxu0 0.0
      %2914 = vmatpush1.msra.mxu0 0.0
      %2915 = vmatprep.subr.mxu0 0.0
      %2916 = vmatpush1.msra.mxu0 0.0
      %2917 = vmatprep.subr.mxu0 0.0
      %2918 = vmatpush1.msra.mxu0 0.0
      %2919 = vmatprep.subr.mxu0 0.0
      %2920 = vmatpush1.msra.mxu0 0.0
      %2921 = vmatprep.subr.mxu0 0.0
      %2922 = vmatpush1.msra.mxu0 0.0
      %2923 = vmatprep.subr.mxu0 0.0
      %2924 = vmatpush1.msra.mxu0 0.0
      %2925 = vmatprep.mubr.f32.mxu0 0.0
      %2926 = vmatmul.mubr.f32.gmra.mrb[0].mxu0 %v2859
      %v2927 = vpop.f32.mrb[0].mxu0
      %v2928 = vadd.f32 0.0, %v2927
      %v2929 = vpop.f32.mrb[0].mxu0
      %v2930 = vadd.f32 0.0, %v2929
      %2931 = vdwg.mxu0
      %v2932 = vmul.f32 %v2928, %v587
      %v2933 = vmul.f32 %v2930, %v588
      %v2934 = vrot.slane %v2932, 4
      %v2935 = vadd.f32 %v2932, %v2934
      %v2936 = vrot.slane %v2935, 2
      %v2937 = vadd.f32 %v2935, %v2936
      %v2938 = vrot.slane %v2937, 1
      %v2939 = vadd.f32 %v2937, %v2938
      %v2940 = vsel %vm607, %v2933, 0.0
      %v2941 = vrot.slane %v2940, 4
      %v2942 = vadd.f32 %v2940, %v2941
      %v2943 = vrot.slane %v2942, 2
      %v2944 = vadd.f32 %v2942, %v2943
      %v2945 = vrot.slane %v2944, 1
      %v2946 = vadd.f32 %v2944, %v2945
      %v2947 = vadd.f32 %v2939, %v626
      %v2948 = vadd.f32 %v2946, %v633
      %2949 = vrot.lane.b32.xlu0 %v585, 92
      %v2950 = vpop.permute.xlu0 %2949
      %v2951 = vsel %vm639, %v2950, 0
      %2953 = vmatprep.subr.mxu0 %v590
      %2954 = vmatpush1.msra.mxu0 %v589
      %2955 = vmatprep.subr.mxu0 %v592
      %2956 = vmatpush1.msra.mxu0 %v591
      %2957 = vmatprep.subr.mxu0 %v648
      %2958 = vmatpush1.msra.mxu0 %v645
      %2959 = vmatprep.subr.mxu0 0.0
      %2960 = vmatpush1.msra.mxu0 0.0
      %2961 = vmatprep.subr.mxu0 0.0
      %2962 = vmatpush1.msra.mxu0 0.0
      %2963 = vmatprep.subr.mxu0 0.0
      %2964 = vmatpush1.msra.mxu0 0.0
      %2965 = vmatprep.subr.mxu0 0.0
      %2966 = vmatpush1.msra.mxu0 0.0
      %2967 = vmatprep.subr.mxu0 0.0
      %2968 = vmatpush1.msra.mxu0 0.0
      %2969 = vmatprep.subr.mxu0 0.0
      %2970 = vmatpush1.msra.mxu0 0.0
      %2971 = vmatprep.subr.mxu0 0.0
      %2972 = vmatpush1.msra.mxu0 0.0
      %2973 = vmatprep.subr.mxu0 0.0
      %2974 = vmatpush1.msra.mxu0 0.0
      %2975 = vmatprep.subr.mxu0 0.0
      %2976 = vmatpush1.msra.mxu0 0.0
      %2977 = vmatprep.subr.mxu0 0.0
      %2978 = vmatpush1.msra.mxu0 0.0
      %2979 = vmatprep.subr.mxu0 0.0
      %2980 = vmatpush1.msra.mxu0 0.0
      %2981 = vmatprep.subr.mxu0 0.0
      %2982 = vmatpush1.msra.mxu0 0.0
      %2983 = vmatprep.subr.mxu0 0.0
      %2984 = vmatpush1.msra.mxu0 0.0
      %2985 = vmatprep.subr.mxu0 0.0
      %2986 = vmatpush1.msra.mxu0 0.0
      %2987 = vmatprep.subr.mxu0 0.0
      %2988 = vmatpush1.msra.mxu0 0.0
      %2989 = vmatprep.subr.mxu0 0.0
      %2990 = vmatpush1.msra.mxu0 0.0
      %2991 = vmatprep.subr.mxu0 0.0
      %2992 = vmatpush1.msra.mxu0 0.0
      %2993 = vmatprep.subr.mxu0 0.0
      %2994 = vmatpush1.msra.mxu0 0.0
      %2995 = vmatprep.subr.mxu0 0.0
      %2996 = vmatpush1.msra.mxu0 0.0
      %2997 = vmatprep.subr.mxu0 0.0
      %2998 = vmatpush1.msra.mxu0 0.0
      %2999 = vmatprep.subr.mxu0 0.0
      %3000 = vmatpush1.msra.mxu0 0.0
      %3001 = vmatprep.subr.mxu0 0.0
      %3002 = vmatpush1.msra.mxu0 0.0
      %3003 = vmatprep.subr.mxu0 0.0
      %3004 = vmatpush1.msra.mxu0 0.0
      %3005 = vmatprep.subr.mxu0 0.0
      %3006 = vmatpush1.msra.mxu0 0.0
      %3007 = vmatprep.subr.mxu0 0.0
      %3008 = vmatpush1.msra.mxu0 0.0
      %3009 = vmatprep.subr.mxu0 0.0
      %3010 = vmatpush1.msra.mxu0 0.0
      %3011 = vmatprep.subr.mxu0 0.0
      %3012 = vmatpush1.msra.mxu0 0.0
      %3013 = vmatprep.subr.mxu0 0.0
      %3014 = vmatpush1.msra.mxu0 0.0
      %3015 = vmatprep.subr.mxu0 0.0
      %3016 = vmatpush1.msra.mxu0 0.0
      %3017 = vmatprep.mubr.f32.mxu0 0.0
      %3018 = vmatmul.mubr.f32.gmra.mrb[0].mxu0 %v2951
      %v3019 = vpop.f32.mrb[0].mxu0
      %v3020 = vadd.f32 0.0, %v3019
      %v3021 = vpop.f32.mrb[0].mxu0
      %v3022 = vadd.f32 0.0, %v3021
      %3023 = vdwg.mxu0
      %v3024 = vmul.f32 %v3020, %v587
      %v3025 = vmul.f32 %v3022, %v588
      %v3026 = vrot.slane %v3024, 4
      %v3027 = vadd.f32 %v3024, %v3026
      %v3028 = vrot.slane %v3027, 2
      %v3029 = vadd.f32 %v3027, %v3028
      %v3030 = vrot.slane %v3029, 1
      %v3031 = vadd.f32 %v3029, %v3030
      %v3032 = vsel %vm607, %v3025, 0.0
      %v3033 = vrot.slane %v3032, 4
      %v3034 = vadd.f32 %v3032, %v3033
      %v3035 = vrot.slane %v3034, 2
      %v3036 = vadd.f32 %v3034, %v3035
      %v3037 = vrot.slane %v3036, 1
      %v3038 = vadd.f32 %v3036, %v3037
      %3039 = vrot.lane.b32.xlu0 %v586, 92
      %v3040 = vpop.permute.xlu0 %3039
      %v3041 = vsel %vm639, %v3040, 0
      %3043 = vmatprep.subr.mxu0 %v590
      %3044 = vmatpush1.msra.mxu0 %v589
      %3045 = vmatprep.subr.mxu0 %v592
      %3046 = vmatpush1.msra.mxu0 %v591
      %3047 = vmatprep.subr.mxu0 %v648
      %3048 = vmatpush1.msra.mxu0 %v645
      %3049 = vmatprep.subr.mxu0 0.0
      %3050 = vmatpush1.msra.mxu0 0.0
      %3051 = vmatprep.subr.mxu0 0.0
      %3052 = vmatpush1.msra.mxu0 0.0
      %3053 = vmatprep.subr.mxu0 0.0
      %3054 = vmatpush1.msra.mxu0 0.0
      %3055 = vmatprep.subr.mxu0 0.0
      %3056 = vmatpush1.msra.mxu0 0.0
      %3057 = vmatprep.subr.mxu0 0.0
      %3058 = vmatpush1.msra.mxu0 0.0
      %3059 = vmatprep.subr.mxu0 0.0
      %3060 = vmatpush1.msra.mxu0 0.0
      %3061 = vmatprep.subr.mxu0 0.0
      %3062 = vmatpush1.msra.mxu0 0.0
      %3063 = vmatprep.subr.mxu0 0.0
      %3064 = vmatpush1.msra.mxu0 0.0
      %3065 = vmatprep.subr.mxu0 0.0
      %3066 = vmatpush1.msra.mxu0 0.0
      %3067 = vmatprep.subr.mxu0 0.0
      %3068 = vmatpush1.msra.mxu0 0.0
      %3069 = vmatprep.subr.mxu0 0.0
      %3070 = vmatpush1.msra.mxu0 0.0
      %3071 = vmatprep.subr.mxu0 0.0
      %3072 = vmatpush1.msra.mxu0 0.0
      %3073 = vmatprep.subr.mxu0 0.0
      %3074 = vmatpush1.msra.mxu0 0.0
      %3075 = vmatprep.subr.mxu0 0.0
      %3076 = vmatpush1.msra.mxu0 0.0
      %3077 = vmatprep.subr.mxu0 0.0
      %3078 = vmatpush1.msra.mxu0 0.0
      %3079 = vmatprep.subr.mxu0 0.0
      %3080 = vmatpush1.msra.mxu0 0.0
      %3081 = vmatprep.subr.mxu0 0.0
      %3082 = vmatpush1.msra.mxu0 0.0
      %3083 = vmatprep.subr.mxu0 0.0
      %3084 = vmatpush1.msra.mxu0 0.0
      %3085 = vmatprep.subr.mxu0 0.0
      %3086 = vmatpush1.msra.mxu0 0.0
      %3087 = vmatprep.subr.mxu0 0.0
      %3088 = vmatpush1.msra.mxu0 0.0
      %3089 = vmatprep.subr.mxu0 0.0
      %3090 = vmatpush1.msra.mxu0 0.0
      %3091 = vmatprep.subr.mxu0 0.0
      %3092 = vmatpush1.msra.mxu0 0.0
      %3093 = vmatprep.subr.mxu0 0.0
      %3094 = vmatpush1.msra.mxu0 0.0
      %3095 = vmatprep.subr.mxu0 0.0
      %3096 = vmatpush1.msra.mxu0 0.0
      %3097 = vmatprep.subr.mxu0 0.0
      %3098 = vmatpush1.msra.mxu0 0.0
      %3099 = vmatprep.subr.mxu0 0.0
      %3100 = vmatpush1.msra.mxu0 0.0
      %3101 = vmatprep.subr.mxu0 0.0
      %3102 = vmatpush1.msra.mxu0 0.0
      %3103 = vmatprep.subr.mxu0 0.0
      %3104 = vmatpush1.msra.mxu0 0.0
      %3105 = vmatprep.subr.mxu0 0.0
      %3106 = vmatpush1.msra.mxu0 0.0
      %3107 = vmatprep.mubr.f32.mxu0 0.0
      %3108 = vmatmul.mubr.f32.gmra.mrb[0].mxu0 %v3041
      %v3109 = vpop.f32.mrb[0].mxu0
      %v3110 = vadd.f32 0.0, %v3109
      %v3111 = vpop.f32.mrb[0].mxu0
      %v3112 = vadd.f32 0.0, %v3111
      %3113 = vdwg.mxu0
      %v3114 = vmul.f32 %v3110, %v587
      %v3115 = vmul.f32 %v3112, %v588
      %v3116 = vrot.slane %v3114, 4
      %v3117 = vadd.f32 %v3114, %v3116
      %v3118 = vrot.slane %v3117, 2
      %v3119 = vadd.f32 %v3117, %v3118
      %v3120 = vrot.slane %v3119, 1
      %v3121 = vadd.f32 %v3119, %v3120
      %v3122 = vsel %vm607, %v3115, 0.0
      %v3123 = vrot.slane %v3122, 4
      %v3124 = vadd.f32 %v3122, %v3123
      %v3125 = vrot.slane %v3124, 2
      %v3126 = vadd.f32 %v3124, %v3125
      %v3127 = vrot.slane %v3126, 1
      %v3128 = vadd.f32 %v3126, %v3127
      %v3129 = vmul.f32 %v2855, 0.125
      %v3130 = vmul.f32 %v2856, 0.125
      %v3131 = vsub.f32 %v3129, 0.5
      %v3132 = vsub.f32 %v3130, 0.5
      %v3133 = vmul.f32 %v2947, 0.125
      %v3134 = vmul.f32 %v2948, 0.125
      %v3135 = vsub.f32 %v3133, 0.5
      %v3136 = vsub.f32 %v3134, 0.5
      %v3137 = vsub.f32 %v637, %v3131
      %v3138 = vsub.f32 %v637, %v3132
      %v3139 = vsub.f32 %v638, %v3131
      %v3140 = vsub.f32 %v638, %v3132
      %v3141 = vand.u32 2147483647, %v3137
      %v3142 = vand.u32 2147483647, %v3138
      %v3143 = vand.u32 2147483647, %v3139
      %v3144 = vand.u32 2147483647, %v3140
      %v3145 = vsub.f32 1.0, %v3141
      %v3146 = vsub.f32 1.0, %v3142
      %v3147 = vsub.f32 1.0, %v3143
      %v3148 = vsub.f32 1.0, %v3144
      %v3149 = vmax.f32 %v3145, 0.0
      %v3150 = vmax.f32 %v3146, 0.0
      %v3151 = vmax.f32 %v3147, 0.0
      %v3152 = vmax.f32 %v3148, 0.0
      %v3153 = vsub.f32 %v637, %v3135
      %v3154 = vsub.f32 %v637, %v3136
      %v3155 = vsub.f32 %v638, %v3135
      %v3156 = vsub.f32 %v638, %v3136
      %v3157 = vand.u32 2147483647, %v3153
      %v3158 = vand.u32 2147483647, %v3154
      %v3159 = vand.u32 2147483647, %v3155
      %v3160 = vand.u32 2147483647, %v3156
      %v3161 = vsub.f32 1.0, %v3157
      %v3162 = vsub.f32 1.0, %v3158
      %v3163 = vsub.f32 1.0, %v3159
      %v3164 = vsub.f32 1.0, %v3160
      %v3165 = vmax.f32 %v3161, 0.0
      %v3166 = vmax.f32 %v3162, 0.0
      %v3167 = vmax.f32 %v3163, 0.0
      %v3168 = vmax.f32 %v3164, 0.0
      %v3169 = vmul.f32 %v3165, %v3031
      %v3170 = vmul.f32 %v3166, %v3038
      %v3171 = vmul.f32 %v3167, %v3031
      %v3172 = vmul.f32 %v3168, %v3038
      %v3177 = vcombine.low %v3169, %v3170
      %v3178 = vcombine.high %v3169, %v3170
      %v3180 = vunpack.c.l.s4 1966171168
      %v3181 = vunpack.c.0.s8 %v3180
      %v3182 = vlaneseq
      %v3183 = vshrl.u32 %v3182, 7
      %v3184 = vsub.s32 %v3181, %v3183
      %v3185 = vrot.slane %v3177, %v3184
      %v3187 = vunpack.c.l.s4 1966171168
      %v3188 = vunpack.c.0.s8 %v3187
      %v3189 = vlaneseq
      %v3190 = vshrl.u32 %v3189, 7
      %v3191 = vsub.s32 %v3188, %v3190
      %v3192 = vrot.slane %v3178, %v3191
      %v3193 = vcombine.high %v3185, %v3185
      %v3194 = vcombine.high %v3192, %v3192
      %v3196 = vunpack.c.l.s4 1966171168
      %v3197 = vunpack.c.0.s8 %v3196
      %v3198 = vlaneseq
      %v3199 = vshrl.u32 %v3198, 7
      %v3200 = vsub.s32 %v3197, %v3199
      %v3201 = vrot.slane %v3185, %v3200
      %v3203 = vunpack.c.l.s4 1966171168
      %v3204 = vunpack.c.0.s8 %v3203
      %v3205 = vlaneseq
      %v3206 = vshrl.u32 %v3205, 7
      %v3207 = vsub.s32 %v3204, %v3206
      %v3208 = vrot.slane %v3192, %v3207
      %v3210 = vunpack.c.l.s4 1966171168
      %v3211 = vunpack.c.0.s8 %v3210
      %v3212 = vlaneseq
      %v3213 = vshrl.u32 %v3212, 7
      %v3214 = vsub.s32 %v3211, %v3213
      %v3215 = vrot.slane %v3193, %v3214
      %v3217 = vunpack.c.l.s4 1966171168
      %v3218 = vunpack.c.0.s8 %v3217
      %v3219 = vlaneseq
      %v3220 = vshrl.u32 %v3219, 7
      %v3221 = vsub.s32 %v3218, %v3220
      %v3222 = vrot.slane %v3194, %v3221
      %v3223 = vcombine.high %v3201, %v3201
      %v3224 = vcombine.high %v3208, %v3208
      %v3225 = vcombine.high %v3215, %v3215
      %v3226 = vcombine.high %v3222, %v3222
      %v3227 = vcombine.low %v3171, %v3172
      %v3228 = vcombine.high %v3171, %v3172
      %v3230 = vunpack.c.l.s4 1966171168
      %v3231 = vunpack.c.0.s8 %v3230
      %v3232 = vlaneseq
      %v3233 = vshrl.u32 %v3232, 7
      %v3234 = vsub.s32 %v3231, %v3233
      %v3235 = vrot.slane %v3227, %v3234
      %v3237 = vunpack.c.l.s4 1966171168
      %v3238 = vunpack.c.0.s8 %v3237
      %v3239 = vlaneseq
      %v3240 = vshrl.u32 %v3239, 7
      %v3241 = vsub.s32 %v3238, %v3240
      %v3242 = vrot.slane %v3228, %v3241
      %v3243 = vcombine.high %v3235, %v3235
      %v3244 = vcombine.high %v3242, %v3242
      %v3246 = vunpack.c.l.s4 1966171168
      %v3247 = vunpack.c.0.s8 %v3246
      %v3248 = vlaneseq
      %v3249 = vshrl.u32 %v3248, 7
      %v3250 = vsub.s32 %v3247, %v3249
      %v3251 = vrot.slane %v3235, %v3250
      %v3253 = vunpack.c.l.s4 1966171168
      %v3254 = vunpack.c.0.s8 %v3253
      %v3255 = vlaneseq
      %v3256 = vshrl.u32 %v3255, 7
      %v3257 = vsub.s32 %v3254, %v3256
      %v3258 = vrot.slane %v3242, %v3257
      %v3260 = vunpack.c.l.s4 1966171168
      %v3261 = vunpack.c.0.s8 %v3260
      %v3262 = vlaneseq
      %v3263 = vshrl.u32 %v3262, 7
      %v3264 = vsub.s32 %v3261, %v3263
      %v3265 = vrot.slane %v3243, %v3264
      %v3267 = vunpack.c.l.s4 1966171168
      %v3268 = vunpack.c.0.s8 %v3267
      %v3269 = vlaneseq
      %v3270 = vshrl.u32 %v3269, 7
      %v3271 = vsub.s32 %v3268, %v3270
      %v3272 = vrot.slane %v3244, %v3271
      %v3273 = vcombine.high %v3251, %v3251
      %v3274 = vcombine.high %v3258, %v3258
      %v3275 = vcombine.high %v3265, %v3265
      %v3276 = vcombine.high %v3272, %v3272
      %v3277 = vlaneseq
      %v3278 = vshrl.u32 %v3277, 7
      %v3279 = vsub.s32 0, %v3278
      %v3280 = vrot.slane %v3201, %v3279
      %v3281 = vlaneseq
      %v3282 = vshrl.u32 %v3281, 7
      %v3283 = vsub.s32 1, %v3282
      %v3284 = vrot.slane %v3201, %v3283
      %v3285 = vlaneseq
      %v3286 = vshrl.u32 %v3285, 7
      %v3287 = vsub.s32 0, %v3286
      %v3288 = vrot.slane %v3215, %v3287
      %v3289 = vlaneseq
      %v3290 = vshrl.u32 %v3289, 7
      %v3291 = vsub.s32 1, %v3290
      %v3292 = vrot.slane %v3215, %v3291
      %v3293 = vlaneseq
      %v3294 = vshrl.u32 %v3293, 7
      %v3295 = vsub.s32 0, %v3294
      %v3296 = vrot.slane %v3223, %v3295
      %v3297 = vlaneseq
      %v3298 = vshrl.u32 %v3297, 7
      %v3299 = vsub.s32 1, %v3298
      %v3300 = vrot.slane %v3223, %v3299
      %v3301 = vlaneseq
      %v3302 = vshrl.u32 %v3301, 7
      %v3303 = vsub.s32 0, %v3302
      %v3304 = vrot.slane %v3225, %v3303
      %v3305 = vlaneseq
      %v3306 = vshrl.u32 %v3305, 7
      %v3307 = vsub.s32 1, %v3306
      %v3308 = vrot.slane %v3225, %v3307
      %v3309 = vlaneseq
      %v3310 = vshrl.u32 %v3309, 7
      %v3311 = vsub.s32 0, %v3310
      %v3312 = vrot.slane %v3208, %v3311
      %v3313 = vlaneseq
      %v3314 = vshrl.u32 %v3313, 7
      %v3315 = vsub.s32 1, %v3314
      %v3316 = vrot.slane %v3208, %v3315
      %v3317 = vlaneseq
      %v3318 = vshrl.u32 %v3317, 7
      %v3319 = vsub.s32 0, %v3318
      %v3320 = vrot.slane %v3222, %v3319
      %v3321 = vlaneseq
      %v3322 = vshrl.u32 %v3321, 7
      %v3323 = vsub.s32 1, %v3322
      %v3324 = vrot.slane %v3222, %v3323
      %v3325 = vlaneseq
      %v3326 = vshrl.u32 %v3325, 7
      %v3327 = vsub.s32 0, %v3326
      %v3328 = vrot.slane %v3224, %v3327
      %v3329 = vlaneseq
      %v3330 = vshrl.u32 %v3329, 7
      %v3331 = vsub.s32 1, %v3330
      %v3332 = vrot.slane %v3224, %v3331
      %v3333 = vlaneseq
      %v3334 = vshrl.u32 %v3333, 7
      %v3335 = vsub.s32 0, %v3334
      %v3336 = vrot.slane %v3226, %v3335
      %v3337 = vlaneseq
      %v3338 = vshrl.u32 %v3337, 7
      %v3339 = vsub.s32 1, %v3338
      %v3340 = vrot.slane %v3226, %v3339
      %v3341 = vlaneseq
      %v3342 = vshrl.u32 %v3341, 7
      %v3343 = vsub.s32 0, %v3342
      %v3344 = vrot.slane %v3251, %v3343
      %v3345 = vlaneseq
      %v3346 = vshrl.u32 %v3345, 7
      %v3347 = vsub.s32 1, %v3346
      %v3348 = vrot.slane %v3251, %v3347
      %v3349 = vlaneseq
      %v3350 = vshrl.u32 %v3349, 7
      %v3351 = vsub.s32 0, %v3350
      %v3352 = vrot.slane %v3265, %v3351
      %v3353 = vlaneseq
      %v3354 = vshrl.u32 %v3353, 7
      %v3355 = vsub.s32 1, %v3354
      %v3356 = vrot.slane %v3265, %v3355
      %v3357 = vlaneseq
      %v3358 = vshrl.u32 %v3357, 7
      %v3359 = vsub.s32 0, %v3358
      %v3360 = vrot.slane %v3273, %v3359
      %v3361 = vlaneseq
      %v3362 = vshrl.u32 %v3361, 7
      %v3363 = vsub.s32 1, %v3362
      %v3364 = vrot.slane %v3273, %v3363
      %v3365 = vlaneseq
      %v3366 = vshrl.u32 %v3365, 7
      %v3367 = vsub.s32 0, %v3366
      %v3368 = vrot.slane %v3275, %v3367
      %v3369 = vlaneseq
      %v3370 = vshrl.u32 %v3369, 7
      %v3371 = vsub.s32 1, %v3370
      %v3372 = vrot.slane %v3275, %v3371
      %v3373 = vlaneseq
      %v3374 = vshrl.u32 %v3373, 7
      %v3375 = vsub.s32 0, %v3374
      %v3376 = vrot.slane %v3258, %v3375
      %v3377 = vlaneseq
      %v3378 = vshrl.u32 %v3377, 7
      %v3379 = vsub.s32 1, %v3378
      %v3380 = vrot.slane %v3258, %v3379
      %v3381 = vlaneseq
      %v3382 = vshrl.u32 %v3381, 7
      %v3383 = vsub.s32 0, %v3382
      %v3384 = vrot.slane %v3272, %v3383
      %v3385 = vlaneseq
      %v3386 = vshrl.u32 %v3385, 7
      %v3387 = vsub.s32 1, %v3386
      %v3388 = vrot.slane %v3272, %v3387
      %v3389 = vlaneseq
      %v3390 = vshrl.u32 %v3389, 7
      %v3391 = vsub.s32 0, %v3390
      %v3392 = vrot.slane %v3274, %v3391
      %v3393 = vlaneseq
      %v3394 = vshrl.u32 %v3393, 7
      %v3395 = vsub.s32 1, %v3394
      %v3396 = vrot.slane %v3274, %v3395
      %v3397 = vlaneseq
      %v3398 = vshrl.u32 %v3397, 7
      %v3399 = vsub.s32 0, %v3398
      %v3400 = vrot.slane %v3276, %v3399
      %v3401 = vlaneseq
      %v3402 = vshrl.u32 %v3401, 7
      %v3403 = vsub.s32 1, %v3402
      %v3404 = vrot.slane %v3276, %v3403
      %v3437 = vmul.f32 %v3280, %v3149
      %v3438 = vmul.f32 %v3284, %v3150
      %v3439 = vmul.f32 %v3280, %v3151
      %v3440 = vmul.f32 %v3284, %v3152
      %v3441 = vmul.f32 %v3288, %v3149
      %v3442 = vmul.f32 %v3292, %v3150
      %v3443 = vmul.f32 %v3288, %v3151
      %v3444 = vmul.f32 %v3292, %v3152
      %v3445 = vmul.f32 %v3296, %v3149
      %v3446 = vmul.f32 %v3300, %v3150
      %v3447 = vmul.f32 %v3296, %v3151
      %v3448 = vmul.f32 %v3300, %v3152
      %v3449 = vmul.f32 %v3304, %v3149
      %v3450 = vmul.f32 %v3308, %v3150
      %v3451 = vmul.f32 %v3304, %v3151
      %v3452 = vmul.f32 %v3308, %v3152
      %v3453 = vmul.f32 %v3312, %v3149
      %v3454 = vmul.f32 %v3316, %v3150
      %v3455 = vmul.f32 %v3312, %v3151
      %v3456 = vmul.f32 %v3316, %v3152
      %v3457 = vmul.f32 %v3320, %v3149
      %v3458 = vmul.f32 %v3324, %v3150
      %v3459 = vmul.f32 %v3320, %v3151
      %v3460 = vmul.f32 %v3324, %v3152
      %v3461 = vmul.f32 %v3328, %v3149
      %v3462 = vmul.f32 %v3332, %v3150
      %v3463 = vmul.f32 %v3328, %v3151
      %v3464 = vmul.f32 %v3332, %v3152
      %v3465 = vmul.f32 %v3336, %v3149
      %v3466 = vmul.f32 %v3340, %v3150
      %v3467 = vmul.f32 %v3336, %v3151
      %v3468 = vmul.f32 %v3340, %v3152
      %v3469 = vmul.f32 %v3344, %v3149
      %v3470 = vmul.f32 %v3348, %v3150
      %v3471 = vmul.f32 %v3344, %v3151
      %v3472 = vmul.f32 %v3348, %v3152
      %v3473 = vmul.f32 %v3352, %v3149
      %v3474 = vmul.f32 %v3356, %v3150
      %v3475 = vmul.f32 %v3352, %v3151
      %v3476 = vmul.f32 %v3356, %v3152
      %v3477 = vmul.f32 %v3360, %v3149
      %v3478 = vmul.f32 %v3364, %v3150
      %v3479 = vmul.f32 %v3360, %v3151
      %v3480 = vmul.f32 %v3364, %v3152
      %v3481 = vmul.f32 %v3368, %v3149
      %v3482 = vmul.f32 %v3372, %v3150
      %v3483 = vmul.f32 %v3368, %v3151
      %v3484 = vmul.f32 %v3372, %v3152
      %v3485 = vmul.f32 %v3376, %v3149
      %v3486 = vmul.f32 %v3380, %v3150
      %v3487 = vmul.f32 %v3376, %v3151
      %v3488 = vmul.f32 %v3380, %v3152
      %v3489 = vmul.f32 %v3384, %v3149
      %v3490 = vmul.f32 %v3388, %v3150
      %v3491 = vmul.f32 %v3384, %v3151
      %v3492 = vmul.f32 %v3388, %v3152
      %v3493 = vmul.f32 %v3392, %v3149
      %v3494 = vmul.f32 %v3396, %v3150
      %v3495 = vmul.f32 %v3392, %v3151
      %v3496 = vmul.f32 %v3396, %v3152
      %v3497 = vmul.f32 %v3400, %v3149
      %v3498 = vmul.f32 %v3404, %v3150
      %v3499 = vmul.f32 %v3400, %v3151
      %v3500 = vmul.f32 %v3404, %v3152
      %v3501 = vld [vmem:[%s251 + $0x20] sm:$0xff]
      %v3502 = vld [vmem:[%s251 + $0x28] sm:$0xff]
      %v3503 = vmul.f32 %v2855, 0.0625
      %v3504 = vmul.f32 %v2856, 0.0625
      %v3505 = vsub.f32 %v3503, 0.5
      %v3506 = vsub.f32 %v3504, 0.5
      %v3507 = vmul.f32 %v2947, 0.0625
      %v3508 = vmul.f32 %v2948, 0.0625
      %v3509 = vsub.f32 %v3507, 0.5
      %v3510 = vsub.f32 %v3508, 0.5
      %v3511 = vsub.f32 %v637, %v3505
      %v3512 = vsub.f32 %v637, %v3506
      %v3513 = vand.u32 2147483647, %v3511
      %v3514 = vand.u32 2147483647, %v3512
      %v3515 = vsub.f32 1.0, %v3513
      %v3516 = vsub.f32 1.0, %v3514
      %v3517 = vmax.f32 %v3515, 0.0
      %v3518 = vmax.f32 %v3516, 0.0
      %v3519 = vsub.f32 %v637, %v3509
      %v3520 = vsub.f32 %v637, %v3510
      %v3521 = vand.u32 2147483647, %v3519
      %v3522 = vand.u32 2147483647, %v3520
      %v3523 = vsub.f32 1.0, %v3521
      %v3524 = vsub.f32 1.0, %v3522
      %v3525 = vmax.f32 %v3523, 0.0
      %v3526 = vmax.f32 %v3524, 0.0
      %v3527 = vmul.f32 %v3525, %v3121
      %v3528 = vmul.f32 %v3526, %v3128
      %v3531 = vcombine.low %v3527, %v3528
      %v3532 = vcombine.high %v3527, %v3528
      %v3534 = vunpack.c.l.s4 1966171168
      %v3535 = vunpack.c.0.s8 %v3534
      %v3536 = vlaneseq
      %v3537 = vshrl.u32 %v3536, 7
      %v3538 = vsub.s32 %v3535, %v3537
      %v3539 = vrot.slane %v3531, %v3538
      %v3541 = vunpack.c.l.s4 1966171168
      %v3542 = vunpack.c.0.s8 %v3541
      %v3543 = vlaneseq
      %v3544 = vshrl.u32 %v3543, 7
      %v3545 = vsub.s32 %v3542, %v3544
      %v3546 = vrot.slane %v3532, %v3545
      %v3547 = vcombine.high %v3539, %v3539
      %v3548 = vcombine.high %v3546, %v3546
      %v3550 = vunpack.c.l.s4 1966171168
      %v3551 = vunpack.c.0.s8 %v3550
      %v3552 = vlaneseq
      %v3553 = vshrl.u32 %v3552, 7
      %v3554 = vsub.s32 %v3551, %v3553
      %v3555 = vrot.slane %v3539, %v3554
      %v3557 = vunpack.c.l.s4 1966171168
      %v3558 = vunpack.c.0.s8 %v3557
      %v3559 = vlaneseq
      %v3560 = vshrl.u32 %v3559, 7
      %v3561 = vsub.s32 %v3558, %v3560
      %v3562 = vrot.slane %v3546, %v3561
      %v3564 = vunpack.c.l.s4 1966171168
      %v3565 = vunpack.c.0.s8 %v3564
      %v3566 = vlaneseq
      %v3567 = vshrl.u32 %v3566, 7
      %v3568 = vsub.s32 %v3565, %v3567
      %v3569 = vrot.slane %v3547, %v3568
      %v3571 = vunpack.c.l.s4 1966171168
      %v3572 = vunpack.c.0.s8 %v3571
      %v3573 = vlaneseq
      %v3574 = vshrl.u32 %v3573, 7
      %v3575 = vsub.s32 %v3572, %v3574
      %v3576 = vrot.slane %v3548, %v3575
      %v3577 = vcombine.high %v3555, %v3555
      %v3578 = vcombine.high %v3562, %v3562
      %v3579 = vcombine.high %v3569, %v3569
      %v3580 = vcombine.high %v3576, %v3576
      %v3581 = vlaneseq
      %v3582 = vshrl.u32 %v3581, 7
      %v3583 = vsub.s32 0, %v3582
      %v3584 = vrot.slane %v3555, %v3583
      %v3585 = vlaneseq
      %v3586 = vshrl.u32 %v3585, 7
      %v3587 = vsub.s32 1, %v3586
      %v3588 = vrot.slane %v3555, %v3587
      %v3589 = vlaneseq
      %v3590 = vshrl.u32 %v3589, 7
      %v3591 = vsub.s32 0, %v3590
      %v3592 = vrot.slane %v3569, %v3591
      %v3593 = vlaneseq
      %v3594 = vshrl.u32 %v3593, 7
      %v3595 = vsub.s32 1, %v3594
      %v3596 = vrot.slane %v3569, %v3595
      %v3597 = vlaneseq
      %v3598 = vshrl.u32 %v3597, 7
      %v3599 = vsub.s32 0, %v3598
      %v3600 = vrot.slane %v3577, %v3599
      %v3601 = vlaneseq
      %v3602 = vshrl.u32 %v3601, 7
      %v3603 = vsub.s32 1, %v3602
      %v3604 = vrot.slane %v3577, %v3603
      %v3605 = vlaneseq
      %v3606 = vshrl.u32 %v3605, 7
      %v3607 = vsub.s32 0, %v3606
      %v3608 = vrot.slane %v3579, %v3607
      %v3609 = vlaneseq
      %v3610 = vshrl.u32 %v3609, 7
      %v3611 = vsub.s32 1, %v3610
      %v3612 = vrot.slane %v3579, %v3611
      %v3613 = vlaneseq
      %v3614 = vshrl.u32 %v3613, 7
      %v3615 = vsub.s32 0, %v3614
      %v3616 = vrot.slane %v3562, %v3615
      %v3617 = vlaneseq
      %v3618 = vshrl.u32 %v3617, 7
      %v3619 = vsub.s32 1, %v3618
      %v3620 = vrot.slane %v3562, %v3619
      %v3621 = vlaneseq
      %v3622 = vshrl.u32 %v3621, 7
      %v3623 = vsub.s32 0, %v3622
      %v3624 = vrot.slane %v3576, %v3623
      %v3625 = vlaneseq
      %v3626 = vshrl.u32 %v3625, 7
      %v3627 = vsub.s32 1, %v3626
      %v3628 = vrot.slane %v3576, %v3627
      %v3629 = vlaneseq
      %v3630 = vshrl.u32 %v3629, 7
      %v3631 = vsub.s32 0, %v3630
      %v3632 = vrot.slane %v3578, %v3631
      %v3633 = vlaneseq
      %v3634 = vshrl.u32 %v3633, 7
      %v3635 = vsub.s32 1, %v3634
      %v3636 = vrot.slane %v3578, %v3635
      %v3637 = vlaneseq
      %v3638 = vshrl.u32 %v3637, 7
      %v3639 = vsub.s32 0, %v3638
      %v3640 = vrot.slane %v3580, %v3639
      %v3641 = vlaneseq
      %v3642 = vshrl.u32 %v3641, 7
      %v3643 = vsub.s32 1, %v3642
      %v3644 = vrot.slane %v3580, %v3643
      %v3661 = vmul.f32 %v3584, %v3517
      %v3662 = vmul.f32 %v3588, %v3518
      %v3663 = vmul.f32 %v3592, %v3517
      %v3664 = vmul.f32 %v3596, %v3518
      %v3665 = vmul.f32 %v3600, %v3517
      %v3666 = vmul.f32 %v3604, %v3518
      %v3667 = vmul.f32 %v3608, %v3517
      %v3668 = vmul.f32 %v3612, %v3518
      %v3669 = vmul.f32 %v3616, %v3517
      %v3670 = vmul.f32 %v3620, %v3518
      %v3671 = vmul.f32 %v3624, %v3517
      %v3672 = vmul.f32 %v3628, %v3518
      %v3673 = vmul.f32 %v3632, %v3517
      %v3674 = vmul.f32 %v3636, %v3518
      %v3675 = vmul.f32 %v3640, %v3517
      %v3676 = vmul.f32 %v3644, %v3518
      %v3677 = vld [vmem:[%s256 + $0x10] sm:$0xff]
      %v3679 = vsel %vm1556, %v3677, 0
      %3681 = vmatprep.subr.mxu0 %v3662
      %3682 = vmatpush1.msra.mxu0 %v3661
      %3683 = vmatprep.subr.mxu0 %v3664
      %3684 = vmatpush1.msra.mxu0 %v3663
      %3685 = vmatprep.subr.mxu0 %v3666
      %3686 = vmatpush1.msra.mxu0 %v3665
      %3687 = vmatprep.subr.mxu0 %v3668
      %3688 = vmatpush1.msra.mxu0 %v3667
      %3689 = vmatprep.subr.mxu0 %v3670
      %3690 = vmatpush1.msra.mxu0 %v3669
      %3691 = vmatprep.subr.mxu0 %v3672
      %3692 = vmatpush1.msra.mxu0 %v3671
      %3693 = vmatprep.subr.mxu0 %v3674
      %3694 = vmatpush1.msra.mxu0 %v3673
      %3695 = vmatprep.subr.mxu0 %v3676
      %3696 = vmatpush1.msra.mxu0 %v3675
      %3697 = vmatprep.subr.mxu0 0.0
      %3698 = vmatpush1.msra.mxu0 0.0
      %3699 = vmatprep.subr.mxu0 0.0
      %3700 = vmatpush1.msra.mxu0 0.0
      %3701 = vmatprep.subr.mxu0 0.0
      %3702 = vmatpush1.msra.mxu0 0.0
      %3703 = vmatprep.subr.mxu0 0.0
      %3704 = vmatpush1.msra.mxu0 0.0
      %3705 = vmatprep.subr.mxu0 0.0
      %3706 = vmatpush1.msra.mxu0 0.0
      %3707 = vmatprep.subr.mxu0 0.0
      %3708 = vmatpush1.msra.mxu0 0.0
      %3709 = vmatprep.subr.mxu0 0.0
      %3710 = vmatpush1.msra.mxu0 0.0
      %3711 = vmatprep.subr.mxu0 0.0
      %3712 = vmatpush1.msra.mxu0 0.0
      %3713 = vmatprep.subr.mxu0 0.0
      %3714 = vmatpush1.msra.mxu0 0.0
      %3715 = vmatprep.subr.mxu0 0.0
      %3716 = vmatpush1.msra.mxu0 0.0
      %3717 = vmatprep.subr.mxu0 0.0
      %3718 = vmatpush1.msra.mxu0 0.0
      %3719 = vmatprep.subr.mxu0 0.0
      %3720 = vmatpush1.msra.mxu0 0.0
      %3721 = vmatprep.subr.mxu0 0.0
      %3722 = vmatpush1.msra.mxu0 0.0
      %3723 = vmatprep.subr.mxu0 0.0
      %3724 = vmatpush1.msra.mxu0 0.0
      %3725 = vmatprep.subr.mxu0 0.0
      %3726 = vmatpush1.msra.mxu0 0.0
      %3727 = vmatprep.subr.mxu0 0.0
      %3728 = vmatpush1.msra.mxu0 0.0
      %3729 = vmatprep.subr.mxu0 0.0
      %3730 = vmatpush1.msra.mxu0 0.0
      %3731 = vmatprep.subr.mxu0 0.0
      %3732 = vmatpush1.msra.mxu0 0.0
      %3733 = vmatprep.subr.mxu0 0.0
      %3734 = vmatpush1.msra.mxu0 0.0
      %3735 = vmatprep.subr.mxu0 0.0
      %3736 = vmatpush1.msra.mxu0 0.0
      %3737 = vmatprep.subr.mxu0 0.0
      %3738 = vmatpush1.msra.mxu0 0.0
      %3739 = vmatprep.subr.mxu0 0.0
      %3740 = vmatpush1.msra.mxu0 0.0
      %3741 = vmatprep.subr.mxu0 0.0
      %3742 = vmatpush1.msra.mxu0 0.0
      %3743 = vmatprep.subr.mxu0 0.0
      %3744 = vmatpush1.msra.mxu0 0.0
      %3745 = vmatprep.mubr.f32.mxu0 0.0
      %3746 = vmatmul.mubr.f32.gmra.mrb[0].mxu0 %v3679
      %v3747 = vpop.f32.mrb[0].mxu0
      %v3748 = vadd.f32 0.0, %v3747
      %v3749 = vpop.f32.mrb[0].mxu0
      %v3750 = vadd.f32 0.0, %v3749
      %3751 = vdwg.mxu0
      %3752 = vmatprep.subr.mxu0 %v3438
      %3753 = vmatpush1.msra.mxu0 %v3437
      %3754 = vmatprep.subr.mxu0 %v3440
      %3755 = vmatpush1.msra.mxu0 %v3439
      %3756 = vmatprep.subr.mxu0 %v3442
      %3757 = vmatpush1.msra.mxu0 %v3441
      %3758 = vmatprep.subr.mxu0 %v3444
      %3759 = vmatpush1.msra.mxu0 %v3443
      %3760 = vmatprep.subr.mxu0 %v3446
      %3761 = vmatpush1.msra.mxu0 %v3445
      %3762 = vmatprep.subr.mxu0 %v3448
      %3763 = vmatpush1.msra.mxu0 %v3447
      %3764 = vmatprep.subr.mxu0 %v3450
      %3765 = vmatpush1.msra.mxu0 %v3449
      %3766 = vmatprep.subr.mxu0 %v3452
      %3767 = vmatpush1.msra.mxu0 %v3451
      %3768 = vmatprep.subr.mxu0 %v3454
      %3769 = vmatpush1.msra.mxu0 %v3453
      %3770 = vmatprep.subr.mxu0 %v3456
      %3771 = vmatpush1.msra.mxu0 %v3455
      %3772 = vmatprep.subr.mxu0 %v3458
      %3773 = vmatpush1.msra.mxu0 %v3457
      %3774 = vmatprep.subr.mxu0 %v3460
      %3775 = vmatpush1.msra.mxu0 %v3459
      %3776 = vmatprep.subr.mxu0 %v3462
      %3777 = vmatpush1.msra.mxu0 %v3461
      %3778 = vmatprep.subr.mxu0 %v3464
      %3779 = vmatpush1.msra.mxu0 %v3463
      %3780 = vmatprep.subr.mxu0 %v3466
      %3781 = vmatpush1.msra.mxu0 %v3465
      %3782 = vmatprep.subr.mxu0 %v3468
      %3783 = vmatpush1.msra.mxu0 %v3467
      %3784 = vmatprep.subr.mxu0 %v3470
      %3785 = vmatpush1.msra.mxu0 %v3469
      %3786 = vmatprep.subr.mxu0 %v3472
      %3787 = vmatpush1.msra.mxu0 %v3471
      %3788 = vmatprep.subr.mxu0 %v3474
      %3789 = vmatpush1.msra.mxu0 %v3473
      %3790 = vmatprep.subr.mxu0 %v3476
      %3791 = vmatpush1.msra.mxu0 %v3475
      %3792 = vmatprep.subr.mxu0 %v3478
      %3793 = vmatpush1.msra.mxu0 %v3477
      %3794 = vmatprep.subr.mxu0 %v3480
      %3795 = vmatpush1.msra.mxu0 %v3479
      %3796 = vmatprep.subr.mxu0 %v3482
      %3797 = vmatpush1.msra.mxu0 %v3481
      %3798 = vmatprep.subr.mxu0 %v3484
      %3799 = vmatpush1.msra.mxu0 %v3483
      %3800 = vmatprep.subr.mxu0 %v3486
      %3801 = vmatpush1.msra.mxu0 %v3485
      %3802 = vmatprep.subr.mxu0 %v3488
      %3803 = vmatpush1.msra.mxu0 %v3487
      %3804 = vmatprep.subr.mxu0 %v3490
      %3805 = vmatpush1.msra.mxu0 %v3489
      %3806 = vmatprep.subr.mxu0 %v3492
      %3807 = vmatpush1.msra.mxu0 %v3491
      %3808 = vmatprep.subr.mxu0 %v3494
      %3809 = vmatpush1.msra.mxu0 %v3493
      %3810 = vmatprep.subr.mxu0 %v3496
      %3811 = vmatpush1.msra.mxu0 %v3495
      %3812 = vmatprep.subr.mxu0 %v3498
      %3813 = vmatpush1.msra.mxu0 %v3497
      %3814 = vmatprep.subr.mxu0 %v3500
      %3815 = vmatpush1.msra.mxu0 %v3499
      %3816 = vmatprep.mubr.f32.mxu0 %v3502
      %3817 = vmatmul.mubr.f32.gmra.mrb[0].mxu0 %v3501
      %v3818 = vpop.f32.mrb[0].mxu0
      %v3819 = vadd.f32 %v3748, %v3818
      %v3820 = vpop.f32.mrb[0].mxu0
      %v3821 = vadd.f32 %v3750, %v3820
      %3822 = vdwg.mxu0
      %s3823 = scalar_lea.vmem %s261, 32
      %3824 = vst [vmem:[%s3823] sm:$0xff] %v3819
      %3825 = vst.msk [vmem:[%s3823 + $0x8] sm:$0xff] %vm607, %v3821
      %3826 = vrot.lane.b32.xlu0 %v552, 74
      %v3827 = vpop.permute.xlu0 %3826
      %v3828 = vsel %vm639, %v3827, 0
      %3830 = vmatprep.subr.mxu0 %v590
      %3831 = vmatpush1.msra.mxu0 %v589
      %3832 = vmatprep.subr.mxu0 %v592
      %3833 = vmatpush1.msra.mxu0 %v591
      %3834 = vmatprep.subr.mxu0 %v648
      %3835 = vmatpush1.msra.mxu0 %v645
      %3836 = vmatprep.subr.mxu0 0.0
      %3837 = vmatpush1.msra.mxu0 0.0
      %3838 = vmatprep.subr.mxu0 0.0
      %3839 = vmatpush1.msra.mxu0 0.0
      %3840 = vmatprep.subr.mxu0 0.0
      %3841 = vmatpush1.msra.mxu0 0.0
      %3842 = vmatprep.subr.mxu0 0.0
      %3843 = vmatpush1.msra.mxu0 0.0
      %3844 = vmatprep.subr.mxu0 0.0
      %3845 = vmatpush1.msra.mxu0 0.0
      %3846 = vmatprep.subr.mxu0 0.0
      %3847 = vmatpush1.msra.mxu0 0.0
      %3848 = vmatprep.subr.mxu0 0.0
      %3849 = vmatpush1.msra.mxu0 0.0
      %3850 = vmatprep.subr.mxu0 0.0
      %3851 = vmatpush1.msra.mxu0 0.0
      %3852 = vmatprep.subr.mxu0 0.0
      %3853 = vmatpush1.msra.mxu0 0.0
      %3854 = vmatprep.subr.mxu0 0.0
      %3855 = vmatpush1.msra.mxu0 0.0
      %3856 = vmatprep.subr.mxu0 0.0
      %3857 = vmatpush1.msra.mxu0 0.0
      %3858 = vmatprep.subr.mxu0 0.0
      %3859 = vmatpush1.msra.mxu0 0.0
      %3860 = vmatprep.subr.mxu0 0.0
      %3861 = vmatpush1.msra.mxu0 0.0
      %3862 = vmatprep.subr.mxu0 0.0
      %3863 = vmatpush1.msra.mxu0 0.0
      %3864 = vmatprep.subr.mxu0 0.0
      %3865 = vmatpush1.msra.mxu0 0.0
      %3866 = vmatprep.subr.mxu0 0.0
      %3867 = vmatpush1.msra.mxu0 0.0
      %3868 = vmatprep.subr.mxu0 0.0
      %3869 = vmatpush1.msra.mxu0 0.0
      %3870 = vmatprep.subr.mxu0 0.0
      %3871 = vmatpush1.msra.mxu0 0.0
      %3872 = vmatprep.subr.mxu0 0.0
      %3873 = vmatpush1.msra.mxu0 0.0
      %3874 = vmatprep.subr.mxu0 0.0
      %3875 = vmatpush1.msra.mxu0 0.0
      %3876 = vmatprep.subr.mxu0 0.0
      %3877 = vmatpush1.msra.mxu0 0.0
      %3878 = vmatprep.subr.mxu0 0.0
      %3879 = vmatpush1.msra.mxu0 0.0
      %3880 = vmatprep.subr.mxu0 0.0
      %3881 = vmatpush1.msra.mxu0 0.0
      %3882 = vmatprep.subr.mxu0 0.0
      %3883 = vmatpush1.msra.mxu0 0.0
      %3884 = vmatprep.subr.mxu0 0.0
      %3885 = vmatpush1.msra.mxu0 0.0
      %3886 = vmatprep.subr.mxu0 0.0
      %3887 = vmatpush1.msra.mxu0 0.0
      %3888 = vmatprep.subr.mxu0 0.0
      %3889 = vmatpush1.msra.mxu0 0.0
      %3890 = vmatprep.subr.mxu0 0.0
      %3891 = vmatpush1.msra.mxu0 0.0
      %3892 = vmatprep.subr.mxu0 0.0
      %3893 = vmatpush1.msra.mxu0 0.0
      %3894 = vmatprep.mubr.f32.mxu0 0.0
      %3895 = vmatmul.mubr.f32.gmra.mrb[0].mxu0 %v3828
      %v3896 = vpop.f32.mrb[0].mxu0
      %v3897 = vadd.f32 0.0, %v3896
      %v3898 = vpop.f32.mrb[0].mxu0
      %v3899 = vadd.f32 0.0, %v3898
      %3900 = vdwg.mxu0
      %v3901 = vmul.f32 %v3897, %v587
      %v3902 = vmul.f32 %v3899, %v588
      %v3903 = vrot.slane %v3901, 4
      %v3904 = vadd.f32 %v3901, %v3903
      %v3905 = vrot.slane %v3904, 2
      %v3906 = vadd.f32 %v3904, %v3905
      %v3907 = vrot.slane %v3906, 1
      %v3908 = vadd.f32 %v3906, %v3907
      %v3909 = vsel %vm607, %v3902, 0.0
      %v3910 = vrot.slane %v3909, 4
      %v3911 = vadd.f32 %v3909, %v3910
      %v3912 = vrot.slane %v3911, 2
      %v3913 = vadd.f32 %v3911, %v3912
      %v3914 = vrot.slane %v3913, 1
      %v3915 = vadd.f32 %v3913, %v3914
      %v3916 = vadd.f32 %v3908, %v606
      %v3917 = vadd.f32 %v3915, %v614
      %3918 = vrot.lane.b32.xlu0 %v560, 74
      %v3919 = vpop.permute.xlu0 %3918
      %v3920 = vsel %vm639, %v3919, 0
      %3922 = vmatprep.subr.mxu0 %v590
      %3923 = vmatpush1.msra.mxu0 %v589
      %3924 = vmatprep.subr.mxu0 %v592
      %3925 = vmatpush1.msra.mxu0 %v591
      %3926 = vmatprep.subr.mxu0 %v648
      %3927 = vmatpush1.msra.mxu0 %v645
      %3928 = vmatprep.subr.mxu0 0.0
      %3929 = vmatpush1.msra.mxu0 0.0
      %3930 = vmatprep.subr.mxu0 0.0
      %3931 = vmatpush1.msra.mxu0 0.0
      %3932 = vmatprep.subr.mxu0 0.0
      %3933 = vmatpush1.msra.mxu0 0.0
      %3934 = vmatprep.subr.mxu0 0.0
      %3935 = vmatpush1.msra.mxu0 0.0
      %3936 = vmatprep.subr.mxu0 0.0
      %3937 = vmatpush1.msra.mxu0 0.0
      %3938 = vmatprep.subr.mxu0 0.0
      %3939 = vmatpush1.msra.mxu0 0.0
      %3940 = vmatprep.subr.mxu0 0.0
      %3941 = vmatpush1.msra.mxu0 0.0
      %3942 = vmatprep.subr.mxu0 0.0
      %3943 = vmatpush1.msra.mxu0 0.0
      %3944 = vmatprep.subr.mxu0 0.0
      %3945 = vmatpush1.msra.mxu0 0.0
      %3946 = vmatprep.subr.mxu0 0.0
      %3947 = vmatpush1.msra.mxu0 0.0
      %3948 = vmatprep.subr.mxu0 0.0
      %3949 = vmatpush1.msra.mxu0 0.0
      %3950 = vmatprep.subr.mxu0 0.0
      %3951 = vmatpush1.msra.mxu0 0.0
      %3952 = vmatprep.subr.mxu0 0.0
      %3953 = vmatpush1.msra.mxu0 0.0
      %3954 = vmatprep.subr.mxu0 0.0
      %3955 = vmatpush1.msra.mxu0 0.0
      %3956 = vmatprep.subr.mxu0 0.0
      %3957 = vmatpush1.msra.mxu0 0.0
      %3958 = vmatprep.subr.mxu0 0.0
      %3959 = vmatpush1.msra.mxu0 0.0
      %3960 = vmatprep.subr.mxu0 0.0
      %3961 = vmatpush1.msra.mxu0 0.0
      %3962 = vmatprep.subr.mxu0 0.0
      %3963 = vmatpush1.msra.mxu0 0.0
      %3964 = vmatprep.subr.mxu0 0.0
      %3965 = vmatpush1.msra.mxu0 0.0
      %3966 = vmatprep.subr.mxu0 0.0
      %3967 = vmatpush1.msra.mxu0 0.0
      %3968 = vmatprep.subr.mxu0 0.0
      %3969 = vmatpush1.msra.mxu0 0.0
      %3970 = vmatprep.subr.mxu0 0.0
      %3971 = vmatpush1.msra.mxu0 0.0
      %3972 = vmatprep.subr.mxu0 0.0
      %3973 = vmatpush1.msra.mxu0 0.0
      %3974 = vmatprep.subr.mxu0 0.0
      %3975 = vmatpush1.msra.mxu0 0.0
      %3976 = vmatprep.subr.mxu0 0.0
      %3977 = vmatpush1.msra.mxu0 0.0
      %3978 = vmatprep.subr.mxu0 0.0
      %3979 = vmatpush1.msra.mxu0 0.0
      %3980 = vmatprep.subr.mxu0 0.0
      %3981 = vmatpush1.msra.mxu0 0.0
      %3982 = vmatprep.subr.mxu0 0.0
      %3983 = vmatpush1.msra.mxu0 0.0
      %3984 = vmatprep.subr.mxu0 0.0
      %3985 = vmatpush1.msra.mxu0 0.0
      %3986 = vmatprep.mubr.f32.mxu0 0.0
      %3987 = vmatmul.mubr.f32.gmra.mrb[0].mxu0 %v3920
      %v3988 = vpop.f32.mrb[0].mxu0
      %v3989 = vadd.f32 0.0, %v3988
      %v3990 = vpop.f32.mrb[0].mxu0
      %v3991 = vadd.f32 0.0, %v3990
      %3992 = vdwg.mxu0
      %v3993 = vmul.f32 %v3989, %v587
      %v3994 = vmul.f32 %v3991, %v588
      %v3995 = vrot.slane %v3993, 4
      %v3996 = vadd.f32 %v3993, %v3995
      %v3997 = vrot.slane %v3996, 2
      %v3998 = vadd.f32 %v3996, %v3997
      %v3999 = vrot.slane %v3998, 1
      %v4000 = vadd.f32 %v3998, %v3999
      %v4001 = vsel %vm607, %v3994, 0.0
      %v4002 = vrot.slane %v4001, 4
      %v4003 = vadd.f32 %v4001, %v4002
      %v4004 = vrot.slane %v4003, 2
      %v4005 = vadd.f32 %v4003, %v4004
      %v4006 = vrot.slane %v4005, 1
      %v4007 = vadd.f32 %v4005, %v4006
      %v4008 = vadd.f32 %v4000, %v626
      %v4009 = vadd.f32 %v4007, %v633
      %4010 = vrot.lane.b32.xlu0 %v585, 74
      %v4011 = vpop.permute.xlu0 %4010
      %v4012 = vsel %vm639, %v4011, 0
      %4014 = vmatprep.subr.mxu0 %v590
      %4015 = vmatpush1.msra.mxu0 %v589
      %4016 = vmatprep.subr.mxu0 %v592
      %4017 = vmatpush1.msra.mxu0 %v591
      %4018 = vmatprep.subr.mxu0 %v648
      %4019 = vmatpush1.msra.mxu0 %v645
      %4020 = vmatprep.subr.mxu0 0.0
      %4021 = vmatpush1.msra.mxu0 0.0
      %4022 = vmatprep.subr.mxu0 0.0
      %4023 = vmatpush1.msra.mxu0 0.0
      %4024 = vmatprep.subr.mxu0 0.0
      %4025 = vmatpush1.msra.mxu0 0.0
      %4026 = vmatprep.subr.mxu0 0.0
      %4027 = vmatpush1.msra.mxu0 0.0
      %4028 = vmatprep.subr.mxu0 0.0
      %4029 = vmatpush1.msra.mxu0 0.0
      %4030 = vmatprep.subr.mxu0 0.0
      %4031 = vmatpush1.msra.mxu0 0.0
      %4032 = vmatprep.subr.mxu0 0.0
      %4033 = vmatpush1.msra.mxu0 0.0
      %4034 = vmatprep.subr.mxu0 0.0
      %4035 = vmatpush1.msra.mxu0 0.0
      %4036 = vmatprep.subr.mxu0 0.0
      %4037 = vmatpush1.msra.mxu0 0.0
      %4038 = vmatprep.subr.mxu0 0.0
      %4039 = vmatpush1.msra.mxu0 0.0
      %4040 = vmatprep.subr.mxu0 0.0
      %4041 = vmatpush1.msra.mxu0 0.0
      %4042 = vmatprep.subr.mxu0 0.0
      %4043 = vmatpush1.msra.mxu0 0.0
      %4044 = vmatprep.subr.mxu0 0.0
      %4045 = vmatpush1.msra.mxu0 0.0
      %4046 = vmatprep.subr.mxu0 0.0
      %4047 = vmatpush1.msra.mxu0 0.0
      %4048 = vmatprep.subr.mxu0 0.0
      %4049 = vmatpush1.msra.mxu0 0.0
      %4050 = vmatprep.subr.mxu0 0.0
      %4051 = vmatpush1.msra.mxu0 0.0
      %4052 = vmatprep.subr.mxu0 0.0
      %4053 = vmatpush1.msra.mxu0 0.0
      %4054 = vmatprep.subr.mxu0 0.0
      %4055 = vmatpush1.msra.mxu0 0.0
      %4056 = vmatprep.subr.mxu0 0.0
      %4057 = vmatpush1.msra.mxu0 0.0
      %4058 = vmatprep.subr.mxu0 0.0
      %4059 = vmatpush1.msra.mxu0 0.0
      %4060 = vmatprep.subr.mxu0 0.0
      %4061 = vmatpush1.msra.mxu0 0.0
      %4062 = vmatprep.subr.mxu0 0.0
      %4063 = vmatpush1.msra.mxu0 0.0
      %4064 = vmatprep.subr.mxu0 0.0
      %4065 = vmatpush1.msra.mxu0 0.0
      %4066 = vmatprep.subr.mxu0 0.0
      %4067 = vmatpush1.msra.mxu0 0.0
      %4068 = vmatprep.subr.mxu0 0.0
      %4069 = vmatpush1.msra.mxu0 0.0
      %4070 = vmatprep.subr.mxu0 0.0
      %4071 = vmatpush1.msra.mxu0 0.0
      %4072 = vmatprep.subr.mxu0 0.0
      %4073 = vmatpush1.msra.mxu0 0.0
      %4074 = vmatprep.subr.mxu0 0.0
      %4075 = vmatpush1.msra.mxu0 0.0
      %4076 = vmatprep.subr.mxu0 0.0
      %4077 = vmatpush1.msra.mxu0 0.0
      %4078 = vmatprep.mubr.f32.mxu0 0.0
      %4079 = vmatmul.mubr.f32.gmra.mrb[0].mxu0 %v4012
      %v4080 = vpop.f32.mrb[0].mxu0
      %v4081 = vadd.f32 0.0, %v4080
      %v4082 = vpop.f32.mrb[0].mxu0
      %v4083 = vadd.f32 0.0, %v4082
      %4084 = vdwg.mxu0
      %v4085 = vmul.f32 %v4081, %v587
      %v4086 = vmul.f32 %v4083, %v588
      %v4087 = vrot.slane %v4085, 4
      %v4088 = vadd.f32 %v4085, %v4087
      %v4089 = vrot.slane %v4088, 2
      %v4090 = vadd.f32 %v4088, %v4089
      %v4091 = vrot.slane %v4090, 1
      %v4092 = vadd.f32 %v4090, %v4091
      %v4093 = vsel %vm607, %v4086, 0.0
      %v4094 = vrot.slane %v4093, 4
      %v4095 = vadd.f32 %v4093, %v4094
      %v4096 = vrot.slane %v4095, 2
      %v4097 = vadd.f32 %v4095, %v4096
      %v4098 = vrot.slane %v4097, 1
      %v4099 = vadd.f32 %v4097, %v4098
      %4100 = vrot.lane.b32.xlu0 %v586, 74
      %v4101 = vpop.permute.xlu0 %4100
      %v4102 = vsel %vm639, %v4101, 0
      %4104 = vmatprep.subr.mxu0 %v590
      %4105 = vmatpush1.msra.mxu0 %v589
      %4106 = vmatprep.subr.mxu0 %v592
      %4107 = vmatpush1.msra.mxu0 %v591
      %4108 = vmatprep.subr.mxu0 %v648
      %4109 = vmatpush1.msra.mxu0 %v645
      %4110 = vmatprep.subr.mxu0 0.0
      %4111 = vmatpush1.msra.mxu0 0.0
      %4112 = vmatprep.subr.mxu0 0.0
      %4113 = vmatpush1.msra.mxu0 0.0
      %4114 = vmatprep.subr.mxu0 0.0
      %4115 = vmatpush1.msra.mxu0 0.0
      %4116 = vmatprep.subr.mxu0 0.0
      %4117 = vmatpush1.msra.mxu0 0.0
      %4118 = vmatprep.subr.mxu0 0.0
      %4119 = vmatpush1.msra.mxu0 0.0
      %4120 = vmatprep.subr.mxu0 0.0
      %4121 = vmatpush1.msra.mxu0 0.0
      %4122 = vmatprep.subr.mxu0 0.0
      %4123 = vmatpush1.msra.mxu0 0.0
      %4124 = vmatprep.subr.mxu0 0.0
      %4125 = vmatpush1.msra.mxu0 0.0
      %4126 = vmatprep.subr.mxu0 0.0
      %4127 = vmatpush1.msra.mxu0 0.0
      %4128 = vmatprep.subr.mxu0 0.0
      %4129 = vmatpush1.msra.mxu0 0.0
      %4130 = vmatprep.subr.mxu0 0.0
      %4131 = vmatpush1.msra.mxu0 0.0
      %4132 = vmatprep.subr.mxu0 0.0
      %4133 = vmatpush1.msra.mxu0 0.0
      %4134 = vmatprep.subr.mxu0 0.0
      %4135 = vmatpush1.msra.mxu0 0.0
      %4136 = vmatprep.subr.mxu0 0.0
      %4137 = vmatpush1.msra.mxu0 0.0
      %4138 = vmatprep.subr.mxu0 0.0
      %4139 = vmatpush1.msra.mxu0 0.0
      %4140 = vmatprep.subr.mxu0 0.0
      %4141 = vmatpush1.msra.mxu0 0.0
      %4142 = vmatprep.subr.mxu0 0.0
      %4143 = vmatpush1.msra.mxu0 0.0
      %4144 = vmatprep.subr.mxu0 0.0
      %4145 = vmatpush1.msra.mxu0 0.0
      %4146 = vmatprep.subr.mxu0 0.0
      %4147 = vmatpush1.msra.mxu0 0.0
      %4148 = vmatprep.subr.mxu0 0.0
      %4149 = vmatpush1.msra.mxu0 0.0
      %4150 = vmatprep.subr.mxu0 0.0
      %4151 = vmatpush1.msra.mxu0 0.0
      %4152 = vmatprep.subr.mxu0 0.0
      %4153 = vmatpush1.msra.mxu0 0.0
      %4154 = vmatprep.subr.mxu0 0.0
      %4155 = vmatpush1.msra.mxu0 0.0
      %4156 = vmatprep.subr.mxu0 0.0
      %4157 = vmatpush1.msra.mxu0 0.0
      %4158 = vmatprep.subr.mxu0 0.0
      %4159 = vmatpush1.msra.mxu0 0.0
      %4160 = vmatprep.subr.mxu0 0.0
      %4161 = vmatpush1.msra.mxu0 0.0
      %4162 = vmatprep.subr.mxu0 0.0
      %4163 = vmatpush1.msra.mxu0 0.0
      %4164 = vmatprep.subr.mxu0 0.0
      %4165 = vmatpush1.msra.mxu0 0.0
      %4166 = vmatprep.subr.mxu0 0.0
      %4167 = vmatpush1.msra.mxu0 0.0
      %4168 = vmatprep.mubr.f32.mxu0 0.0
      %4169 = vmatmul.mubr.f32.gmra.mrb[0].mxu0 %v4102
      %v4170 = vpop.f32.mrb[0].mxu0
      %v4171 = vadd.f32 0.0, %v4170
      %v4172 = vpop.f32.mrb[0].mxu0
      %v4173 = vadd.f32 0.0, %v4172
      %4174 = vdwg.mxu0
      %v4175 = vmul.f32 %v4171, %v587
      %v4176 = vmul.f32 %v4173, %v588
      %v4177 = vrot.slane %v4175, 4
      %v4178 = vadd.f32 %v4175, %v4177
      %v4179 = vrot.slane %v4178, 2
      %v4180 = vadd.f32 %v4178, %v4179
      %v4181 = vrot.slane %v4180, 1
      %v4182 = vadd.f32 %v4180, %v4181
      %v4183 = vsel %vm607, %v4176, 0.0
      %v4184 = vrot.slane %v4183, 4
      %v4185 = vadd.f32 %v4183, %v4184
      %v4186 = vrot.slane %v4185, 2
      %v4187 = vadd.f32 %v4185, %v4186
      %v4188 = vrot.slane %v4187, 1
      %v4189 = vadd.f32 %v4187, %v4188
      %v4190 = vmul.f32 %v3916, 0.125
      %v4191 = vmul.f32 %v3917, 0.125
      %v4192 = vsub.f32 %v4190, 0.5
      %v4193 = vsub.f32 %v4191, 0.5
      %v4194 = vmul.f32 %v4008, 0.125
      %v4195 = vmul.f32 %v4009, 0.125
      %v4196 = vsub.f32 %v4194, 0.5
      %v4197 = vsub.f32 %v4195, 0.5
      %v4198 = vsub.f32 %v637, %v4192
      %v4199 = vsub.f32 %v637, %v4193
      %v4200 = vsub.f32 %v638, %v4192
      %v4201 = vsub.f32 %v638, %v4193
      %v4202 = vand.u32 2147483647, %v4198
      %v4203 = vand.u32 2147483647, %v4199
      %v4204 = vand.u32 2147483647, %v4200
      %v4205 = vand.u32 2147483647, %v4201
      %v4206 = vsub.f32 1.0, %v4202
      %v4207 = vsub.f32 1.0, %v4203
      %v4208 = vsub.f32 1.0, %v4204
      %v4209 = vsub.f32 1.0, %v4205
      %v4210 = vmax.f32 %v4206, 0.0
      %v4211 = vmax.f32 %v4207, 0.0
      %v4212 = vmax.f32 %v4208, 0.0
      %v4213 = vmax.f32 %v4209, 0.0
      %v4214 = vsub.f32 %v637, %v4196
      %v4215 = vsub.f32 %v637, %v4197
      %v4216 = vsub.f32 %v638, %v4196
      %v4217 = vsub.f32 %v638, %v4197
      %v4218 = vand.u32 2147483647, %v4214
      %v4219 = vand.u32 2147483647, %v4215
      %v4220 = vand.u32 2147483647, %v4216
      %v4221 = vand.u32 2147483647, %v4217
      %v4222 = vsub.f32 1.0, %v4218
      %v4223 = vsub.f32 1.0, %v4219
      %v4224 = vsub.f32 1.0, %v4220
      %v4225 = vsub.f32 1.0, %v4221
      %v4226 = vmax.f32 %v4222, 0.0
      %v4227 = vmax.f32 %v4223, 0.0
      %v4228 = vmax.f32 %v4224, 0.0
      %v4229 = vmax.f32 %v4225, 0.0
      %v4230 = vmul.f32 %v4226, %v4092
      %v4231 = vmul.f32 %v4227, %v4099
      %v4232 = vmul.f32 %v4228, %v4092
      %v4233 = vmul.f32 %v4229, %v4099
      %v4238 = vcombine.low %v4230, %v4231
      %v4239 = vcombine.high %v4230, %v4231
      %v4241 = vunpack.c.l.s4 1966171168
      %v4242 = vunpack.c.0.s8 %v4241
      %v4243 = vlaneseq
      %v4244 = vshrl.u32 %v4243, 7
      %v4245 = vsub.s32 %v4242, %v4244
      %v4246 = vrot.slane %v4238, %v4245
      %v4248 = vunpack.c.l.s4 1966171168
      %v4249 = vunpack.c.0.s8 %v4248
      %v4250 = vlaneseq
      %v4251 = vshrl.u32 %v4250, 7
      %v4252 = vsub.s32 %v4249, %v4251
      %v4253 = vrot.slane %v4239, %v4252
      %v4254 = vcombine.high %v4246, %v4246
      %v4255 = vcombine.high %v4253, %v4253
      %v4257 = vunpack.c.l.s4 1966171168
      %v4258 = vunpack.c.0.s8 %v4257
      %v4259 = vlaneseq
      %v4260 = vshrl.u32 %v4259, 7
      %v4261 = vsub.s32 %v4258, %v4260
      %v4262 = vrot.slane %v4246, %v4261
      %v4264 = vunpack.c.l.s4 1966171168
      %v4265 = vunpack.c.0.s8 %v4264
      %v4266 = vlaneseq
      %v4267 = vshrl.u32 %v4266, 7
      %v4268 = vsub.s32 %v4265, %v4267
      %v4269 = vrot.slane %v4253, %v4268
      %v4271 = vunpack.c.l.s4 1966171168
      %v4272 = vunpack.c.0.s8 %v4271
      %v4273 = vlaneseq
      %v4274 = vshrl.u32 %v4273, 7
      %v4275 = vsub.s32 %v4272, %v4274
      %v4276 = vrot.slane %v4254, %v4275
      %v4278 = vunpack.c.l.s4 1966171168
      %v4279 = vunpack.c.0.s8 %v4278
      %v4280 = vlaneseq
      %v4281 = vshrl.u32 %v4280, 7
      %v4282 = vsub.s32 %v4279, %v4281
      %v4283 = vrot.slane %v4255, %v4282
      %v4284 = vcombine.high %v4262, %v4262
      %v4285 = vcombine.high %v4269, %v4269
      %v4286 = vcombine.high %v4276, %v4276
      %v4287 = vcombine.high %v4283, %v4283
      %v4288 = vcombine.low %v4232, %v4233
      %v4289 = vcombine.high %v4232, %v4233
      %v4291 = vunpack.c.l.s4 1966171168
      %v4292 = vunpack.c.0.s8 %v4291
      %v4293 = vlaneseq
      %v4294 = vshrl.u32 %v4293, 7
      %v4295 = vsub.s32 %v4292, %v4294
      %v4296 = vrot.slane %v4288, %v4295
      %v4298 = vunpack.c.l.s4 1966171168
      %v4299 = vunpack.c.0.s8 %v4298
      %v4300 = vlaneseq
      %v4301 = vshrl.u32 %v4300, 7
      %v4302 = vsub.s32 %v4299, %v4301
      %v4303 = vrot.slane %v4289, %v4302
      %v4304 = vcombine.high %v4296, %v4296
      %v4305 = vcombine.high %v4303, %v4303
      %v4307 = vunpack.c.l.s4 1966171168
      %v4308 = vunpack.c.0.s8 %v4307
      %v4309 = vlaneseq
      %v4310 = vshrl.u32 %v4309, 7
      %v4311 = vsub.s32 %v4308, %v4310
      %v4312 = vrot.slane %v4296, %v4311
      %v4314 = vunpack.c.l.s4 1966171168
      %v4315 = vunpack.c.0.s8 %v4314
      %v4316 = vlaneseq
      %v4317 = vshrl.u32 %v4316, 7
      %v4318 = vsub.s32 %v4315, %v4317
      %v4319 = vrot.slane %v4303, %v4318
      %v4321 = vunpack.c.l.s4 1966171168
      %v4322 = vunpack.c.0.s8 %v4321
      %v4323 = vlaneseq
      %v4324 = vshrl.u32 %v4323, 7
      %v4325 = vsub.s32 %v4322, %v4324
      %v4326 = vrot.slane %v4304, %v4325
      %v4328 = vunpack.c.l.s4 1966171168
      %v4329 = vunpack.c.0.s8 %v4328
      %v4330 = vlaneseq
      %v4331 = vshrl.u32 %v4330, 7
      %v4332 = vsub.s32 %v4329, %v4331
      %v4333 = vrot.slane %v4305, %v4332
      %v4334 = vcombine.high %v4312, %v4312
      %v4335 = vcombine.high %v4319, %v4319
      %v4336 = vcombine.high %v4326, %v4326
      %v4337 = vcombine.high %v4333, %v4333
      %v4338 = vlaneseq
      %v4339 = vshrl.u32 %v4338, 7
      %v4340 = vsub.s32 0, %v4339
      %v4341 = vrot.slane %v4262, %v4340
      %v4342 = vlaneseq
      %v4343 = vshrl.u32 %v4342, 7
      %v4344 = vsub.s32 1, %v4343
      %v4345 = vrot.slane %v4262, %v4344
      %v4346 = vlaneseq
      %v4347 = vshrl.u32 %v4346, 7
      %v4348 = vsub.s32 0, %v4347
      %v4349 = vrot.slane %v4276, %v4348
      %v4350 = vlaneseq
      %v4351 = vshrl.u32 %v4350, 7
      %v4352 = vsub.s32 1, %v4351
      %v4353 = vrot.slane %v4276, %v4352
      %v4354 = vlaneseq
      %v4355 = vshrl.u32 %v4354, 7
      %v4356 = vsub.s32 0, %v4355
      %v4357 = vrot.slane %v4284, %v4356
      %v4358 = vlaneseq
      %v4359 = vshrl.u32 %v4358, 7
      %v4360 = vsub.s32 1, %v4359
      %v4361 = vrot.slane %v4284, %v4360
      %v4362 = vlaneseq
      %v4363 = vshrl.u32 %v4362, 7
      %v4364 = vsub.s32 0, %v4363
      %v4365 = vrot.slane %v4286, %v4364
      %v4366 = vlaneseq
      %v4367 = vshrl.u32 %v4366, 7
      %v4368 = vsub.s32 1, %v4367
      %v4369 = vrot.slane %v4286, %v4368
      %v4370 = vlaneseq
      %v4371 = vshrl.u32 %v4370, 7
      %v4372 = vsub.s32 0, %v4371
      %v4373 = vrot.slane %v4269, %v4372
      %v4374 = vlaneseq
      %v4375 = vshrl.u32 %v4374, 7
      %v4376 = vsub.s32 1, %v4375
      %v4377 = vrot.slane %v4269, %v4376
      %v4378 = vlaneseq
      %v4379 = vshrl.u32 %v4378, 7
      %v4380 = vsub.s32 0, %v4379
      %v4381 = vrot.slane %v4283, %v4380
      %v4382 = vlaneseq
      %v4383 = vshrl.u32 %v4382, 7
      %v4384 = vsub.s32 1, %v4383
      %v4385 = vrot.slane %v4283, %v4384
      %v4386 = vlaneseq
      %v4387 = vshrl.u32 %v4386, 7
      %v4388 = vsub.s32 0, %v4387
      %v4389 = vrot.slane %v4285, %v4388
      %v4390 = vlaneseq
      %v4391 = vshrl.u32 %v4390, 7
      %v4392 = vsub.s32 1, %v4391
      %v4393 = vrot.slane %v4285, %v4392
      %v4394 = vlaneseq
      %v4395 = vshrl.u32 %v4394, 7
      %v4396 = vsub.s32 0, %v4395
      %v4397 = vrot.slane %v4287, %v4396
      %v4398 = vlaneseq
      %v4399 = vshrl.u32 %v4398, 7
      %v4400 = vsub.s32 1, %v4399
      %v4401 = vrot.slane %v4287, %v4400
      %v4402 = vlaneseq
      %v4403 = vshrl.u32 %v4402, 7
      %v4404 = vsub.s32 0, %v4403
      %v4405 = vrot.slane %v4312, %v4404
      %v4406 = vlaneseq
      %v4407 = vshrl.u32 %v4406, 7
      %v4408 = vsub.s32 1, %v4407
      %v4409 = vrot.slane %v4312, %v4408
      %v4410 = vlaneseq
      %v4411 = vshrl.u32 %v4410, 7
      %v4412 = vsub.s32 0, %v4411
      %v4413 = vrot.slane %v4326, %v4412
      %v4414 = vlaneseq
      %v4415 = vshrl.u32 %v4414, 7
      %v4416 = vsub.s32 1, %v4415
      %v4417 = vrot.slane %v4326, %v4416
      %v4418 = vlaneseq
      %v4419 = vshrl.u32 %v4418, 7
      %v4420 = vsub.s32 0, %v4419
      %v4421 = vrot.slane %v4334, %v4420
      %v4422 = vlaneseq
      %v4423 = vshrl.u32 %v4422, 7
      %v4424 = vsub.s32 1, %v4423
      %v4425 = vrot.slane %v4334, %v4424
      %v4426 = vlaneseq
      %v4427 = vshrl.u32 %v4426, 7
      %v4428 = vsub.s32 0, %v4427
      %v4429 = vrot.slane %v4336, %v4428
      %v4430 = vlaneseq
      %v4431 = vshrl.u32 %v4430, 7
      %v4432 = vsub.s32 1, %v4431
      %v4433 = vrot.slane %v4336, %v4432
      %v4434 = vlaneseq
      %v4435 = vshrl.u32 %v4434, 7
      %v4436 = vsub.s32 0, %v4435
      %v4437 = vrot.slane %v4319, %v4436
      %v4438 = vlaneseq
      %v4439 = vshrl.u32 %v4438, 7
      %v4440 = vsub.s32 1, %v4439
      %v4441 = vrot.slane %v4319, %v4440
      %v4442 = vlaneseq
      %v4443 = vshrl.u32 %v4442, 7
      %v4444 = vsub.s32 0, %v4443
      %v4445 = vrot.slane %v4333, %v4444
      %v4446 = vlaneseq
      %v4447 = vshrl.u32 %v4446, 7
      %v4448 = vsub.s32 1, %v4447
      %v4449 = vrot.slane %v4333, %v4448
      %v4450 = vlaneseq
      %v4451 = vshrl.u32 %v4450, 7
      %v4452 = vsub.s32 0, %v4451
      %v4453 = vrot.slane %v4335, %v4452
      %v4454 = vlaneseq
      %v4455 = vshrl.u32 %v4454, 7
      %v4456 = vsub.s32 1, %v4455
      %v4457 = vrot.slane %v4335, %v4456
      %v4458 = vlaneseq
      %v4459 = vshrl.u32 %v4458, 7
      %v4460 = vsub.s32 0, %v4459
      %v4461 = vrot.slane %v4337, %v4460
      %v4462 = vlaneseq
      %v4463 = vshrl.u32 %v4462, 7
      %v4464 = vsub.s32 1, %v4463
      %v4465 = vrot.slane %v4337, %v4464
      %v4498 = vmul.f32 %v4341, %v4210
      %v4499 = vmul.f32 %v4345, %v4211
      %v4500 = vmul.f32 %v4341, %v4212
      %v4501 = vmul.f32 %v4345, %v4213
      %v4502 = vmul.f32 %v4349, %v4210
      %v4503 = vmul.f32 %v4353, %v4211
      %v4504 = vmul.f32 %v4349, %v4212
      %v4505 = vmul.f32 %v4353, %v4213
      %v4506 = vmul.f32 %v4357, %v4210
      %v4507 = vmul.f32 %v4361, %v4211
      %v4508 = vmul.f32 %v4357, %v4212
      %v4509 = vmul.f32 %v4361, %v4213
      %v4510 = vmul.f32 %v4365, %v4210
      %v4511 = vmul.f32 %v4369, %v4211
      %v4512 = vmul.f32 %v4365, %v4212
      %v4513 = vmul.f32 %v4369, %v4213
      %v4514 = vmul.f32 %v4373, %v4210
      %v4515 = vmul.f32 %v4377, %v4211
      %v4516 = vmul.f32 %v4373, %v4212
      %v4517 = vmul.f32 %v4377, %v4213
      %v4518 = vmul.f32 %v4381, %v4210
      %v4519 = vmul.f32 %v4385, %v4211
      %v4520 = vmul.f32 %v4381, %v4212
      %v4521 = vmul.f32 %v4385, %v4213
      %v4522 = vmul.f32 %v4389, %v4210
      %v4523 = vmul.f32 %v4393, %v4211
      %v4524 = vmul.f32 %v4389, %v4212
      %v4525 = vmul.f32 %v4393, %v4213
      %v4526 = vmul.f32 %v4397, %v4210
      %v4527 = vmul.f32 %v4401, %v4211
      %v4528 = vmul.f32 %v4397, %v4212
      %v4529 = vmul.f32 %v4401, %v4213
      %v4530 = vmul.f32 %v4405, %v4210
      %v4531 = vmul.f32 %v4409, %v4211
      %v4532 = vmul.f32 %v4405, %v4212
      %v4533 = vmul.f32 %v4409, %v4213
      %v4534 = vmul.f32 %v4413, %v4210
      %v4535 = vmul.f32 %v4417, %v4211
      %v4536 = vmul.f32 %v4413, %v4212
      %v4537 = vmul.f32 %v4417, %v4213
      %v4538 = vmul.f32 %v4421, %v4210
      %v4539 = vmul.f32 %v4425, %v4211
      %v4540 = vmul.f32 %v4421, %v4212
      %v4541 = vmul.f32 %v4425, %v4213
      %v4542 = vmul.f32 %v4429, %v4210
      %v4543 = vmul.f32 %v4433, %v4211
      %v4544 = vmul.f32 %v4429, %v4212
      %v4545 = vmul.f32 %v4433, %v4213
      %v4546 = vmul.f32 %v4437, %v4210
      %v4547 = vmul.f32 %v4441, %v4211
      %v4548 = vmul.f32 %v4437, %v4212
      %v4549 = vmul.f32 %v4441, %v4213
      %v4550 = vmul.f32 %v4445, %v4210
      %v4551 = vmul.f32 %v4449, %v4211
      %v4552 = vmul.f32 %v4445, %v4212
      %v4553 = vmul.f32 %v4449, %v4213
      %v4554 = vmul.f32 %v4453, %v4210
      %v4555 = vmul.f32 %v4457, %v4211
      %v4556 = vmul.f32 %v4453, %v4212
      %v4557 = vmul.f32 %v4457, %v4213
      %v4558 = vmul.f32 %v4461, %v4210
      %v4559 = vmul.f32 %v4465, %v4211
      %v4560 = vmul.f32 %v4461, %v4212
      %v4561 = vmul.f32 %v4465, %v4213
      %v4562 = vld [vmem:[%s251 + $0x30] sm:$0xff]
      %v4563 = vld [vmem:[%s251 + $0x38] sm:$0xff]
      %v4564 = vmul.f32 %v3916, 0.0625
      %v4565 = vmul.f32 %v3917, 0.0625
      %v4566 = vsub.f32 %v4564, 0.5
      %v4567 = vsub.f32 %v4565, 0.5
      %v4568 = vmul.f32 %v4008, 0.0625
      %v4569 = vmul.f32 %v4009, 0.0625
      %v4570 = vsub.f32 %v4568, 0.5
      %v4571 = vsub.f32 %v4569, 0.5
      %v4572 = vsub.f32 %v637, %v4566
      %v4573 = vsub.f32 %v637, %v4567
      %v4574 = vand.u32 2147483647, %v4572
      %v4575 = vand.u32 2147483647, %v4573
      %v4576 = vsub.f32 1.0, %v4574
      %v4577 = vsub.f32 1.0, %v4575
      %v4578 = vmax.f32 %v4576, 0.0
      %v4579 = vmax.f32 %v4577, 0.0
      %v4580 = vsub.f32 %v637, %v4570
      %v4581 = vsub.f32 %v637, %v4571
      %v4582 = vand.u32 2147483647, %v4580
      %v4583 = vand.u32 2147483647, %v4581
      %v4584 = vsub.f32 1.0, %v4582
      %v4585 = vsub.f32 1.0, %v4583
      %v4586 = vmax.f32 %v4584, 0.0
      %v4587 = vmax.f32 %v4585, 0.0
      %v4588 = vmul.f32 %v4586, %v4182
      %v4589 = vmul.f32 %v4587, %v4189
      %v4592 = vcombine.low %v4588, %v4589
      %v4593 = vcombine.high %v4588, %v4589
      %v4595 = vunpack.c.l.s4 1966171168
      %v4596 = vunpack.c.0.s8 %v4595
      %v4597 = vlaneseq
      %v4598 = vshrl.u32 %v4597, 7
      %v4599 = vsub.s32 %v4596, %v4598
      %v4600 = vrot.slane %v4592, %v4599
      %v4602 = vunpack.c.l.s4 1966171168
      %v4603 = vunpack.c.0.s8 %v4602
      %v4604 = vlaneseq
      %v4605 = vshrl.u32 %v4604, 7
      %v4606 = vsub.s32 %v4603, %v4605
      %v4607 = vrot.slane %v4593, %v4606
      %v4608 = vcombine.high %v4600, %v4600
      %v4609 = vcombine.high %v4607, %v4607
      %v4611 = vunpack.c.l.s4 1966171168
      %v4612 = vunpack.c.0.s8 %v4611
      %v4613 = vlaneseq
      %v4614 = vshrl.u32 %v4613, 7
      %v4615 = vsub.s32 %v4612, %v4614
      %v4616 = vrot.slane %v4600, %v4615
      %v4618 = vunpack.c.l.s4 1966171168
      %v4619 = vunpack.c.0.s8 %v4618
      %v4620 = vlaneseq
      %v4621 = vshrl.u32 %v4620, 7
      %v4622 = vsub.s32 %v4619, %v4621
      %v4623 = vrot.slane %v4607, %v4622
      %v4625 = vunpack.c.l.s4 1966171168
      %v4626 = vunpack.c.0.s8 %v4625
      %v4627 = vlaneseq
      %v4628 = vshrl.u32 %v4627, 7
      %v4629 = vsub.s32 %v4626, %v4628
      %v4630 = vrot.slane %v4608, %v4629
      %v4632 = vunpack.c.l.s4 1966171168
      %v4633 = vunpack.c.0.s8 %v4632
      %v4634 = vlaneseq
      %v4635 = vshrl.u32 %v4634, 7
      %v4636 = vsub.s32 %v4633, %v4635
      %v4637 = vrot.slane %v4609, %v4636
      %v4638 = vcombine.high %v4616, %v4616
      %v4639 = vcombine.high %v4623, %v4623
      %v4640 = vcombine.high %v4630, %v4630
      %v4641 = vcombine.high %v4637, %v4637
      %v4642 = vlaneseq
      %v4643 = vshrl.u32 %v4642, 7
      %v4644 = vsub.s32 0, %v4643
      %v4645 = vrot.slane %v4616, %v4644
      %v4646 = vlaneseq
      %v4647 = vshrl.u32 %v4646, 7
      %v4648 = vsub.s32 1, %v4647
      %v4649 = vrot.slane %v4616, %v4648
      %v4650 = vlaneseq
      %v4651 = vshrl.u32 %v4650, 7
      %v4652 = vsub.s32 0, %v4651
      %v4653 = vrot.slane %v4630, %v4652
      %v4654 = vlaneseq
      %v4655 = vshrl.u32 %v4654, 7
      %v4656 = vsub.s32 1, %v4655
      %v4657 = vrot.slane %v4630, %v4656
      %v4658 = vlaneseq
      %v4659 = vshrl.u32 %v4658, 7
      %v4660 = vsub.s32 0, %v4659
      %v4661 = vrot.slane %v4638, %v4660
      %v4662 = vlaneseq
      %v4663 = vshrl.u32 %v4662, 7
      %v4664 = vsub.s32 1, %v4663
      %v4665 = vrot.slane %v4638, %v4664
      %v4666 = vlaneseq
      %v4667 = vshrl.u32 %v4666, 7
      %v4668 = vsub.s32 0, %v4667
      %v4669 = vrot.slane %v4640, %v4668
      %v4670 = vlaneseq
      %v4671 = vshrl.u32 %v4670, 7
      %v4672 = vsub.s32 1, %v4671
      %v4673 = vrot.slane %v4640, %v4672
      %v4674 = vlaneseq
      %v4675 = vshrl.u32 %v4674, 7
      %v4676 = vsub.s32 0, %v4675
      %v4677 = vrot.slane %v4623, %v4676
      %v4678 = vlaneseq
      %v4679 = vshrl.u32 %v4678, 7
      %v4680 = vsub.s32 1, %v4679
      %v4681 = vrot.slane %v4623, %v4680
      %v4682 = vlaneseq
      %v4683 = vshrl.u32 %v4682, 7
      %v4684 = vsub.s32 0, %v4683
      %v4685 = vrot.slane %v4637, %v4684
      %v4686 = vlaneseq
      %v4687 = vshrl.u32 %v4686, 7
      %v4688 = vsub.s32 1, %v4687
      %v4689 = vrot.slane %v4637, %v4688
      %v4690 = vlaneseq
      %v4691 = vshrl.u32 %v4690, 7
      %v4692 = vsub.s32 0, %v4691
      %v4693 = vrot.slane %v4639, %v4692
      %v4694 = vlaneseq
      %v4695 = vshrl.u32 %v4694, 7
      %v4696 = vsub.s32 1, %v4695
      %v4697 = vrot.slane %v4639, %v4696
      %v4698 = vlaneseq
      %v4699 = vshrl.u32 %v4698, 7
      %v4700 = vsub.s32 0, %v4699
      %v4701 = vrot.slane %v4641, %v4700
      %v4702 = vlaneseq
      %v4703 = vshrl.u32 %v4702, 7
      %v4704 = vsub.s32 1, %v4703
      %v4705 = vrot.slane %v4641, %v4704
      %v4722 = vmul.f32 %v4645, %v4578
      %v4723 = vmul.f32 %v4649, %v4579
      %v4724 = vmul.f32 %v4653, %v4578
      %v4725 = vmul.f32 %v4657, %v4579
      %v4726 = vmul.f32 %v4661, %v4578
      %v4727 = vmul.f32 %v4665, %v4579
      %v4728 = vmul.f32 %v4669, %v4578
      %v4729 = vmul.f32 %v4673, %v4579
      %v4730 = vmul.f32 %v4677, %v4578
      %v4731 = vmul.f32 %v4681, %v4579
      %v4732 = vmul.f32 %v4685, %v4578
      %v4733 = vmul.f32 %v4689, %v4579
      %v4734 = vmul.f32 %v4693, %v4578
      %v4735 = vmul.f32 %v4697, %v4579
      %v4736 = vmul.f32 %v4701, %v4578
      %v4737 = vmul.f32 %v4705, %v4579
      %v4738 = vld [vmem:[%s256 + $0x18] sm:$0xff]
      %v4740 = vsel %vm1556, %v4738, 0
      %4742 = vmatprep.subr.mxu0 %v4723
      %4743 = vmatpush1.msra.mxu0 %v4722
      %4744 = vmatprep.subr.mxu0 %v4725
      %4745 = vmatpush1.msra.mxu0 %v4724
      %4746 = vmatprep.subr.mxu0 %v4727
      %4747 = vmatpush1.msra.mxu0 %v4726
      %4748 = vmatprep.subr.mxu0 %v4729
      %4749 = vmatpush1.msra.mxu0 %v4728
      %4750 = vmatprep.subr.mxu0 %v4731
      %4751 = vmatpush1.msra.mxu0 %v4730
      %4752 = vmatprep.subr.mxu0 %v4733
      %4753 = vmatpush1.msra.mxu0 %v4732
      %4754 = vmatprep.subr.mxu0 %v4735
      %4755 = vmatpush1.msra.mxu0 %v4734
      %4756 = vmatprep.subr.mxu0 %v4737
      %4757 = vmatpush1.msra.mxu0 %v4736
      %4758 = vmatprep.subr.mxu0 0.0
      %4759 = vmatpush1.msra.mxu0 0.0
      %4760 = vmatprep.subr.mxu0 0.0
      %4761 = vmatpush1.msra.mxu0 0.0
      %4762 = vmatprep.subr.mxu0 0.0
      %4763 = vmatpush1.msra.mxu0 0.0
      %4764 = vmatprep.subr.mxu0 0.0
      %4765 = vmatpush1.msra.mxu0 0.0
      %4766 = vmatprep.subr.mxu0 0.0
      %4767 = vmatpush1.msra.mxu0 0.0
      %4768 = vmatprep.subr.mxu0 0.0
      %4769 = vmatpush1.msra.mxu0 0.0
      %4770 = vmatprep.subr.mxu0 0.0
      %4771 = vmatpush1.msra.mxu0 0.0
      %4772 = vmatprep.subr.mxu0 0.0
      %4773 = vmatpush1.msra.mxu0 0.0
      %4774 = vmatprep.subr.mxu0 0.0
      %4775 = vmatpush1.msra.mxu0 0.0
      %4776 = vmatprep.subr.mxu0 0.0
      %4777 = vmatpush1.msra.mxu0 0.0
      %4778 = vmatprep.subr.mxu0 0.0
      %4779 = vmatpush1.msra.mxu0 0.0
      %4780 = vmatprep.subr.mxu0 0.0
      %4781 = vmatpush1.msra.mxu0 0.0
      %4782 = vmatprep.subr.mxu0 0.0
      %4783 = vmatpush1.msra.mxu0 0.0
      %4784 = vmatprep.subr.mxu0 0.0
      %4785 = vmatpush1.msra.mxu0 0.0
      %4786 = vmatprep.subr.mxu0 0.0
      %4787 = vmatpush1.msra.mxu0 0.0
      %4788 = vmatprep.subr.mxu0 0.0
      %4789 = vmatpush1.msra.mxu0 0.0
      %4790 = vmatprep.subr.mxu0 0.0
      %4791 = vmatpush1.msra.mxu0 0.0
      %4792 = vmatprep.subr.mxu0 0.0
      %4793 = vmatpush1.msra.mxu0 0.0
      %4794 = vmatprep.subr.mxu0 0.0
      %4795 = vmatpush1.msra.mxu0 0.0
      %4796 = vmatprep.subr.mxu0 0.0
      %4797 = vmatpush1.msra.mxu0 0.0
      %4798 = vmatprep.subr.mxu0 0.0
      %4799 = vmatpush1.msra.mxu0 0.0
      %4800 = vmatprep.subr.mxu0 0.0
      %4801 = vmatpush1.msra.mxu0 0.0
      %4802 = vmatprep.subr.mxu0 0.0
      %4803 = vmatpush1.msra.mxu0 0.0
      %4804 = vmatprep.subr.mxu0 0.0
      %4805 = vmatpush1.msra.mxu0 0.0
      %4806 = vmatprep.mubr.f32.mxu0 0.0
      %4807 = vmatmul.mubr.f32.gmra.mrb[0].mxu0 %v4740
      %v4808 = vpop.f32.mrb[0].mxu0
      %v4809 = vadd.f32 0.0, %v4808
      %v4810 = vpop.f32.mrb[0].mxu0
      %v4811 = vadd.f32 0.0, %v4810
      %4812 = vdwg.mxu0
      %4813 = vmatprep.subr.mxu0 %v4499
      %4814 = vmatpush1.msra.mxu0 %v4498
      %4815 = vmatprep.subr.mxu0 %v4501
      %4816 = vmatpush1.msra.mxu0 %v4500
      %4817 = vmatprep.subr.mxu0 %v4503
      %4818 = vmatpush1.msra.mxu0 %v4502
      %4819 = vmatprep.subr.mxu0 %v4505
      %4820 = vmatpush1.msra.mxu0 %v4504
      %4821 = vmatprep.subr.mxu0 %v4507
      %4822 = vmatpush1.msra.mxu0 %v4506
      %4823 = vmatprep.subr.mxu0 %v4509
      %4824 = vmatpush1.msra.mxu0 %v4508
      %4825 = vmatprep.subr.mxu0 %v4511
      %4826 = vmatpush1.msra.mxu0 %v4510
      %4827 = vmatprep.subr.mxu0 %v4513
      %4828 = vmatpush1.msra.mxu0 %v4512
      %4829 = vmatprep.subr.mxu0 %v4515
      %4830 = vmatpush1.msra.mxu0 %v4514
      %4831 = vmatprep.subr.mxu0 %v4517
      %4832 = vmatpush1.msra.mxu0 %v4516
      %4833 = vmatprep.subr.mxu0 %v4519
      %4834 = vmatpush1.msra.mxu0 %v4518
      %4835 = vmatprep.subr.mxu0 %v4521
      %4836 = vmatpush1.msra.mxu0 %v4520
      %4837 = vmatprep.subr.mxu0 %v4523
      %4838 = vmatpush1.msra.mxu0 %v4522
      %4839 = vmatprep.subr.mxu0 %v4525
      %4840 = vmatpush1.msra.mxu0 %v4524
      %4841 = vmatprep.subr.mxu0 %v4527
      %4842 = vmatpush1.msra.mxu0 %v4526
      %4843 = vmatprep.subr.mxu0 %v4529
      %4844 = vmatpush1.msra.mxu0 %v4528
      %4845 = vmatprep.subr.mxu0 %v4531
      %4846 = vmatpush1.msra.mxu0 %v4530
      %4847 = vmatprep.subr.mxu0 %v4533
      %4848 = vmatpush1.msra.mxu0 %v4532
      %4849 = vmatprep.subr.mxu0 %v4535
      %4850 = vmatpush1.msra.mxu0 %v4534
      %4851 = vmatprep.subr.mxu0 %v4537
      %4852 = vmatpush1.msra.mxu0 %v4536
      %4853 = vmatprep.subr.mxu0 %v4539
      %4854 = vmatpush1.msra.mxu0 %v4538
      %4855 = vmatprep.subr.mxu0 %v4541
      %4856 = vmatpush1.msra.mxu0 %v4540
      %4857 = vmatprep.subr.mxu0 %v4543
      %4858 = vmatpush1.msra.mxu0 %v4542
      %4859 = vmatprep.subr.mxu0 %v4545
      %4860 = vmatpush1.msra.mxu0 %v4544
      %4861 = vmatprep.subr.mxu0 %v4547
      %4862 = vmatpush1.msra.mxu0 %v4546
      %4863 = vmatprep.subr.mxu0 %v4549
      %4864 = vmatpush1.msra.mxu0 %v4548
      %4865 = vmatprep.subr.mxu0 %v4551
      %4866 = vmatpush1.msra.mxu0 %v4550
      %4867 = vmatprep.subr.mxu0 %v4553
      %4868 = vmatpush1.msra.mxu0 %v4552
      %4869 = vmatprep.subr.mxu0 %v4555
      %4870 = vmatpush1.msra.mxu0 %v4554
      %4871 = vmatprep.subr.mxu0 %v4557
      %4872 = vmatpush1.msra.mxu0 %v4556
      %4873 = vmatprep.subr.mxu0 %v4559
      %4874 = vmatpush1.msra.mxu0 %v4558
      %4875 = vmatprep.subr.mxu0 %v4561
      %4876 = vmatpush1.msra.mxu0 %v4560
      %4877 = vmatprep.mubr.f32.mxu0 %v4563
      %4878 = vmatmul.mubr.f32.gmra.mrb[0].mxu0 %v4562
      %v4879 = vpop.f32.mrb[0].mxu0
      %v4880 = vadd.f32 %v4809, %v4879
      %v4881 = vpop.f32.mrb[0].mxu0
      %v4882 = vadd.f32 %v4811, %v4881
      %4883 = vdwg.mxu0
      %s4884 = scalar_lea.vmem %s261, 48
      %4885 = vst [vmem:[%s4884] sm:$0xff] %v4880
      %4886 = vst.msk [vmem:[%s4884 + $0x8] sm:$0xff] %vm607, %v4882
      %p4887 = scmp.lt.s32.totalorder %s16, 1
      %s4888 = scalar_select %p4887, %s16, 1
      %s4889 = smul.addr %s4888, 8
      %s4890 = smul.addr %s4889, 8
      %s4891 = scalar_lea.vmem %s5, %s4890
      // Predicated region
      $region41: #{subquery_feature_sampler_forward.1} parent=39 // pred_check
        %p4892 = pneg %p154
      $region42: #{subquery_feature_sampler_forward.1} parent=39 // pred_check_branch
        %4894 = sbr.rel (%p4892) target = $region44
      $region43: #{subquery_feature_sampler_forward.1} parent=39 // pred_region
        _
      $region44: #{subquery_feature_sampler_forward.1} parent=39 // pred_fallthru
        _
    $region40: #{subquery_feature_sampler_forward.1} parent=5 // pred_fallthru
      _
    %p4895 = scmp.le.s32.totalorder 2, %s11
    // Predicated region
    $region45: #{subquery_feature_sampler_forward.1} parent=5 // pred_check
      %p4896 = pneg %p4895
    $region46: #{subquery_feature_sampler_forward.1} parent=5 // pred_check_branch
      %4898 = sbr.rel (%p4896) target = $region48
    $region47: #{subquery_feature_sampler_forward.1} parent=5 // pred_region
      %s4899 = ssub.s32 %s11, 2
      // Predicated region
      $region49: #{subquery_feature_sampler_forward.1} parent=47 // pred_check
        %p4900 = pneg %p160
      $region50: #{subquery_feature_sampler_forward.1} parent=47 // pred_check_branch
        %4902 = sbr.rel (%p4900) target = $region52
      $region51: #{subquery_feature_sampler_forward.1} parent=47 // pred_region
        %p4903 = scmp.lt.s32.totalorder %s17, 1
        %s4904 = scalar_select %p4903, %s17, 1
        %s4905 = smul.addr %s4904, 8
        %s4906 = smul.addr %s4905, 8
        %s4907 = scalar_lea.vmem %s5, %s4906
      $region52: #{subquery_feature_sampler_forward.1} parent=47 // pred_fallthru
        _
    $region48: #{subquery_feature_sampler_forward.1} parent=5 // pred_fallthru
      _
  $region6: #{subquery_feature_sampler_forward.1} parent=0 // loop_footer
    %s15 = sadd.s32 1, %s11
  $region7: #{subquery_feature_sampler_forward.1} parent=0 // loop_footer_branch
    %10 = sbr.rel target = $region3
  $region8: #{subquery_feature_sampler_forward.1} parent=0 // loop_exit
    _

</llo_original>
